<compile_context>
chip_gen: v7x
topology: tpu7x:2x2x1
jax: 0.10.0
libtpu: 0.0.40
codegen_flags: <defaults>
</compile_context>

<pallas_src>
from collections import OrderedDict

import jax
import jax.numpy as jnp
from jax.experimental import pallas as pl
from jax.experimental.pallas import tpu as pltpu


# ----------------------------------------------------------------------------
# Fused Pallas kernel:  embedding-MLP  +  all packed hypernetwork heads
# ----------------------------------------------------------------------------
def _fused_hyper_kernel(emd_ref, w1_ref, b1_ref, w2_ref, b2_ref,
                        wcat_ref, bcat_ref, out_ref):
    # Tiny MLP: Linear(E->H) -> ReLU -> Linear(H->H).  Recomputed per output
    # tile (cost is negligible vs the weight-tile DMA); keeps every grid step
    # independent so megacore sharding is safe.
    h = jnp.dot(emd_ref[...], w1_ref[...],
                preferred_element_type=jnp.float32) + b1_ref[...]
    h = jnp.maximum(h, 0.0)
    feats = jnp.dot(h, w2_ref[...],
                    preferred_element_type=jnp.float32) + b2_ref[...]
    # One output tile of the packed heads: bf16 x bf16 MXU matmul, f32 acc,
    # bias streamed in bf16 but added in f32.
    out_ref[...] = (
        jnp.dot(feats.astype(wcat_ref.dtype), wcat_ref[...],
                preferred_element_type=jnp.float32)
        + bcat_ref[...].astype(jnp.float32)
    )


def fused_hyper_forward(emd, w1t, b1, w2t, b2, wcat, bcat, *, tile_out):
    """One streaming tiled matmul: [B,H] @ [H,O_pad] (+MLP fused), tiled over O."""
    B, E = emd.shape
    H = w1t.shape[1]
    O_pad = wcat.shape[1]
    assert O_pad % tile_out == 0
    n_tiles = O_pad // tile_out

    bytes_accessed = (
        wcat.size * wcat.dtype.itemsize          # streamed head weights (dominant)
        + bcat.size * bcat.dtype.itemsize        # bf16 bias in
        + B * O_pad * 4                          # packed f32 output out
        + (emd.size + w1t.size + w2t.size + b1.size + b2.size) * 4
    )
    return pl.pallas_call(
        _fused_hyper_kernel,
        out_shape=jax.ShapeDtypeStruct((B, O_pad), jnp.float32),
        grid=(n_tiles,),
        in_specs=[
            pl.BlockSpec((B, E), lambda j: (0, 0)),          # emd (resident)
            pl.BlockSpec((E, H), lambda j: (0, 0)),          # mlp W1.T
            pl.BlockSpec((1, H), lambda j: (0, 0)),          # mlp b1
            pl.BlockSpec((H, H), lambda j: (0, 0)),          # mlp W2.T
            pl.BlockSpec((1, H), lambda j: (0, 0)),          # mlp b2
            pl.BlockSpec((H, tile_out), lambda j: (0, j)),   # packed head W.T (bf16)
            pl.BlockSpec((1, tile_out), lambda j: (0, j)),   # packed head bias (bf16)
        ],
        out_specs=pl.BlockSpec((B, tile_out), lambda j: (0, j)),
        compiler_params=pltpu.CompilerParams(
            dimension_semantics=("parallel",),
            vmem_limit_bytes=32 * 1024 * 1024,   # safe on v7x (64 MiB phys) and v5e/v6e
        ),
        cost_estimate=pl.CostEstimate(
            flops=2 * B * H * O_pad + 2 * B * E * H + 2 * B * H * H,
            transcendentals=0,
            bytes_accessed=bytes_accessed,
        ),
    )(emd, w1t, b1, w2t, b2, wcat, bcat)


# ----------------------------------------------------------------------------
# Head table + deterministic parameter initialization (mirrors __init__ shapes)
# ----------------------------------------------------------------------------
def _linear_params(key, in_f, out_f):
    k1, k2 = jax.random.split(key)
    bound = 1.0 / float(in_f) ** 0.5
    wt = jax.random.uniform(k1, (in_f, out_f), jnp.float32, -bound, bound)  # W.T
    b = jax.random.uniform(k2, (out_f,), jnp.float32, -bound, bound)
    return wt, b


def _head_table(inner_dim, feat, dim, depth):
    """Ordered (name, out_features, per-client reshape tail) for every head."""
    heads = [
        ("token",             inner_dim * feat * 3, (inner_dim, feat, 3)),
        ("position",          inner_dim * 5000,     (1, 5000, inner_dim)),
        ("hour",              inner_dim * 24,       (24, inner_dim)),
        ("weekday",           inner_dim * 7,        (7, inner_dim)),
        ("day",               inner_dim * 32,       (32, inner_dim)),
        ("month",             inner_dim * 13,       (13, inner_dim)),
        ("encoder_weight",    inner_dim,            (inner_dim,)),
        ("encoder_bias",      inner_dim,            (inner_dim,)),
        ("projection_weight", feat * inner_dim,     (feat, inner_dim)),
        ("projection_bias",   feat,                 (feat,)),
    ]
    for d in range(depth):
        p = "d{}.".format(d)
        heads += [
            (p + "qkv_value",    dim * inner_dim, (inner_dim, dim)),
            (p + "k_value",      dim * inner_dim, (inner_dim, dim)),
            (p + "v_value",      dim * inner_dim, (inner_dim, dim)),
            (p + "q_bias",       inner_dim,       (dim,)),
            (p + "k_bias",       inner_dim,       (dim,)),
            (p + "v_bias",       inner_dim,       (dim,)),
            (p + "out_weight",   dim * inner_dim, (inner_dim, dim)),
            (p + "out_bias",     inner_dim,       (dim,)),
            (p + "conv1_weight", dim * inner_dim, (inner_dim, dim, 1)),
            (p + "conv1_bias",   inner_dim,       (dim,)),
            (p + "conv2_weight", dim * inner_dim, (inner_dim, dim, 1)),
            (p + "conv2_bias",   inner_dim,       (dim,)),
            (p + "norm1_weight", inner_dim,       (dim,)),
            (p + "norm1_bias",   inner_dim,       (dim,)),
            (p + "norm2_weight", inner_dim,       (dim,)),
            (p + "norm2_bias",   inner_dim,       (dim,)),
        ]
    return heads


def _choose_tile_out(o_total, hidden_dim, weight_itemsize,
                     target_tiles=8, lane_mult=512,
                     max_tile_bytes=4 * 1024 * 1024):
    """Large, lane-dense output tiles; ~target_tiles grid steps (>=2 for v7x)."""
    tile = pl.cdiv(pl.cdiv(o_total, target_tiles), lane_mult) * lane_mult
    tile = max(tile, lane_mult)
    # Cap so a double-buffered weight tile stays a few MiB (well under VMEM).
    max_tile = max(lane_mult,
                   (max_tile_bytes // (hidden_dim * weight_itemsize))
                   // lane_mult * lane_mult)
    return min(tile, max_tile)


def init_vit_hyper(key, *, n_nodes, embedding_dim, featrue, hidden_dim, dim,
                   client_sample, heads, dim_head, n_hidden, depth,
                   tile_out=None, weight_dtype=jnp.bfloat16):
    assert n_hidden == 1, "forward here mirrors n_hidden=1 (Linear, ReLU, Linear)"
    inner_dim = dim_head * heads
    # The torch forward's .view(-1, dim) on inner_dim-sized head outputs only
    # preserves the per-client batch when inner_dim == dim (as in original use).
    assert inner_dim == dim, "ViTHyper forward requires inner_dim == dim"

    head_tbl = _head_table(inner_dim, featrue, dim, depth)
    keys = iter(jax.random.split(key, 3 + len(head_tbl)))

    params = {}
    params["emb"] = jax.random.normal(next(keys), (n_nodes, embedding_dim), jnp.float32)
    w1t, b1 = _linear_params(next(keys), embedding_dim, hidden_dim)
    w2t, b2 = _linear_params(next(keys), hidden_dim, hidden_dim)
    params["mlp"] = (w1t, b1.reshape(1, hidden_dim), w2t, b2.reshape(1, hidden_dim))

    # Pack every head weight (transposed, bf16) and bias (bf16) along the output
    # axis ONCE; pad the pack once to a multiple of tile_out.  No per-forward
    # padding and no per-head kernel launches.
    wt_parts, b_parts, layout = [], [], OrderedDict()
    off = 0
    for name, out_f, tail in head_tbl:
        wt, b = _linear_params(next(keys), hidden_dim, out_f)
        wt_parts.append(wt.astype(weight_dtype))
        b_parts.append(b.astype(weight_dtype))
        layout[name] = (off, out_f, tail)
        off += out_f
    o_total = off

    if tile_out is None:
        tile_out = _choose_tile_out(
            o_total, hidden_dim, jnp.dtype(weight_dtype).itemsize)
    o_pad = pl.cdiv(o_total, tile_out) * tile_out

    wcat = jnp.concatenate(wt_parts, axis=1)
    bcat = jnp.concatenate(b_parts, axis=0)
    if o_pad != o_total:
        wcat = jnp.pad(wcat, ((0, 0), (0, o_pad - o_total)))
        bcat = jnp.pad(bcat, (0, o_pad - o_total))
    params["wcat"] = wcat                       # [H, O_pad]  (bf16)
    params["bcat"] = bcat.reshape(1, o_pad)     # [1, O_pad]  (bf16)

    cfg = dict(
        n_nodes=n_nodes, embedding_dim=embedding_dim, feat=featrue,
        hidden_dim=hidden_dim, dim=dim, client_sample=client_sample,
        inner_dim=inner_dim, depth=depth, tile_out=tile_out,
        layout=layout, o_total=o_total,
    )
    return params, cfg


# ----------------------------------------------------------------------------
# Forward pass (test == False branch of ViTHyper.forward)
# ----------------------------------------------------------------------------
def _split_heads(packed, cfg):
    """Single jnp.split over precomputed boundaries -> {name: [B, *tail]}."""
    layout = cfg["layout"]
    names = list(layout.keys())
    boundaries = [layout[n][0] for n in names[1:]]          # cumulative offsets
    parts = jnp.split(packed[:, :cfg["o_total"]], boundaries, axis=1)
    out = {}
    for name, part in zip(names, parts):
        tail = layout[name][2]
        out[name] = part.reshape((-1,) + tail)
    return out


def vit_hyper_forward(params, cfg, idx, test=False):
    if test:
        return 0

    depth = cfg["depth"]
    client_sample = cfg["client_sample"]

    # Embedding lookup (glue) + single fused kernel for MLP and ALL heads.
    emd = params["emb"][idx]                                        # [B, E]
    packed = fused_hyper_forward(emd, *params["mlp"],
                                 params["wcat"], params["bcat"],
                                 tile_out=cfg["tile_out"])          # [B, O_pad]
    hd = _split_heads(packed, cfg)

    # Global heads (computed once; the torch code recomputes them redundantly
    # inside the loop with identical values).
    token, pos = hd["token"], hd["position"]
    hour, weekday, day, month = hd["hour"], hd["weekday"], hd["day"], hd["month"]
    enc_w, enc_b = hd["encoder_weight"], hd["encoder_bias"]
    proj_w, proj_b = hd["projection_weight"], hd["projection_bias"]

    weights = [OrderedDict() for _ in range(client_sample)]
    for d in range(depth):
        p = "d{}.".format(d)
        qkv_v, k_v, v_v = hd[p + "qkv_value"], hd[p + "k_value"], hd[p + "v_value"]
        q_b, k_b, v_b = hd[p + "q_bias"], hd[p + "k_bias"], hd[p + "v_bias"]
        out_w, out_b = hd[p + "out_weight"], hd[p + "out_bias"]
        c1_w, c1_b = hd[p + "conv1_weight"], hd[p + "conv1_bias"]
        c2_w, c2_b = hd[p + "conv2_weight"], hd[p + "conv2_bias"]
        n1_w, n1_b = hd[p + "norm1_weight"], hd[p + "norm1_bias"]
        n2_w, n2_b = hd[p + "norm2_weight"], hd[p + "norm2_bias"]

        for c in range(client_sample):
            w = weights[c]
            w["enc_embedding.value_embedding.tokenConv.weight"] = token[c]
            w["enc_embedding.position_embedding.pe"] = pos[c]
            w["enc_embedding.temporal_embedding.hour_embed.emb.weight"] = hour[c]
            w["enc_embedding.temporal_embedding.weekday_embed.emb.weight"] = weekday[c]
            w["enc_embedding.temporal_embedding.month_embed.emb.weight"] = month[c]
            w["enc_embedding.temporal_embedding.day_embed.emb.weight"] = day[c]
            pre = "encoder.attn_layers." + str(d) + "."
            w[pre + "attention.query_projection.weight"] = qkv_v[c]
            w[pre + "attention.query_projection.bias"] = q_b[c]
            w[pre + "attention.key_projection.weight"] = k_v[c]
            w[pre + "attention.key_projection.bias"] = k_b[c]
            w[pre + "attention.value_projection.weight"] = v_v[c]
            w[pre + "attention.value_projection.bias"] = v_b[c]
            w[pre + "attention.out_projection.weight"] = out_w[c]
            w[pre + "attention.out_projection.bias"] = out_b[c]
            w[pre + "conv1.weight"] = c1_w[c]
            w[pre + "conv1.bias"] = c1_b[c]
            w[pre + "conv2.weight"] = c2_w[c]
            w[pre + "conv2.bias"] = c2_b[c]
            w[pre + "norm1.weight"] = n1_w[c]
            w[pre + "norm1.bias"] = n1_b[c]
            w[pre + "norm2.weight"] = n2_w[c]
            w[pre + "norm2.bias"] = n2_b[c]
            if d == depth - 1:
                w["encoder.norm.weight"] = enc_w[c]
                w["encoder.norm.bias"] = enc_b[c]
                w["projection.weight"] = proj_w[c]
                w["projection.bias"] = proj_b[c]
    return weights


# ----------------------------------------------------------------------------
# Main
# ----------------------------------------------------------------------------
if __name__ == "__main__":
    key = jax.random.PRNGKey(0)
    params, cfg = init_vit_hyper(
        key,
        n_nodes=4, embedding_dim=8, featrue=4, hidden_dim=32, dim=16,
        client_sample=2, heads=2, dim_head=8, n_hidden=1, depth=2,
    )
    idx = jnp.arange(cfg["client_sample"], dtype=jnp.int32)   # client indices

    weights = vit_hyper_forward(params, cfg, idx, test=False)
    weights = jax.block_until_ready(weights)

    # Light numeric sanity check of the fused Pallas path vs plain jnp
    # (same bf16-weight/bias + f32-accumulate math as the kernel).
    emd = params["emb"][idx]
    w1t, b1, w2t, b2 = params["mlp"]
    feats = jnp.maximum(emd @ w1t + b1, 0.0) @ w2t + b2
    feats_bf = feats.astype(jnp.bfloat16)

    def ref_head(name):
        off, size, tail = cfg["layout"][name]
        r = (jnp.dot(feats_bf, params["wcat"][:, off:off + size],
                     preferred_element_type=jnp.float32)
             + params["bcat"][0, off:off + size].astype(jnp.float32))
        return r.reshape((-1,) + tail)

    ref = ref_head("d0.qkv_value")
    got = weights[0]["encoder.attn_layers.0.attention.query_projection.weight"]
    assert got.shape == ref[0].shape
    assert jnp.allclose(got, ref[0], atol=2e-2, rtol=2e-2), "qkv mismatch vs reference"

    ref = ref_head("position")
    pe = weights[1]["enc_embedding.position_embedding.pe"]
    assert pe.shape == (1, 5000, cfg["inner_dim"])
    assert jnp.allclose(pe, ref[1], atol=2e-2, rtol=2e-2), "position mismatch vs reference"

    print("KERNEL_OK")
</pallas_src>

<mosaic_0001>
module attributes {stable_mosaic.version = 11 : i64} {
  func.func @_fused_hyper_kernel(%arg0: i32, %arg1: memref<2x8xf32, #tpu.memory_space<vmem>>, %arg2: memref<8x32xf32, #tpu.memory_space<vmem>>, %arg3: memref<1x32xf32, #tpu.memory_space<vmem>>, %arg4: memref<32x32xf32, #tpu.memory_space<vmem>>, %arg5: memref<1x32xf32, #tpu.memory_space<vmem>>, %arg6: memref<32x10752xbf16, #tpu.memory_space<vmem>>, %arg7: memref<1x10752xbf16, #tpu.memory_space<vmem>>, %arg8: memref<2x10752xf32, #tpu.memory_space<vmem>>) attributes {dimension_semantics = [#tpu.dimension_semantics<parallel>], iteration_bounds = array<i64: 8>, scalar_prefetch = 0 : i64, scratch_operands = 0 : i64, tpu.core_type = #tpu.core_type<tc>, window_params = [{pipeline_mode = #tpu.pipeline_mode<synchronous>, transform_indices = @transform_0, window_bounds = array<i64: 2, 8>}, {pipeline_mode = #tpu.pipeline_mode<synchronous>, transform_indices = @transform_1, window_bounds = array<i64: 8, 32>}, {pipeline_mode = #tpu.pipeline_mode<synchronous>, transform_indices = @transform_2, window_bounds = array<i64: 1, 32>}, {pipeline_mode = #tpu.pipeline_mode<synchronous>, transform_indices = @transform_3, window_bounds = array<i64: 32, 32>}, {pipeline_mode = #tpu.pipeline_mode<synchronous>, transform_indices = @transform_4, window_bounds = array<i64: 1, 32>}, {transform_indices = @transform_5, window_bounds = array<i64: 32, 10752>}, {transform_indices = @transform_6, window_bounds = array<i64: 1, 10752>}, {transform_indices = @transform_7, window_bounds = array<i64: 2, 10752>}]} {
    %c0 = arith.constant 0 : index
    %c0_0 = arith.constant 0 : index
    %0 = vector.load %arg1[%c0, %c0_0] : memref<2x8xf32, #tpu.memory_space<vmem>>, vector<2x8xf32>
    %c0_1 = arith.constant 0 : index
    %c0_2 = arith.constant 0 : index
    %1 = vector.load %arg2[%c0_1, %c0_2] : memref<8x32xf32, #tpu.memory_space<vmem>>, vector<8x32xf32>
    %cst = arith.constant dense<0.000000e+00> : vector<2x32xf32>
    %2 = tpu.matmul %0, %1, %cst {dimension_numbers = #tpu.dot_dimension_numbers<[1], [0], [0], [1], [0, 0, 1, 1], [], []>} : vector<2x8xf32>, vector<8x32xf32>, vector<2x32xf32> -> vector<2x32xf32>
    %c0_3 = arith.constant 0 : index
    %c0_4 = arith.constant 0 : index
    %3 = vector.load %arg3[%c0_3, %c0_4] : memref<1x32xf32, #tpu.memory_space<vmem>>, vector<1x32xf32>
    %4 = vector.broadcast %3 : vector<1x32xf32> to vector<2x32xf32>
    %5 = arith.addf %2, %4 : vector<2x32xf32>
    %cst_5 = arith.constant 0.000000e+00 : f32
    %6 = vector.broadcast %cst_5 : f32 to vector<2x32xf32>
    %7 = arith.maximumf %5, %6 : vector<2x32xf32>
    %c0_6 = arith.constant 0 : index
    %c0_7 = arith.constant 0 : index
    %8 = vector.load %arg4[%c0_6, %c0_7] : memref<32x32xf32, #tpu.memory_space<vmem>>, vector<32x32xf32>
    %cst_8 = arith.constant dense<0.000000e+00> : vector<2x32xf32>
    %9 = tpu.matmul %7, %8, %cst_8 {dimension_numbers = #tpu.dot_dimension_numbers<[1], [0], [0], [1], [0, 0, 1, 1], [], []>} : vector<2x32xf32>, vector<32x32xf32>, vector<2x32xf32> -> vector<2x32xf32>
    %c0_9 = arith.constant 0 : index
    %c0_10 = arith.constant 0 : index
    %10 = vector.load %arg5[%c0_9, %c0_10] : memref<1x32xf32, #tpu.memory_space<vmem>>, vector<1x32xf32>
    %11 = vector.broadcast %10 : vector<1x32xf32> to vector<2x32xf32>
    %12 = arith.addf %9, %11 : vector<2x32xf32>
    %13 = arith.truncf %12 : vector<2x32xf32> to vector<2x32xbf16>
    %c0_11 = arith.constant 0 : index
    %c0_12 = arith.constant 0 : index
    %14 = vector.load %arg6[%c0_11, %c0_12] : memref<32x10752xbf16, #tpu.memory_space<vmem>>, vector<32x10752xbf16>
    %cst_13 = arith.constant dense<0.000000e+00> : vector<2x10752xf32>
    %15 = tpu.matmul %13, %14, %cst_13 {dimension_numbers = #tpu.dot_dimension_numbers<[1], [0], [0], [1], [0, 0, 1, 1], [], []>} : vector<2x32xbf16>, vector<32x10752xbf16>, vector<2x10752xf32> -> vector<2x10752xf32>
    %c0_14 = arith.constant 0 : index
    %c0_15 = arith.constant 0 : index
    %16 = vector.load %arg7[%c0_14, %c0_15] : memref<1x10752xbf16, #tpu.memory_space<vmem>>, vector<1x10752xbf16>
    %17 = arith.extf %16 : vector<1x10752xbf16> to vector<1x10752xf32>
    %18 = vector.broadcast %17 : vector<1x10752xf32> to vector<2x10752xf32>
    %19 = arith.addf %15, %18 : vector<2x10752xf32>
    %c0_16 = arith.constant 0 : index
    %c0_17 = arith.constant 0 : index
    %20 = vector.load %arg8[%c0_16, %c0_17] : memref<2x10752xf32, #tpu.memory_space<vmem>>, vector<2x10752xf32>
    tpu.vector_store %arg8[%c0_16, %c0_17], %19 {strides = array<i32>} : memref<2x10752xf32, #tpu.memory_space<vmem>>, vector<2x10752xf32>,
    return
  }
  func.func @transform_0(%arg0: i32) -> (i32, i32) {
    %c0_i32 = arith.constant 0 : i32
    %c0_i32_0 = arith.constant 0 : i32
    %c0_i32_1 = arith.constant 0 : i32
    return %c0_i32, %c0_i32_0 : i32, i32
  }
  func.func @transform_1(%arg0: i32) -> (i32, i32) {
    %c0_i32 = arith.constant 0 : i32
    %c0_i32_0 = arith.constant 0 : i32
    %c0_i32_1 = arith.constant 0 : i32
    return %c0_i32, %c0_i32_0 : i32, i32
  }
  func.func @transform_2(%arg0: i32) -> (i32, i32) {
    %c0_i32 = arith.constant 0 : i32
    %c0_i32_0 = arith.constant 0 : i32
    %c0_i32_1 = arith.constant 0 : i32
    return %c0_i32, %c0_i32_0 : i32, i32
  }
  func.func @transform_3(%arg0: i32) -> (i32, i32) {
    %c0_i32 = arith.constant 0 : i32
    %c0_i32_0 = arith.constant 0 : i32
    %c0_i32_1 = arith.constant 0 : i32
    return %c0_i32, %c0_i32_0 : i32, i32
  }
  func.func @transform_4(%arg0: i32) -> (i32, i32) {
    %c0_i32 = arith.constant 0 : i32
    %c0_i32_0 = arith.constant 0 : i32
    %c0_i32_1 = arith.constant 0 : i32
    return %c0_i32, %c0_i32_0 : i32, i32
  }
  func.func @transform_5(%arg0: i32) -> (i32, i32) {
    %c0_i32 = arith.constant 0 : i32
    %c0_i32_0 = arith.constant 0 : i32
    return %c0_i32, %arg0 : i32, i32
  }
  func.func @transform_6(%arg0: i32) -> (i32, i32) {
    %c0_i32 = arith.constant 0 : i32
    %c0_i32_0 = arith.constant 0 : i32
    return %c0_i32, %arg0 : i32, i32
  }
  func.func @transform_7(%arg0: i32) -> (i32, i32) {
    %c0_i32 = arith.constant 0 : i32
    %c0_i32_0 = arith.constant 0 : i32
    return %c0_i32, %arg0 : i32, i32
  }
}

</mosaic_0001>

<llo_original>
// kernel: tpu_custom_call.1
$region0: #{tpu_custom_call.1}
  #allocation0 [shape = 'u32[]', space=smem, size = 0x4, offset = 0x4, fixed_abs, tag = 'smem constant byte address 0x4 - core index']
  #allocation1 [shape = 'u32[144,128]{1,0:T(1,128)}', space=vmem, size = 0x12000, scoped, tag = 'internal scratch']
  %s0 = inlined_call_operand.hbm [shape: f32[2,8], index: 0, kind: input, shape index: {}]
  %s1 = inlined_call_operand.hbm [shape: f32[8,32], index: 1, kind: input, shape index: {}]
  %s2 = inlined_call_operand.hbm [shape: f32[1,32], index: 2, kind: input, shape index: {}]
  %s3 = inlined_call_operand.hbm [shape: f32[32,32], index: 3, kind: input, shape index: {}]
  %s4 = inlined_call_operand.hbm [shape: f32[1,32], index: 4, kind: input, shape index: {}]
  %s5 = inlined_call_operand.hbm [shape: bf16[32,86016], index: 5, kind: input, shape index: {}]
  %s6 = inlined_call_operand.hbm [shape: bf16[1,86016], index: 6, kind: input, shape index: {}]
  %s7 = inlined_call_operand.hbm [shape: f32[2,86016], index: 7, kind: output, shape index: {}]
  %s8 = sld [smem:[#allocation0]]
  $region89: #{tpu_custom_call.1} parent=0
    _
  %s10 = ssub.s32 1, %s8
  %s11 = scalar_select 0, %s10, %s8
  $region1: #{tpu_custom_call.1} parent=0
    #allocation2 [shape = 'u8[1024]{0}', space=vmem, size = 0x400, scoped, tag = 'input window, operand 0, single buffered']
    #allocation3 [shape = 's32[2]{0}', space=sflag, size = 0x8, scoped, tag = 'scoped memory for tpu_custom_call.1']
    #allocation4 [shape = 's32[2]{0}', space=sflag, size = 0x8, scoped, tag = 'scoped memory for tpu_custom_call.1']
    #allocation5 [shape = 'u8[4096]{0}', space=vmem, size = 0x1000, scoped, tag = 'input window, operand 1, single buffered']
    #allocation6 [shape = 's32[1]{0}', space=sflag, size = 0x4, scoped, tag = 'scoped memory for tpu_custom_call.1']
    #allocation7 [shape = 'u8[512]{0}', space=vmem, size = 0x400, scoped, tag = 'input window, operand 2, single buffered']
    #allocation8 [shape = 'u8[16384]{0}', space=vmem, size = 0x4000, scoped, tag = 'input window, operand 3, single buffered']
    #allocation9 [shape = 's32[1]{0}', space=sflag, size = 0x4, scoped, tag = 'scoped memory for tpu_custom_call.1']
    #allocation10 [shape = 'u8[512]{0}', space=vmem, size = 0x400, scoped, tag = 'input window, operand 4, single buffered']
    #allocation11 [shape = 'u8[1376256]{0}', space=vmem, size = 0x150000, scoped, tag = 'input window, operand 5']
    #allocation12 [shape = 's32[2]{0}', space=sflag, size = 0x8, scoped, tag = 'scoped memory for tpu_custom_call.1']
    #allocation13 [shape = 'u8[86016]{0}', space=vmem, size = 0x15000, scoped, tag = 'input window, operand 6']
    #allocation14 [shape = 'u8[172032]{0}', space=vmem, size = 0x2a000, scoped, tag = 'output window, operand 0']
    %12 = vsyncpa [#allocation3], 0
    %13 = vsyncpa [#allocation6], 0
    %14 = vsyncpa [#allocation9], 0
    %15 = vsyncpa [#allocation12], 0
    %s16 = scalar_lea.sflag [#allocation12], 1
    %17 = vsyncpa %s16, 0
    %18 = vsyncpa [#allocation4], 0
    %s19 = scalar_lea.sflag [#allocation4], 1
    %20 = vsyncpa %s19, 0
    loop: start=0, step=1, limit=10
    $region2: #{tpu_custom_call.1} parent=1 // loop_pre_header
      _
    $region3: #{tpu_custom_call.1} parent=1 // loop_header
      %s22 = sphi 0, %s26
      %p23 = scmp.ge.s32.totalorder %s22, 10
      %s30 = sphi 0, %s30
      %s32 = sphi 0, %s30
      %s33 = sphi 0, %s32
      %s47 = sphi 0, %s33
      %s51 = sphi 0, %s51
      %s53 = sphi 0, %s51
      %s54 = sphi 0, %s53
      %s68 = sphi 0, %s54
      %s72 = sphi 0, %s72
      %s74 = sphi 0, %s72
      %s75 = sphi 0, %s74
      %s89 = sphi 0, %s75
      %s93 = sphi 0, %s93
      %s95 = sphi 0, %s93
      %s96 = sphi 0, %s95
      %s110 = sphi 0, %s96
      %s114 = sphi 0, %s114
      %s116 = sphi 0, %s114
      %s117 = sphi 0, %s116
      %s131 = sphi 0, %s117
      %s137 = sphi 0, %s139
      %s140 = sphi 0, %s137
      %s141 = sphi 0, %s140
      %s157 = sphi 0, %s141
      %s163 = sphi 0, %s165
      %s166 = sphi 0, %s163
      %s167 = sphi 0, %s166
      %s183 = sphi 0, %s167
      %s189 = sphi 0, %s191
      %s192 = sphi 0, %s189
      %s193 = sphi 0, %s192
      %s209 = sphi 0, %s193
    $region4: #{tpu_custom_call.1} parent=1 // loop_header_branch
      %25 = sbr.rel (%p23) target = $region8
    $region5: #{tpu_custom_call.1} parent=1 // loop_body
      %s27 = ssub.s32 %s22, 1
      %s28 = ssub.s32 %s22, 2
      %s29 = sadd.s32 %s22, 1
      %s31 = sadd.s32 %s30, 1
      %p34 = scmp.eq.s32.totalorder %s22, 7
      %p35 = scmp.ne.s32.totalorder %s30, %s32
      %p36 = scmp.eq.s32.totalorder %s22, 0
      %p37 = por %p35, %p36
      %p38 = scmp.ne.s32.totalorder %s30, %s32
      %p39 = scmp.eq.s32.totalorder %s27, 7
      %p40 = por %p38, %p39
      %p41 = scmp.ne.s32.totalorder %s32, %s33
      %p42 = scmp.eq.s32.totalorder %s27, 0
      %p43 = por %p41, %p42
      %p44 = scmp.ne.s32.totalorder %s32, %s33
      %p45 = scmp.eq.s32.totalorder %s28, 7
      %p46 = por %p44, %p45
      %p48 = scmp.ne.s32.totalorder %s33, %s47
      %p49 = scmp.eq.s32.totalorder %s28, 0
      %p50 = por %p48, %p49
      %s52 = sadd.s32 %s51, 1
      %p55 = scmp.eq.s32.totalorder %s22, 7
      %p56 = scmp.ne.s32.totalorder %s51, %s53
      %p57 = scmp.eq.s32.totalorder %s22, 0
      %p58 = por %p56, %p57
      %p59 = scmp.ne.s32.totalorder %s51, %s53
      %p60 = scmp.eq.s32.totalorder %s27, 7
      %p61 = por %p59, %p60
      %p62 = scmp.ne.s32.totalorder %s53, %s54
      %p63 = scmp.eq.s32.totalorder %s27, 0
      %p64 = por %p62, %p63
      %p65 = scmp.ne.s32.totalorder %s53, %s54
      %p66 = scmp.eq.s32.totalorder %s28, 7
      %p67 = por %p65, %p66
      %p69 = scmp.ne.s32.totalorder %s54, %s68
      %p70 = scmp.eq.s32.totalorder %s28, 0
      %p71 = por %p69, %p70
      %s73 = sadd.s32 %s72, 1
      %p76 = scmp.eq.s32.totalorder %s22, 7
      %p77 = scmp.ne.s32.totalorder %s72, %s74
      %p78 = scmp.eq.s32.totalorder %s22, 0
      %p79 = por %p77, %p78
      %p80 = scmp.ne.s32.totalorder %s72, %s74
      %p81 = scmp.eq.s32.totalorder %s27, 7
      %p82 = por %p80, %p81
      %p83 = scmp.ne.s32.totalorder %s74, %s75
      %p84 = scmp.eq.s32.totalorder %s27, 0
      %p85 = por %p83, %p84
      %p86 = scmp.ne.s32.totalorder %s74, %s75
      %p87 = scmp.eq.s32.totalorder %s28, 7
      %p88 = por %p86, %p87
      %p90 = scmp.ne.s32.totalorder %s75, %s89
      %p91 = scmp.eq.s32.totalorder %s28, 0
      %p92 = por %p90, %p91
      %s94 = sadd.s32 %s93, 1
      %p97 = scmp.eq.s32.totalorder %s22, 7
      %p98 = scmp.ne.s32.totalorder %s93, %s95
      %p99 = scmp.eq.s32.totalorder %s22, 0
      %p100 = por %p98, %p99
      %p101 = scmp.ne.s32.totalorder %s93, %s95
      %p102 = scmp.eq.s32.totalorder %s27, 7
      %p103 = por %p101, %p102
      %p104 = scmp.ne.s32.totalorder %s95, %s96
      %p105 = scmp.eq.s32.totalorder %s27, 0
      %p106 = por %p104, %p105
      %p107 = scmp.ne.s32.totalorder %s95, %s96
      %p108 = scmp.eq.s32.totalorder %s28, 7
      %p109 = por %p107, %p108
      %p111 = scmp.ne.s32.totalorder %s96, %s110
      %p112 = scmp.eq.s32.totalorder %s28, 0
      %p113 = por %p111, %p112
      %s115 = sadd.s32 %s114, 1
      %p118 = scmp.eq.s32.totalorder %s22, 7
      %p119 = scmp.ne.s32.totalorder %s114, %s116
      %p120 = scmp.eq.s32.totalorder %s22, 0
      %p121 = por %p119, %p120
      %p122 = scmp.ne.s32.totalorder %s114, %s116
      %p123 = scmp.eq.s32.totalorder %s27, 7
      %p124 = por %p122, %p123
      %p125 = scmp.ne.s32.totalorder %s116, %s117
      %p126 = scmp.eq.s32.totalorder %s27, 0
      %p127 = por %p125, %p126
      %p128 = scmp.ne.s32.totalorder %s116, %s117
      %p129 = scmp.eq.s32.totalorder %s28, 7
      %p130 = por %p128, %p129
      %p132 = scmp.ne.s32.totalorder %s117, %s131
      %p133 = scmp.eq.s32.totalorder %s28, 0
      %p134 = por %p132, %p133
      %s135 = ssub.s32 %s22, %s29
      %p136 = scmp.eq.s32.totalorder %s135, 0
      %s138 = sadd.s32 %s137, 1
      %s139 = scalar_select %p136, %s137, %s138
      %p142 = pneg %p136
      %p143 = scmp.eq.s32.totalorder %s22, 7
      %p144 = por %p142, %p143
      %p145 = scmp.ne.s32.totalorder %s137, %s140
      %p146 = scmp.eq.s32.totalorder %s22, 0
      %p147 = por %p145, %p146
      %p148 = scmp.ne.s32.totalorder %s137, %s140
      %p149 = scmp.eq.s32.totalorder %s27, 7
      %p150 = por %p148, %p149
      %p151 = scmp.ne.s32.totalorder %s140, %s141
      %p152 = scmp.eq.s32.totalorder %s27, 0
      %p153 = por %p151, %p152
      %p154 = scmp.ne.s32.totalorder %s140, %s141
      %p155 = scmp.eq.s32.totalorder %s28, 7
      %p156 = por %p154, %p155
      %p158 = scmp.ne.s32.totalorder %s141, %s157
      %p159 = scmp.eq.s32.totalorder %s28, 0
      %p160 = por %p158, %p159
      %s161 = ssub.s32 %s22, %s29
      %p162 = scmp.eq.s32.totalorder %s161, 0
      %s164 = sadd.s32 %s163, 1
      %s165 = scalar_select %p162, %s163, %s164
      %p168 = pneg %p162
      %p169 = scmp.eq.s32.totalorder %s22, 7
      %p170 = por %p168, %p169
      %p171 = scmp.ne.s32.totalorder %s163, %s166
      %p172 = scmp.eq.s32.totalorder %s22, 0
      %p173 = por %p171, %p172
      %p174 = scmp.ne.s32.totalorder %s163, %s166
      %p175 = scmp.eq.s32.totalorder %s27, 7
      %p176 = por %p174, %p175
      %p177 = scmp.ne.s32.totalorder %s166, %s167
      %p178 = scmp.eq.s32.totalorder %s27, 0
      %p179 = por %p177, %p178
      %p180 = scmp.ne.s32.totalorder %s166, %s167
      %p181 = scmp.eq.s32.totalorder %s28, 7
      %p182 = por %p180, %p181
      %p184 = scmp.ne.s32.totalorder %s167, %s183
      %p185 = scmp.eq.s32.totalorder %s28, 0
      %p186 = por %p184, %p185
      %s187 = ssub.s32 %s22, %s29
      %p188 = scmp.eq.s32.totalorder %s187, 0
      %s190 = sadd.s32 %s189, 1
      %s191 = scalar_select %p188, %s189, %s190
      %p194 = pneg %p188
      %p195 = scmp.eq.s32.totalorder %s22, 7
      %p196 = por %p194, %p195
      %p197 = scmp.ne.s32.totalorder %s189, %s192
      %p198 = scmp.eq.s32.totalorder %s22, 0
      %p199 = por %p197, %p198
      %p200 = scmp.ne.s32.totalorder %s189, %s192
      %p201 = scmp.eq.s32.totalorder %s27, 7
      %p202 = por %p200, %p201
      %p203 = scmp.ne.s32.totalorder %s192, %s193
      %p204 = scmp.eq.s32.totalorder %s27, 0
      %p205 = por %p203, %p204
      %p206 = scmp.ne.s32.totalorder %s192, %s193
      %p207 = scmp.eq.s32.totalorder %s28, 7
      %p208 = por %p206, %p207
      %p210 = scmp.ne.s32.totalorder %s193, %s209
      %p211 = scmp.eq.s32.totalorder %s28, 0
      %p212 = por %p210, %p211
      %p213 = scmp.le.s32.totalorder 1, %s22
      %p214 = scmp.lt.s32.totalorder %s22, 9
      %p215 = pnand %p213, %p214
      %p216 = pneg %p215
      // Predicated region
      $region9: #{tpu_custom_call.1} parent=5 // pred_check
        _
      $region10: #{tpu_custom_call.1} parent=5 // pred_check_branch
        %218 = sbr.rel (%p215) target = $region12
      $region11: #{tpu_custom_call.1} parent=5 // pred_region
        %s219 = ssub.s32 %s22, 1
        // Predicated region
        $region13: #{tpu_custom_call.1} parent=11 // pred_check
          %p220 = pneg %p43
        $region14: #{tpu_custom_call.1} parent=11 // pred_check_branch
          %222 = sbr.rel (%p220) target = $region16
        $region15: #{tpu_custom_call.1} parent=11 // pred_region
          %s224 = ssub.s32 32, 32
          %225 = vsyncadd [#allocation3], %s224
          %s227 = sshll.u32 [#allocation2], 4
          %s228 = int_to_ptr.vmem [resolvable:$true] %s227
          %230 = dma.hbm_to_vmem [thread:$0]  %s0, 32, %s228, [#allocation3]
        $region16: #{tpu_custom_call.1} parent=11 // pred_fallthru
          _
        // Predicated region
        $region17: #{tpu_custom_call.1} parent=11 // pred_check
          %p231 = pneg %p64
        $region18: #{tpu_custom_call.1} parent=11 // pred_check_branch
          %233 = sbr.rel (%p231) target = $region20
        $region19: #{tpu_custom_call.1} parent=11 // pred_region
          %s235 = ssub.s32 128, 128
          %236 = vsyncadd [#allocation6], %s235
          %s238 = sshll.u32 [#allocation5], 4
          %s239 = int_to_ptr.vmem [resolvable:$true] %s238
          %241 = dma.hbm_to_vmem [thread:$0]  %s1, 128, %s239, [#allocation6]
        $region20: #{tpu_custom_call.1} parent=11 // pred_fallthru
          _
        // Predicated region
        $region21: #{tpu_custom_call.1} parent=11 // pred_check
          %p242 = pneg %p85
        $region22: #{tpu_custom_call.1} parent=11 // pred_check_branch
          %244 = sbr.rel (%p242) target = $region24
        $region23: #{tpu_custom_call.1} parent=11 // pred_region
          %s246 = ssub.s32 16, 16
          %247 = vsyncadd [#allocation6], %s246
          %s249 = sshll.u32 [#allocation7], 4
          %s250 = int_to_ptr.vmem [resolvable:$true] %s249
          %252 = dma.hbm_to_vmem [thread:$0]  %s2, 16, %s250, [#allocation6]
        $region24: #{tpu_custom_call.1} parent=11 // pred_fallthru
          _
        // Predicated region
        $region25: #{tpu_custom_call.1} parent=11 // pred_check
          %p253 = pneg %p106
        $region26: #{tpu_custom_call.1} parent=11 // pred_check_branch
          %255 = sbr.rel (%p253) target = $region28
        $region27: #{tpu_custom_call.1} parent=11 // pred_region
          %s257 = ssub.s32 512, 512
          %258 = vsyncadd [#allocation9], %s257
          %s259 = sshll.u32 [#allocation8], 4
          %s260 = int_to_ptr.vmem [resolvable:$true] %s259
          %265 = dma.hbm_to_vmem [thread:$0]  %s3, 512, %s260, [#allocation9], 128, 128, 8
        $region28: #{tpu_custom_call.1} parent=11 // pred_fallthru
          _
        // Predicated region
        $region29: #{tpu_custom_call.1} parent=11 // pred_check
          %p266 = pneg %p127
        $region30: #{tpu_custom_call.1} parent=11 // pred_check_branch
          %268 = sbr.rel (%p266) target = $region32
        $region31: #{tpu_custom_call.1} parent=11 // pred_region
          %s270 = ssub.s32 16, 16
          %271 = vsyncadd [#allocation9], %s270
          %s273 = sshll.u32 [#allocation10], 4
          %s274 = int_to_ptr.vmem [resolvable:$true] %s273
          %276 = dma.hbm_to_vmem [thread:$0]  %s4, 16, %s274, [#allocation9]
        $region32: #{tpu_custom_call.1} parent=11 // pred_fallthru
          _
      $region12: #{tpu_custom_call.1} parent=5 // pred_fallthru
        _
      %p277 = scmp.lt.s32.totalorder %s22, 8
      // Predicated region
      $region33: #{tpu_custom_call.1} parent=5 // pred_check
        %p278 = pneg %p277
      $region34: #{tpu_custom_call.1} parent=5 // pred_check_branch
        %280 = sbr.rel (%p278) target = $region36
      $region35: #{tpu_custom_call.1} parent=5 // pred_region
        // Predicated region
        $region37: #{tpu_custom_call.1} parent=35 // pred_check
          %p281 = pneg %p147
        $region38: #{tpu_custom_call.1} parent=35 // pred_check_branch
          %283 = sbr.rel (%p281) target = $region40
        $region39: #{tpu_custom_call.1} parent=35 // pred_region
          %s284 = sand.u32 %s22, 1
          %s285 = scalar_lea.sflag [#allocation12], %s284
          %s286 = sand.u32 %s137, 1
          %s287 = smul.addr %s286, 1344
          %s288 = scalar_lea.vmem [#allocation11], %s287
          %s289 = smul.u32 84, %s22
          %s291 = ssub.s32 21504, 21504
          %292 = vsyncadd %s285, %s291
          %s293 = smul.addr %s289, 64
          %s294 = scalar_lea.hbm %s5, %s293
          %s295 = sshll.u32 %s288, 4
          %s296 = int_to_ptr.vmem [resolvable:$true] %s295
          %301 = dma.hbm_to_vmem [thread:$0]  %s294, 21504, %s296, %s285, 43008, 5376, 336
        $region40: #{tpu_custom_call.1} parent=35 // pred_fallthru
          _
        // Predicated region
        $region41: #{tpu_custom_call.1} parent=35 // pred_check
          %p302 = pneg %p173
        $region42: #{tpu_custom_call.1} parent=35 // pred_check_branch
          %304 = sbr.rel (%p302) target = $region44
        $region43: #{tpu_custom_call.1} parent=35 // pred_region
          %s305 = sand.u32 %s22, 1
          %s306 = scalar_lea.sflag [#allocation12], %s305
          %s307 = sand.u32 %s163, 1
          %s308 = smul.addr %s307, 84
          %s309 = scalar_lea.vmem [#allocation13], %s308
          %s310 = smul.u32 84, %s22
          %s312 = ssub.s32 1344, 1344
          %313 = vsyncadd %s306, %s312
          %s314 = smul.addr %s310, 16
          %s315 = scalar_lea.hbm %s6, %s314
          %s317 = sshll.u32 %s309, 4
          %s318 = int_to_ptr.vmem [resolvable:$true] %s317
          %320 = dma.hbm_to_vmem [thread:$0]  %s315, 1344, %s318, %s306
        $region44: #{tpu_custom_call.1} parent=35 // pred_fallthru
          _
      $region36: #{tpu_custom_call.1} parent=5 // pred_fallthru
        _
      %p321 = scmp.le.s32.totalorder 1, %s22
      %p322 = scmp.lt.s32.totalorder %s22, 9
      %p323 = pnand %p321, %p322
      %p324 = pneg %p323
      // Predicated region
      $region45: #{tpu_custom_call.1} parent=5 // pred_check
        _
      $region46: #{tpu_custom_call.1} parent=5 // pred_check_branch
        %326 = sbr.rel (%p323) target = $region48
      $region47: #{tpu_custom_call.1} parent=5 // pred_region
        %s327 = ssub.s32 %s22, 1
        // Predicated region
        $region49: #{tpu_custom_call.1} parent=47 // pred_check
          %p328 = pneg %p43
        $region50: #{tpu_custom_call.1} parent=47 // pred_check_branch
          %330 = sbr.rel (%p328) target = $region52
        $region51: #{tpu_custom_call.1} parent=47 // pred_region
          %331 = dma.done [#allocation3], 32
        $region52: #{tpu_custom_call.1} parent=47 // pred_fallthru
          _
        // Predicated region
        $region53: #{tpu_custom_call.1} parent=47 // pred_check
          %p332 = pneg %p64
        $region54: #{tpu_custom_call.1} parent=47 // pred_check_branch
          %334 = sbr.rel (%p332) target = $region56
        $region55: #{tpu_custom_call.1} parent=47 // pred_region
          %335 = dma.done [#allocation6], 128
        $region56: #{tpu_custom_call.1} parent=47 // pred_fallthru
          _
        // Predicated region
        $region57: #{tpu_custom_call.1} parent=47 // pred_check
          %p336 = pneg %p85
        $region58: #{tpu_custom_call.1} parent=47 // pred_check_branch
          %338 = sbr.rel (%p336) target = $region60
        $region59: #{tpu_custom_call.1} parent=47 // pred_region
          %339 = dma.done [#allocation6], 16
        $region60: #{tpu_custom_call.1} parent=47 // pred_fallthru
          _
        // Predicated region
        $region61: #{tpu_custom_call.1} parent=47 // pred_check
          %p340 = pneg %p106
        $region62: #{tpu_custom_call.1} parent=47 // pred_check_branch
          %342 = sbr.rel (%p340) target = $region64
        $region63: #{tpu_custom_call.1} parent=47 // pred_region
          %343 = dma.done [#allocation9], 512
        $region64: #{tpu_custom_call.1} parent=47 // pred_fallthru
          _
        // Predicated region
        $region65: #{tpu_custom_call.1} parent=47 // pred_check
          %p344 = pneg %p127
        $region66: #{tpu_custom_call.1} parent=47 // pred_check_branch
          %346 = sbr.rel (%p344) target = $region68
        $region67: #{tpu_custom_call.1} parent=47 // pred_region
          %347 = dma.done [#allocation9], 16
        $region68: #{tpu_custom_call.1} parent=47 // pred_fallthru
          _
        %s348 = sand.u32 %s27, 1
        %s349 = scalar_lea.sflag [#allocation12], %s348
        %s350 = sand.u32 %s140, 1
        %s351 = smul.addr %s350, 1344
        %s352 = scalar_lea.vmem [#allocation11], %s351
        // Predicated region
        $region69: #{tpu_custom_call.1} parent=47 // pred_check
          %p353 = pneg %p153
        $region70: #{tpu_custom_call.1} parent=47 // pred_check_branch
          %355 = sbr.rel (%p353) target = $region72
        $region71: #{tpu_custom_call.1} parent=47 // pred_region
          %356 = dma.done %s349, 21504
        $region72: #{tpu_custom_call.1} parent=47 // pred_fallthru
          _
        %s357 = sand.u32 %s27, 1
        %s358 = scalar_lea.sflag [#allocation12], %s357
        %s359 = sand.u32 %s166, 1
        %s360 = smul.addr %s359, 84
        %s361 = scalar_lea.vmem [#allocation13], %s360
        // Predicated region
        $region73: #{tpu_custom_call.1} parent=47 // pred_check
          %p362 = pneg %p179
        $region74: #{tpu_custom_call.1} parent=47 // pred_check_branch
          %364 = sbr.rel (%p362) target = $region76
        $region75: #{tpu_custom_call.1} parent=47 // pred_region
          %365 = dma.done %s358, 1344
        $region76: #{tpu_custom_call.1} parent=47 // pred_fallthru
          _
        %p366 = pneg %p43
        %p367 = pneg %p40
        %p368 = pneg %p64
        %p369 = pneg %p61
        %p370 = pneg %p85
        %p371 = pneg %p82
        %p372 = pneg %p106
        %p373 = pneg %p103
        %p374 = pneg %p127
        %p375 = pneg %p124
        %s376 = sand.u32 %s27, 1
        %s377 = scalar_lea.sflag [#allocation12], %s376
        %s378 = sand.u32 %s140, 1
        %s379 = smul.addr %s378, 1344
        %s380 = scalar_lea.vmem [#allocation11], %s379
        %p381 = pneg %p153
        %p382 = pneg %p150
        %s383 = sand.u32 %s27, 1
        %s384 = scalar_lea.sflag [#allocation12], %s383
        %s385 = sand.u32 %s166, 1
        %s386 = smul.addr %s385, 84
        %s387 = scalar_lea.vmem [#allocation13], %s386
        %p388 = pneg %p179
        %p389 = pneg %p176
        %p390 = pneg %p205
        %p391 = pneg %p202
        %s392 = sand.u32 %s192, 1
        %s393 = scalar_lea.sflag [#allocation4], %s392
        %s394 = sand.u32 %s192, 1
        %s395 = smul.addr %s394, 168
        %s396 = scalar_lea.vmem [#allocation14], %s395
        %s397 = smul.u32 84, %s27
        %s398 = smul.u32 84, %s27
        %s399 = smul.u32 84, %s27
        %v401 = vld [vmem:[#allocation2] sm:$0x3]
        %v402 = vld [vmem:[#allocation5] sm:$0xff]
        %v403 = vld [vmem:[#allocation7] sm:$0x1]
        %v405 = vlaneseq
        %v406 = vshrl.u32 %v405, 7
        %v407 = vsub.s32 0, %v406
        %v408 = vrot.slane %v403, %v407
        %vm410 = vcmask 64512
        %v412 = vsel %vm410, %v401, 0
        %414 = vmatprep.subr.mxu0 0.0
        %415 = vmatpush1.msra.mxu0 %v402
        %416 = vmatprep.subr.mxu0 0.0
        %417 = vmatpush1.msra.mxu0 0.0
        %418 = vmatprep.subr.mxu0 0.0
        %419 = vmatpush1.msra.mxu0 0.0
        %420 = vmatprep.subr.mxu0 0.0
        %421 = vmatpush1.msra.mxu0 0.0
        %422 = vmatprep.subr.mxu0 0.0
        %423 = vmatpush1.msra.mxu0 0.0
        %424 = vmatprep.subr.mxu0 0.0
        %425 = vmatpush1.msra.mxu0 0.0
        %426 = vmatprep.subr.mxu0 0.0
        %427 = vmatpush1.msra.mxu0 0.0
        %428 = vmatprep.subr.mxu0 0.0
        %429 = vmatpush1.msra.mxu0 0.0
        %430 = vmatprep.subr.mxu0 0.0
        %431 = vmatpush1.msra.mxu0 0.0
        %432 = vmatprep.subr.mxu0 0.0
        %433 = vmatpush1.msra.mxu0 0.0
        %434 = vmatprep.subr.mxu0 0.0
        %435 = vmatpush1.msra.mxu0 0.0
        %436 = vmatprep.subr.mxu0 0.0
        %437 = vmatpush1.msra.mxu0 0.0
        %438 = vmatprep.subr.mxu0 0.0
        %439 = vmatpush1.msra.mxu0 0.0
        %440 = vmatprep.subr.mxu0 0.0
        %441 = vmatpush1.msra.mxu0 0.0
        %442 = vmatprep.subr.mxu0 0.0
        %443 = vmatpush1.msra.mxu0 0.0
        %444 = vmatprep.subr.mxu0 0.0
        %445 = vmatpush1.msra.mxu0 0.0
        %446 = vmatprep.subr.mxu0 0.0
        %447 = vmatpush1.msra.mxu0 0.0
        %448 = vmatprep.subr.mxu0 0.0
        %449 = vmatpush1.msra.mxu0 0.0
        %450 = vmatprep.subr.mxu0 0.0
        %451 = vmatpush1.msra.mxu0 0.0
        %452 = vmatprep.subr.mxu0 0.0
        %453 = vmatpush1.msra.mxu0 0.0
        %454 = vmatprep.subr.mxu0 0.0
        %455 = vmatpush1.msra.mxu0 0.0
        %456 = vmatprep.subr.mxu0 0.0
        %457 = vmatpush1.msra.mxu0 0.0
        %458 = vmatprep.subr.mxu0 0.0
        %459 = vmatpush1.msra.mxu0 0.0
        %460 = vmatprep.subr.mxu0 0.0
        %461 = vmatpush1.msra.mxu0 0.0
        %462 = vmatprep.subr.mxu0 0.0
        %463 = vmatpush1.msra.mxu0 0.0
        %464 = vmatprep.subr.mxu0 0.0
        %465 = vmatpush1.msra.mxu0 0.0
        %466 = vmatprep.subr.mxu0 0.0
        %467 = vmatpush1.msra.mxu0 0.0
        %468 = vmatprep.subr.mxu0 0.0
        %469 = vmatpush1.msra.mxu0 0.0
        %470 = vmatprep.subr.mxu0 0.0
        %471 = vmatpush1.msra.mxu0 0.0
        %472 = vmatprep.subr.mxu0 0.0
        %473 = vmatpush1.msra.mxu0 0.0
        %474 = vmatprep.subr.mxu0 0.0
        %475 = vmatpush1.msra.mxu0 0.0
        %476 = vmatprep.subr.mxu0 0.0
        %477 = vmatpush1.msra.mxu0 0.0
        %478 = vmatprep.mubr.f32.mxu0 0.0
        %479 = vmatmul.mubr.f32.gmra.mrb[0].mxu0 %v412
        %v480 = vpop.f32.mrb[0].mxu0
        %v481 = vadd.f32 %v408, %v480
        %v482 = vpop.f32.mrb[0].mxu0
        %483 = vdwg.mxu0
        %v484 = vmax.f32 %v481, 0.0
        %v485 = vld [vmem:[#allocation8] sm:$0xff]
        %v486 = vld [vmem:[#allocation8 + $0x8] sm:$0xff]
        %v487 = vld [vmem:[#allocation8 + $0x10] sm:$0xff]
        %v488 = vld [vmem:[#allocation8 + $0x18] sm:$0xff]
        %v489 = vld [vmem:[#allocation10] sm:$0x1]
        %v491 = vlaneseq
        %v492 = vshrl.u32 %v491, 7
        %v493 = vsub.s32 0, %v492
        %v494 = vrot.slane %v489, %v493
        %vm496 = vcmask 261120
        %v498 = vsel %vm496, %v484, 0
        %500 = vmatprep.subr.mxu0 0.0
        %501 = vmatpush1.msra.mxu0 %v485
        %502 = vmatprep.subr.mxu0 0.0
        %503 = vmatpush1.msra.mxu0 %v486
        %504 = vmatprep.subr.mxu0 0.0
        %505 = vmatpush1.msra.mxu0 %v487
        %506 = vmatprep.subr.mxu0 0.0
        %507 = vmatpush1.msra.mxu0 %v488
        %508 = vmatprep.subr.mxu0 0.0
        %509 = vmatpush1.msra.mxu0 0.0
        %510 = vmatprep.subr.mxu0 0.0
        %511 = vmatpush1.msra.mxu0 0.0
        %512 = vmatprep.subr.mxu0 0.0
        %513 = vmatpush1.msra.mxu0 0.0
        %514 = vmatprep.subr.mxu0 0.0
        %515 = vmatpush1.msra.mxu0 0.0
        %516 = vmatprep.subr.mxu0 0.0
        %517 = vmatpush1.msra.mxu0 0.0
        %518 = vmatprep.subr.mxu0 0.0
        %519 = vmatpush1.msra.mxu0 0.0
        %520 = vmatprep.subr.mxu0 0.0
        %521 = vmatpush1.msra.mxu0 0.0
        %522 = vmatprep.subr.mxu0 0.0
        %523 = vmatpush1.msra.mxu0 0.0
        %524 = vmatprep.subr.mxu0 0.0
        %525 = vmatpush1.msra.mxu0 0.0
        %526 = vmatprep.subr.mxu0 0.0
        %527 = vmatpush1.msra.mxu0 0.0
        %528 = vmatprep.subr.mxu0 0.0
        %529 = vmatpush1.msra.mxu0 0.0
        %530 = vmatprep.subr.mxu0 0.0
        %531 = vmatpush1.msra.mxu0 0.0
        %532 = vmatprep.subr.mxu0 0.0
        %533 = vmatpush1.msra.mxu0 0.0
        %534 = vmatprep.subr.mxu0 0.0
        %535 = vmatpush1.msra.mxu0 0.0
        %536 = vmatprep.subr.mxu0 0.0
        %537 = vmatpush1.msra.mxu0 0.0
        %538 = vmatprep.subr.mxu0 0.0
        %539 = vmatpush1.msra.mxu0 0.0
        %540 = vmatprep.subr.mxu0 0.0
        %541 = vmatpush1.msra.mxu0 0.0
        %542 = vmatprep.subr.mxu0 0.0
        %543 = vmatpush1.msra.mxu0 0.0
        %544 = vmatprep.subr.mxu0 0.0
        %545 = vmatpush1.msra.mxu0 0.0
        %546 = vmatprep.subr.mxu0 0.0
        %547 = vmatpush1.msra.mxu0 0.0
        %548 = vmatprep.subr.mxu0 0.0
        %549 = vmatpush1.msra.mxu0 0.0
        %550 = vmatprep.subr.mxu0 0.0
        %551 = vmatpush1.msra.mxu0 0.0
        %552 = vmatprep.subr.mxu0 0.0
        %553 = vmatpush1.msra.mxu0 0.0
        %554 = vmatprep.subr.mxu0 0.0
        %555 = vmatpush1.msra.mxu0 0.0
        %556 = vmatprep.subr.mxu0 0.0
        %557 = vmatpush1.msra.mxu0 0.0
        %558 = vmatprep.subr.mxu0 0.0
        %559 = vmatpush1.msra.mxu0 0.0
        %560 = vmatprep.subr.mxu0 0.0
        %561 = vmatpush1.msra.mxu0 0.0
        %562 = vmatprep.subr.mxu0 0.0
        %563 = vmatpush1.msra.mxu0 0.0
        %564 = vmatprep.mubr.f32.mxu0 0.0
        %565 = vmatmul.mubr.f32.gmra.mrb[0].mxu0 %v498
        %v566 = vpop.f32.mrb[0].mxu0
        %v567 = vadd.f32 %v494, %v566
        %v568 = vpop.f32.mrb[0].mxu0
        %569 = vdwg.mxu0
        %v570 = vpack.c.bf16 %v567, %v567
        %v571 = vld [vmem:[%s352] sm:$0xff]
        %v572 = vld [vmem:[%s352 + $0x8] sm:$0xff]
        %v573 = vld [vmem:[%s352 + $0x10] sm:$0xff]
        %v574 = vld [vmem:[%s352 + $0x18] sm:$0xff]
        %v575 = vld [vmem:[%s352 + $0x20] sm:$0xff]
        %v576 = vld [vmem:[%s352 + $0x28] sm:$0xff]
        %v577 = vld [vmem:[%s352 + $0x30] sm:$0xff]
        %v578 = vld [vmem:[%s352 + $0x38] sm:$0xff]
        %v579 = vld [vmem:[%s352 + $0x40] sm:$0xff]
        %v580 = vld [vmem:[%s352 + $0x48] sm:$0xff]
        %v581 = vld [vmem:[%s352 + $0x50] sm:$0xff]
        %v582 = vld [vmem:[%s352 + $0x58] sm:$0xff]
        %v583 = vld [vmem:[%s352 + $0x60] sm:$0xff]
        %v584 = vld [vmem:[%s352 + $0x68] sm:$0xff]
        %v585 = vld [vmem:[%s352 + $0x70] sm:$0xff]
        %v586 = vld [vmem:[%s352 + $0x78] sm:$0xff]
        %v587 = vld [vmem:[%s352 + $0x80] sm:$0xff]
        %v588 = vld [vmem:[%s352 + $0x88] sm:$0xff]
        %v589 = vld [vmem:[%s352 + $0x90] sm:$0xff]
        %v590 = vld [vmem:[%s352 + $0x98] sm:$0xff]
        %v591 = vld [vmem:[%s352 + $0xa0] sm:$0xff]
        %v592 = vld [vmem:[%s352 + $0xa8] sm:$0xff]
        %v593 = vld [vmem:[%s352 + $0xb0] sm:$0xff]
        %v594 = vld [vmem:[%s352 + $0xb8] sm:$0xff]
        %v595 = vld [vmem:[%s352 + $0xc0] sm:$0xff]
        %v596 = vld [vmem:[%s352 + $0xc8] sm:$0xff]
        %v597 = vld [vmem:[%s352 + $0xd0] sm:$0xff]
        %v598 = vld [vmem:[%s352 + $0xd8] sm:$0xff]
        %v599 = vld [vmem:[%s352 + $0xe0] sm:$0xff]
        %v600 = vld [vmem:[%s352 + $0xe8] sm:$0xff]
        %v601 = vld [vmem:[%s352 + $0xf0] sm:$0xff]
        %v602 = vld [vmem:[%s352 + $0xf8] sm:$0xff]
        %v603 = vld [vmem:[%s352 + $0x100] sm:$0xff]
        %v604 = vld [vmem:[%s352 + $0x108] sm:$0xff]
        %v605 = vld [vmem:[%s352 + $0x110] sm:$0xff]
        %v606 = vld [vmem:[%s352 + $0x118] sm:$0xff]
        %v607 = vld [vmem:[%s352 + $0x120] sm:$0xff]
        %v608 = vld [vmem:[%s352 + $0x128] sm:$0xff]
        %v609 = vld [vmem:[%s352 + $0x130] sm:$0xff]
        %v610 = vld [vmem:[%s352 + $0x138] sm:$0xff]
        %v611 = vld [vmem:[%s352 + $0x140] sm:$0xff]
        %v612 = vld [vmem:[%s352 + $0x148] sm:$0xff]
        %v613 = vld [vmem:[%s352 + $0x150] sm:$0xff]
        %v614 = vld [vmem:[%s352 + $0x158] sm:$0xff]
        %v615 = vld [vmem:[%s352 + $0x160] sm:$0xff]
        %v616 = vld [vmem:[%s352 + $0x168] sm:$0xff]
        %v617 = vld [vmem:[%s352 + $0x170] sm:$0xff]
        %v618 = vld [vmem:[%s352 + $0x178] sm:$0xff]
        %v619 = vld [vmem:[%s352 + $0x180] sm:$0xff]
        %v620 = vld [vmem:[%s352 + $0x188] sm:$0xff]
        %v621 = vld [vmem:[%s352 + $0x190] sm:$0xff]
        %v622 = vld [vmem:[%s352 + $0x198] sm:$0xff]
        %v623 = vld [vmem:[%s352 + $0x1a0] sm:$0xff]
        %v624 = vld [vmem:[%s352 + $0x1a8] sm:$0xff]
        %v625 = vld [vmem:[%s352 + $0x1b0] sm:$0xff]
        %v626 = vld [vmem:[%s352 + $0x1b8] sm:$0xff]
        %v627 = vld [vmem:[%s352 + $0x1c0] sm:$0xff]
        %v628 = vld [vmem:[%s352 + $0x1c8] sm:$0xff]
        %v629 = vld [vmem:[%s352 + $0x1d0] sm:$0xff]
        %v630 = vld [vmem:[%s352 + $0x1d8] sm:$0xff]
        %v631 = vld [vmem:[%s352 + $0x1e0] sm:$0xff]
        %v632 = vld [vmem:[%s352 + $0x1e8] sm:$0xff]
        %v633 = vld [vmem:[%s352 + $0x1f0] sm:$0xff]
        %v634 = vld [vmem:[%s352 + $0x1f8] sm:$0xff]
        %v635 = vld [vmem:[%s352 + $0x200] sm:$0xff]
        %v636 = vld [vmem:[%s352 + $0x208] sm:$0xff]
        %v637 = vld [vmem:[%s352 + $0x210] sm:$0xff]
        %v638 = vld [vmem:[%s352 + $0x218] sm:$0xff]
        %v639 = vld [vmem:[%s352 + $0x220] sm:$0xff]
        %v640 = vld [vmem:[%s352 + $0x228] sm:$0xff]
        %v641 = vld [vmem:[%s352 + $0x230] sm:$0xff]
        %v642 = vld [vmem:[%s352 + $0x238] sm:$0xff]
        %v643 = vld [vmem:[%s352 + $0x240] sm:$0xff]
        %v644 = vld [vmem:[%s352 + $0x248] sm:$0xff]
        %v645 = vld [vmem:[%s352 + $0x250] sm:$0xff]
        %v646 = vld [vmem:[%s352 + $0x258] sm:$0xff]
        %v647 = vld [vmem:[%s352 + $0x260] sm:$0xff]
        %v648 = vld [vmem:[%s352 + $0x268] sm:$0xff]
        %v649 = vld [vmem:[%s352 + $0x270] sm:$0xff]
        %v650 = vld [vmem:[%s352 + $0x278] sm:$0xff]
        %v651 = vld [vmem:[%s352 + $0x280] sm:$0xff]
        %v652 = vld [vmem:[%s352 + $0x288] sm:$0xff]
        %v653 = vld [vmem:[%s352 + $0x290] sm:$0xff]
        %v654 = vld [vmem:[%s352 + $0x298] sm:$0xff]
        %v655 = vld [vmem:[%s352 + $0x2a0] sm:$0xff]
        %v656 = vld [vmem:[%s352 + $0x2a8] sm:$0xff]
        %v657 = vld [vmem:[%s352 + $0x2b0] sm:$0xff]
        %v658 = vld [vmem:[%s352 + $0x2b8] sm:$0xff]
        %v659 = vld [vmem:[%s352 + $0x2c0] sm:$0xff]
        %v660 = vld [vmem:[%s352 + $0x2c8] sm:$0xff]
        %v661 = vld [vmem:[%s352 + $0x2d0] sm:$0xff]
        %v662 = vld [vmem:[%s352 + $0x2d8] sm:$0xff]
        %v663 = vld [vmem:[%s352 + $0x2e0] sm:$0xff]
        %v664 = vld [vmem:[%s352 + $0x2e8] sm:$0xff]
        %v665 = vld [vmem:[%s352 + $0x2f0] sm:$0xff]
        %v666 = vld [vmem:[%s352 + $0x2f8] sm:$0xff]
        %v667 = vld [vmem:[%s352 + $0x300] sm:$0xff]
        %v668 = vld [vmem:[%s352 + $0x308] sm:$0xff]
        %v669 = vld [vmem:[%s352 + $0x310] sm:$0xff]
        %v670 = vld [vmem:[%s352 + $0x318] sm:$0xff]
        %v671 = vld [vmem:[%s352 + $0x320] sm:$0xff]
        %v672 = vld [vmem:[%s352 + $0x328] sm:$0xff]
        %v673 = vld [vmem:[%s352 + $0x330] sm:$0xff]
        %v674 = vld [vmem:[%s352 + $0x338] sm:$0xff]
        %v675 = vld [vmem:[%s352 + $0x340] sm:$0xff]
        %v676 = vld [vmem:[%s352 + $0x348] sm:$0xff]
        %v677 = vld [vmem:[%s352 + $0x350] sm:$0xff]
        %v678 = vld [vmem:[%s352 + $0x358] sm:$0xff]
        %v679 = vld [vmem:[%s352 + $0x360] sm:$0xff]
        %v680 = vld [vmem:[%s352 + $0x368] sm:$0xff]
        %v681 = vld [vmem:[%s352 + $0x370] sm:$0xff]
        %v682 = vld [vmem:[%s352 + $0x378] sm:$0xff]
        %v683 = vld [vmem:[%s352 + $0x380] sm:$0xff]
        %v684 = vld [vmem:[%s352 + $0x388] sm:$0xff]
        %v685 = vld [vmem:[%s352 + $0x390] sm:$0xff]
        %v686 = vld [vmem:[%s352 + $0x398] sm:$0xff]
        %v687 = vld [vmem:[%s352 + $0x3a0] sm:$0xff]
        %v688 = vld [vmem:[%s352 + $0x3a8] sm:$0xff]
        %v689 = vld [vmem:[%s352 + $0x3b0] sm:$0xff]
        %v690 = vld [vmem:[%s352 + $0x3b8] sm:$0xff]
        %v691 = vld [vmem:[%s352 + $0x3c0] sm:$0xff]
        %v692 = vld [vmem:[%s352 + $0x3c8] sm:$0xff]
        %v693 = vld [vmem:[%s352 + $0x3d0] sm:$0xff]
        %v694 = vld [vmem:[%s352 + $0x3d8] sm:$0xff]
        %v695 = vld [vmem:[%s352 + $0x3e0] sm:$0xff]
        %v696 = vld [vmem:[%s352 + $0x3e8] sm:$0xff]
        %v697 = vld [vmem:[%s352 + $0x3f0] sm:$0xff]
        %v698 = vld [vmem:[%s352 + $0x3f8] sm:$0xff]
        %v699 = vld [vmem:[%s352 + $0x400] sm:$0xff]
        %v700 = vld [vmem:[%s352 + $0x408] sm:$0xff]
        %v701 = vld [vmem:[%s352 + $0x410] sm:$0xff]
        %v702 = vld [vmem:[%s352 + $0x418] sm:$0xff]
        %v703 = vld [vmem:[%s352 + $0x420] sm:$0xff]
        %v704 = vld [vmem:[%s352 + $0x428] sm:$0xff]
        %v705 = vld [vmem:[%s352 + $0x430] sm:$0xff]
        %v706 = vld [vmem:[%s352 + $0x438] sm:$0xff]
        %v707 = vld [vmem:[%s352 + $0x440] sm:$0xff]
        %v708 = vld [vmem:[%s352 + $0x448] sm:$0xff]
        %v709 = vld [vmem:[%s352 + $0x450] sm:$0xff]
        %v710 = vld [vmem:[%s352 + $0x458] sm:$0xff]
        %v711 = vld [vmem:[%s352 + $0x460] sm:$0xff]
        %v712 = vld [vmem:[%s352 + $0x468] sm:$0xff]
        %v713 = vld [vmem:[%s352 + $0x470] sm:$0xff]
        %v714 = vld [vmem:[%s352 + $0x478] sm:$0xff]
        %v715 = vld [vmem:[%s352 + $0x480] sm:$0xff]
        %v716 = vld [vmem:[%s352 + $0x488] sm:$0xff]
        %v717 = vld [vmem:[%s352 + $0x490] sm:$0xff]
        %v718 = vld [vmem:[%s352 + $0x498] sm:$0xff]
        %v719 = vld [vmem:[%s352 + $0x4a0] sm:$0xff]
        %v720 = vld [vmem:[%s352 + $0x4a8] sm:$0xff]
        %v721 = vld [vmem:[%s352 + $0x4b0] sm:$0xff]
        %v722 = vld [vmem:[%s352 + $0x4b8] sm:$0xff]
        %v723 = vld [vmem:[%s352 + $0x4c0] sm:$0xff]
        %v724 = vld [vmem:[%s352 + $0x4c8] sm:$0xff]
        %v725 = vld [vmem:[%s352 + $0x4d0] sm:$0xff]
        %v726 = vld [vmem:[%s352 + $0x4d8] sm:$0xff]
        %v727 = vld [vmem:[%s352 + $0x4e0] sm:$0xff]
        %v728 = vld [vmem:[%s352 + $0x4e8] sm:$0xff]
        %v729 = vld [vmem:[%s352 + $0x4f0] sm:$0xff]
        %v730 = vld [vmem:[%s352 + $0x4f8] sm:$0xff]
        %v731 = vld [vmem:[%s352 + $0x500] sm:$0xff]
        %v732 = vld [vmem:[%s352 + $0x508] sm:$0xff]
        %v733 = vld [vmem:[%s352 + $0x510] sm:$0xff]
        %v734 = vld [vmem:[%s352 + $0x518] sm:$0xff]
        %v735 = vld [vmem:[%s352 + $0x520] sm:$0xff]
        %v736 = vld [vmem:[%s352 + $0x528] sm:$0xff]
        %v737 = vld [vmem:[%s352 + $0x530] sm:$0xff]
        %v738 = vld [vmem:[%s352 + $0x538] sm:$0xff]
        %v739 = vld [vmem:[%s361] sm:$0xff]
        %v740 = vld [vmem:[%s361 + $0x8] sm:$0xff]
        %v741 = vld [vmem:[%s361 + $0x10] sm:$0xff]
        %v742 = vld [vmem:[%s361 + $0x18] sm:$0xff]
        %v743 = vld [vmem:[%s361 + $0x20] sm:$0xff]
        %v744 = vld [vmem:[%s361 + $0x28] sm:$0xff]
        %v745 = vld [vmem:[%s361 + $0x30] sm:$0xff]
        %v746 = vld [vmem:[%s361 + $0x38] sm:$0xff]
        %v747 = vld [vmem:[%s361 + $0x40] sm:$0xff]
        %v748 = vld [vmem:[%s361 + $0x48] sm:$0xff]
        %v749 = vld [vmem:[%s361 + $0x50] sm:$0xf]
        %v750 = vunpack.c.l.bf16 %v739
        %v751 = vunpack.c.h.bf16 %v739
        %v752 = vunpack.c.l.bf16 %v740
        %v753 = vunpack.c.h.bf16 %v740
        %v754 = vunpack.c.l.bf16 %v741
        %v755 = vunpack.c.h.bf16 %v741
        %v756 = vunpack.c.l.bf16 %v742
        %v757 = vunpack.c.h.bf16 %v742
        %v758 = vunpack.c.l.bf16 %v743
        %v759 = vunpack.c.h.bf16 %v743
        %v760 = vunpack.c.l.bf16 %v744
        %v761 = vunpack.c.h.bf16 %v744
        %v762 = vunpack.c.l.bf16 %v745
        %v763 = vunpack.c.h.bf16 %v745
        %v764 = vunpack.c.l.bf16 %v746
        %v765 = vunpack.c.h.bf16 %v746
        %v766 = vunpack.c.l.bf16 %v747
        %v767 = vunpack.c.h.bf16 %v747
        %v768 = vunpack.c.l.bf16 %v748
        %v769 = vunpack.c.h.bf16 %v748
        %v770 = vunpack.c.l.bf16 %v749
        %v792 = vlaneseq
        %v793 = vshrl.u32 %v792, 7
        %v794 = vsub.s32 0, %v793
        %v795 = vrot.slane %v750, %v794
        %v796 = vlaneseq
        %v797 = vshrl.u32 %v796, 7
        %v798 = vsub.s32 2, %v797
        %v799 = vrot.slane %v750, %v798
        %v800 = vlaneseq
        %v801 = vshrl.u32 %v800, 7
        %v802 = vsub.s32 4, %v801
        %v803 = vrot.slane %v750, %v802
        %v804 = vlaneseq
        %v805 = vshrl.u32 %v804, 7
        %v806 = vsub.s32 6, %v805
        %v807 = vrot.slane %v750, %v806
        %v808 = vlaneseq
        %v809 = vshrl.u32 %v808, 7
        %v810 = vsub.s32 0, %v809
        %v811 = vrot.slane %v751, %v810
        %v812 = vlaneseq
        %v813 = vshrl.u32 %v812, 7
        %v814 = vsub.s32 2, %v813
        %v815 = vrot.slane %v751, %v814
        %v816 = vlaneseq
        %v817 = vshrl.u32 %v816, 7
        %v818 = vsub.s32 4, %v817
        %v819 = vrot.slane %v751, %v818
        %v820 = vlaneseq
        %v821 = vshrl.u32 %v820, 7
        %v822 = vsub.s32 6, %v821
        %v823 = vrot.slane %v751, %v822
        %v824 = vlaneseq
        %v825 = vshrl.u32 %v824, 7
        %v826 = vsub.s32 0, %v825
        %v827 = vrot.slane %v752, %v826
        %v828 = vlaneseq
        %v829 = vshrl.u32 %v828, 7
        %v830 = vsub.s32 2, %v829
        %v831 = vrot.slane %v752, %v830
        %v832 = vlaneseq
        %v833 = vshrl.u32 %v832, 7
        %v834 = vsub.s32 4, %v833
        %v835 = vrot.slane %v752, %v834
        %v836 = vlaneseq
        %v837 = vshrl.u32 %v836, 7
        %v838 = vsub.s32 6, %v837
        %v839 = vrot.slane %v752, %v838
        %v840 = vlaneseq
        %v841 = vshrl.u32 %v840, 7
        %v842 = vsub.s32 0, %v841
        %v843 = vrot.slane %v753, %v842
        %v844 = vlaneseq
        %v845 = vshrl.u32 %v844, 7
        %v846 = vsub.s32 2, %v845
        %v847 = vrot.slane %v753, %v846
        %v848 = vlaneseq
        %v849 = vshrl.u32 %v848, 7
        %v850 = vsub.s32 4, %v849
        %v851 = vrot.slane %v753, %v850
        %v852 = vlaneseq
        %v853 = vshrl.u32 %v852, 7
        %v854 = vsub.s32 6, %v853
        %v855 = vrot.slane %v753, %v854
        %v856 = vlaneseq
        %v857 = vshrl.u32 %v856, 7
        %v858 = vsub.s32 0, %v857
        %v859 = vrot.slane %v754, %v858
        %v860 = vlaneseq
        %v861 = vshrl.u32 %v860, 7
        %v862 = vsub.s32 2, %v861
        %v863 = vrot.slane %v754, %v862
        %v864 = vlaneseq
        %v865 = vshrl.u32 %v864, 7
        %v866 = vsub.s32 4, %v865
        %v867 = vrot.slane %v754, %v866
        %v868 = vlaneseq
        %v869 = vshrl.u32 %v868, 7
        %v870 = vsub.s32 6, %v869
        %v871 = vrot.slane %v754, %v870
        %v872 = vlaneseq
        %v873 = vshrl.u32 %v872, 7
        %v874 = vsub.s32 0, %v873
        %v875 = vrot.slane %v755, %v874
        %v876 = vlaneseq
        %v877 = vshrl.u32 %v876, 7
        %v878 = vsub.s32 2, %v877
        %v879 = vrot.slane %v755, %v878
        %v880 = vlaneseq
        %v881 = vshrl.u32 %v880, 7
        %v882 = vsub.s32 4, %v881
        %v883 = vrot.slane %v755, %v882
        %v884 = vlaneseq
        %v885 = vshrl.u32 %v884, 7
        %v886 = vsub.s32 6, %v885
        %v887 = vrot.slane %v755, %v886
        %v888 = vlaneseq
        %v889 = vshrl.u32 %v888, 7
        %v890 = vsub.s32 0, %v889
        %v891 = vrot.slane %v756, %v890
        %v892 = vlaneseq
        %v893 = vshrl.u32 %v892, 7
        %v894 = vsub.s32 2, %v893
        %v895 = vrot.slane %v756, %v894
        %v896 = vlaneseq
        %v897 = vshrl.u32 %v896, 7
        %v898 = vsub.s32 4, %v897
        %v899 = vrot.slane %v756, %v898
        %v900 = vlaneseq
        %v901 = vshrl.u32 %v900, 7
        %v902 = vsub.s32 6, %v901
        %v903 = vrot.slane %v756, %v902
        %v904 = vlaneseq
        %v905 = vshrl.u32 %v904, 7
        %v906 = vsub.s32 0, %v905
        %v907 = vrot.slane %v757, %v906
        %v908 = vlaneseq
        %v909 = vshrl.u32 %v908, 7
        %v910 = vsub.s32 2, %v909
        %v911 = vrot.slane %v757, %v910
        %v912 = vlaneseq
        %v913 = vshrl.u32 %v912, 7
        %v914 = vsub.s32 4, %v913
        %v915 = vrot.slane %v757, %v914
        %v916 = vlaneseq
        %v917 = vshrl.u32 %v916, 7
        %v918 = vsub.s32 6, %v917
        %v919 = vrot.slane %v757, %v918
        %v920 = vlaneseq
        %v921 = vshrl.u32 %v920, 7
        %v922 = vsub.s32 0, %v921
        %v923 = vrot.slane %v758, %v922
        %v924 = vlaneseq
        %v925 = vshrl.u32 %v924, 7
        %v926 = vsub.s32 2, %v925
        %v927 = vrot.slane %v758, %v926
        %v928 = vlaneseq
        %v929 = vshrl.u32 %v928, 7
        %v930 = vsub.s32 4, %v929
        %v931 = vrot.slane %v758, %v930
        %v932 = vlaneseq
        %v933 = vshrl.u32 %v932, 7
        %v934 = vsub.s32 6, %v933
        %v935 = vrot.slane %v758, %v934
        %v936 = vlaneseq
        %v937 = vshrl.u32 %v936, 7
        %v938 = vsub.s32 0, %v937
        %v939 = vrot.slane %v759, %v938
        %v940 = vlaneseq
        %v941 = vshrl.u32 %v940, 7
        %v942 = vsub.s32 2, %v941
        %v943 = vrot.slane %v759, %v942
        %v944 = vlaneseq
        %v945 = vshrl.u32 %v944, 7
        %v946 = vsub.s32 4, %v945
        %v947 = vrot.slane %v759, %v946
        %v948 = vlaneseq
        %v949 = vshrl.u32 %v948, 7
        %v950 = vsub.s32 6, %v949
        %v951 = vrot.slane %v759, %v950
        %v952 = vlaneseq
        %v953 = vshrl.u32 %v952, 7
        %v954 = vsub.s32 0, %v953
        %v955 = vrot.slane %v760, %v954
        %v956 = vlaneseq
        %v957 = vshrl.u32 %v956, 7
        %v958 = vsub.s32 2, %v957
        %v959 = vrot.slane %v760, %v958
        %v960 = vlaneseq
        %v961 = vshrl.u32 %v960, 7
        %v962 = vsub.s32 4, %v961
        %v963 = vrot.slane %v760, %v962
        %v964 = vlaneseq
        %v965 = vshrl.u32 %v964, 7
        %v966 = vsub.s32 6, %v965
        %v967 = vrot.slane %v760, %v966
        %v968 = vlaneseq
        %v969 = vshrl.u32 %v968, 7
        %v970 = vsub.s32 0, %v969
        %v971 = vrot.slane %v761, %v970
        %v972 = vlaneseq
        %v973 = vshrl.u32 %v972, 7
        %v974 = vsub.s32 2, %v973
        %v975 = vrot.slane %v761, %v974
        %v976 = vlaneseq
        %v977 = vshrl.u32 %v976, 7
        %v978 = vsub.s32 4, %v977
        %v979 = vrot.slane %v761, %v978
        %v980 = vlaneseq
        %v981 = vshrl.u32 %v980, 7
        %v982 = vsub.s32 6, %v981
        %v983 = vrot.slane %v761, %v982
        %v984 = vlaneseq
        %v985 = vshrl.u32 %v984, 7
        %v986 = vsub.s32 0, %v985
        %v987 = vrot.slane %v762, %v986
        %v988 = vlaneseq
        %v989 = vshrl.u32 %v988, 7
        %v990 = vsub.s32 2, %v989
        %v991 = vrot.slane %v762, %v990
        %v992 = vlaneseq
        %v993 = vshrl.u32 %v992, 7
        %v994 = vsub.s32 4, %v993
        %v995 = vrot.slane %v762, %v994
        %v996 = vlaneseq
        %v997 = vshrl.u32 %v996, 7
        %v998 = vsub.s32 6, %v997
        %v999 = vrot.slane %v762, %v998
        %v1000 = vlaneseq
        %v1001 = vshrl.u32 %v1000, 7
        %v1002 = vsub.s32 0, %v1001
        %v1003 = vrot.slane %v763, %v1002
        %v1004 = vlaneseq
        %v1005 = vshrl.u32 %v1004, 7
        %v1006 = vsub.s32 2, %v1005
        %v1007 = vrot.slane %v763, %v1006
        %v1008 = vlaneseq
        %v1009 = vshrl.u32 %v1008, 7
        %v1010 = vsub.s32 4, %v1009
        %v1011 = vrot.slane %v763, %v1010
        %v1012 = vlaneseq
        %v1013 = vshrl.u32 %v1012, 7
        %v1014 = vsub.s32 6, %v1013
        %v1015 = vrot.slane %v763, %v1014
        %v1016 = vlaneseq
        %v1017 = vshrl.u32 %v1016, 7
        %v1018 = vsub.s32 0, %v1017
        %v1019 = vrot.slane %v764, %v1018
        %v1020 = vlaneseq
        %v1021 = vshrl.u32 %v1020, 7
        %v1022 = vsub.s32 2, %v1021
        %v1023 = vrot.slane %v764, %v1022
        %v1024 = vlaneseq
        %v1025 = vshrl.u32 %v1024, 7
        %v1026 = vsub.s32 4, %v1025
        %v1027 = vrot.slane %v764, %v1026
        %v1028 = vlaneseq
        %v1029 = vshrl.u32 %v1028, 7
        %v1030 = vsub.s32 6, %v1029
        %v1031 = vrot.slane %v764, %v1030
        %v1032 = vlaneseq
        %v1033 = vshrl.u32 %v1032, 7
        %v1034 = vsub.s32 0, %v1033
        %v1035 = vrot.slane %v765, %v1034
        %v1036 = vlaneseq
        %v1037 = vshrl.u32 %v1036, 7
        %v1038 = vsub.s32 2, %v1037
        %v1039 = vrot.slane %v765, %v1038
        %v1040 = vlaneseq
        %v1041 = vshrl.u32 %v1040, 7
        %v1042 = vsub.s32 4, %v1041
        %v1043 = vrot.slane %v765, %v1042
        %v1044 = vlaneseq
        %v1045 = vshrl.u32 %v1044, 7
        %v1046 = vsub.s32 6, %v1045
        %v1047 = vrot.slane %v765, %v1046
        %v1048 = vlaneseq
        %v1049 = vshrl.u32 %v1048, 7
        %v1050 = vsub.s32 0, %v1049
        %v1051 = vrot.slane %v766, %v1050
        %v1052 = vlaneseq
        %v1053 = vshrl.u32 %v1052, 7
        %v1054 = vsub.s32 2, %v1053
        %v1055 = vrot.slane %v766, %v1054
        %v1056 = vlaneseq
        %v1057 = vshrl.u32 %v1056, 7
        %v1058 = vsub.s32 4, %v1057
        %v1059 = vrot.slane %v766, %v1058
        %v1060 = vlaneseq
        %v1061 = vshrl.u32 %v1060, 7
        %v1062 = vsub.s32 6, %v1061
        %v1063 = vrot.slane %v766, %v1062
        %v1064 = vlaneseq
        %v1065 = vshrl.u32 %v1064, 7
        %v1066 = vsub.s32 0, %v1065
        %v1067 = vrot.slane %v767, %v1066
        %v1068 = vlaneseq
        %v1069 = vshrl.u32 %v1068, 7
        %v1070 = vsub.s32 2, %v1069
        %v1071 = vrot.slane %v767, %v1070
        %v1072 = vlaneseq
        %v1073 = vshrl.u32 %v1072, 7
        %v1074 = vsub.s32 4, %v1073
        %v1075 = vrot.slane %v767, %v1074
        %v1076 = vlaneseq
        %v1077 = vshrl.u32 %v1076, 7
        %v1078 = vsub.s32 6, %v1077
        %v1079 = vrot.slane %v767, %v1078
        %v1080 = vlaneseq
        %v1081 = vshrl.u32 %v1080, 7
        %v1082 = vsub.s32 0, %v1081
        %v1083 = vrot.slane %v768, %v1082
        %v1084 = vlaneseq
        %v1085 = vshrl.u32 %v1084, 7
        %v1086 = vsub.s32 2, %v1085
        %v1087 = vrot.slane %v768, %v1086
        %v1088 = vlaneseq
        %v1089 = vshrl.u32 %v1088, 7
        %v1090 = vsub.s32 4, %v1089
        %v1091 = vrot.slane %v768, %v1090
        %v1092 = vlaneseq
        %v1093 = vshrl.u32 %v1092, 7
        %v1094 = vsub.s32 6, %v1093
        %v1095 = vrot.slane %v768, %v1094
        %v1096 = vlaneseq
        %v1097 = vshrl.u32 %v1096, 7
        %v1098 = vsub.s32 0, %v1097
        %v1099 = vrot.slane %v769, %v1098
        %v1100 = vlaneseq
        %v1101 = vshrl.u32 %v1100, 7
        %v1102 = vsub.s32 2, %v1101
        %v1103 = vrot.slane %v769, %v1102
        %v1104 = vlaneseq
        %v1105 = vshrl.u32 %v1104, 7
        %v1106 = vsub.s32 4, %v1105
        %v1107 = vrot.slane %v769, %v1106
        %v1108 = vlaneseq
        %v1109 = vshrl.u32 %v1108, 7
        %v1110 = vsub.s32 6, %v1109
        %v1111 = vrot.slane %v769, %v1110
        %v1112 = vlaneseq
        %v1113 = vshrl.u32 %v1112, 7
        %v1114 = vsub.s32 0, %v1113
        %v1115 = vrot.slane %v770, %v1114
        %v1116 = vlaneseq
        %v1117 = vshrl.u32 %v1116, 7
        %v1118 = vsub.s32 2, %v1117
        %v1119 = vrot.slane %v770, %v1118
        %v1120 = vlaneseq
        %v1121 = vshrl.u32 %v1120, 7
        %v1122 = vsub.s32 4, %v1121
        %v1123 = vrot.slane %v770, %v1122
        %v1124 = vlaneseq
        %v1125 = vshrl.u32 %v1124, 7
        %v1126 = vsub.s32 6, %v1125
        %v1127 = vrot.slane %v770, %v1126
        %v1212 = vlaneseq
        %v1213 = vshrl.u32 %v1212, 7
        %v1214 = vsub.s32 0, %v1213
        %v1215 = vrot.slane %v795, %v1214
        %v1216 = vlaneseq
        %v1217 = vshrl.u32 %v1216, 7
        %v1218 = vsub.s32 0, %v1217
        %v1219 = vrot.slane %v799, %v1218
        %v1220 = vlaneseq
        %v1221 = vshrl.u32 %v1220, 7
        %v1222 = vsub.s32 0, %v1221
        %v1223 = vrot.slane %v803, %v1222
        %v1224 = vlaneseq
        %v1225 = vshrl.u32 %v1224, 7
        %v1226 = vsub.s32 0, %v1225
        %v1227 = vrot.slane %v807, %v1226
        %v1228 = vlaneseq
        %v1229 = vshrl.u32 %v1228, 7
        %v1230 = vsub.s32 0, %v1229
        %v1231 = vrot.slane %v811, %v1230
        %v1232 = vlaneseq
        %v1233 = vshrl.u32 %v1232, 7
        %v1234 = vsub.s32 0, %v1233
        %v1235 = vrot.slane %v815, %v1234
        %v1236 = vlaneseq
        %v1237 = vshrl.u32 %v1236, 7
        %v1238 = vsub.s32 0, %v1237
        %v1239 = vrot.slane %v819, %v1238
        %v1240 = vlaneseq
        %v1241 = vshrl.u32 %v1240, 7
        %v1242 = vsub.s32 0, %v1241
        %v1243 = vrot.slane %v823, %v1242
        %v1244 = vlaneseq
        %v1245 = vshrl.u32 %v1244, 7
        %v1246 = vsub.s32 0, %v1245
        %v1247 = vrot.slane %v827, %v1246
        %v1248 = vlaneseq
        %v1249 = vshrl.u32 %v1248, 7
        %v1250 = vsub.s32 0, %v1249
        %v1251 = vrot.slane %v831, %v1250
        %v1252 = vlaneseq
        %v1253 = vshrl.u32 %v1252, 7
        %v1254 = vsub.s32 0, %v1253
        %v1255 = vrot.slane %v835, %v1254
        %v1256 = vlaneseq
        %v1257 = vshrl.u32 %v1256, 7
        %v1258 = vsub.s32 0, %v1257
        %v1259 = vrot.slane %v839, %v1258
        %v1260 = vlaneseq
        %v1261 = vshrl.u32 %v1260, 7
        %v1262 = vsub.s32 0, %v1261
        %v1263 = vrot.slane %v843, %v1262
        %v1264 = vlaneseq
        %v1265 = vshrl.u32 %v1264, 7
        %v1266 = vsub.s32 0, %v1265
        %v1267 = vrot.slane %v847, %v1266
        %v1268 = vlaneseq
        %v1269 = vshrl.u32 %v1268, 7
        %v1270 = vsub.s32 0, %v1269
        %v1271 = vrot.slane %v851, %v1270
        %v1272 = vlaneseq
        %v1273 = vshrl.u32 %v1272, 7
        %v1274 = vsub.s32 0, %v1273
        %v1275 = vrot.slane %v855, %v1274
        %v1276 = vlaneseq
        %v1277 = vshrl.u32 %v1276, 7
        %v1278 = vsub.s32 0, %v1277
        %v1279 = vrot.slane %v859, %v1278
        %v1280 = vlaneseq
        %v1281 = vshrl.u32 %v1280, 7
        %v1282 = vsub.s32 0, %v1281
        %v1283 = vrot.slane %v863, %v1282
        %v1284 = vlaneseq
        %v1285 = vshrl.u32 %v1284, 7
        %v1286 = vsub.s32 0, %v1285
        %v1287 = vrot.slane %v867, %v1286
        %v1288 = vlaneseq
        %v1289 = vshrl.u32 %v1288, 7
        %v1290 = vsub.s32 0, %v1289
        %v1291 = vrot.slane %v871, %v1290
        %v1292 = vlaneseq
        %v1293 = vshrl.u32 %v1292, 7
        %v1294 = vsub.s32 0, %v1293
        %v1295 = vrot.slane %v875, %v1294
        %v1296 = vlaneseq
        %v1297 = vshrl.u32 %v1296, 7
        %v1298 = vsub.s32 0, %v1297
        %v1299 = vrot.slane %v879, %v1298
        %v1300 = vlaneseq
        %v1301 = vshrl.u32 %v1300, 7
        %v1302 = vsub.s32 0, %v1301
        %v1303 = vrot.slane %v883, %v1302
        %v1304 = vlaneseq
        %v1305 = vshrl.u32 %v1304, 7
        %v1306 = vsub.s32 0, %v1305
        %v1307 = vrot.slane %v887, %v1306
        %v1308 = vlaneseq
        %v1309 = vshrl.u32 %v1308, 7
        %v1310 = vsub.s32 0, %v1309
        %v1311 = vrot.slane %v891, %v1310
        %v1312 = vlaneseq
        %v1313 = vshrl.u32 %v1312, 7
        %v1314 = vsub.s32 0, %v1313
        %v1315 = vrot.slane %v895, %v1314
        %v1316 = vlaneseq
        %v1317 = vshrl.u32 %v1316, 7
        %v1318 = vsub.s32 0, %v1317
        %v1319 = vrot.slane %v899, %v1318
        %v1320 = vlaneseq
        %v1321 = vshrl.u32 %v1320, 7
        %v1322 = vsub.s32 0, %v1321
        %v1323 = vrot.slane %v903, %v1322
        %v1324 = vlaneseq
        %v1325 = vshrl.u32 %v1324, 7
        %v1326 = vsub.s32 0, %v1325
        %v1327 = vrot.slane %v907, %v1326
        %v1328 = vlaneseq
        %v1329 = vshrl.u32 %v1328, 7
        %v1330 = vsub.s32 0, %v1329
        %v1331 = vrot.slane %v911, %v1330
        %v1332 = vlaneseq
        %v1333 = vshrl.u32 %v1332, 7
        %v1334 = vsub.s32 0, %v1333
        %v1335 = vrot.slane %v915, %v1334
        %v1336 = vlaneseq
        %v1337 = vshrl.u32 %v1336, 7
        %v1338 = vsub.s32 0, %v1337
        %v1339 = vrot.slane %v919, %v1338
        %v1340 = vlaneseq
        %v1341 = vshrl.u32 %v1340, 7
        %v1342 = vsub.s32 0, %v1341
        %v1343 = vrot.slane %v923, %v1342
        %v1344 = vlaneseq
        %v1345 = vshrl.u32 %v1344, 7
        %v1346 = vsub.s32 0, %v1345
        %v1347 = vrot.slane %v927, %v1346
        %v1348 = vlaneseq
        %v1349 = vshrl.u32 %v1348, 7
        %v1350 = vsub.s32 0, %v1349
        %v1351 = vrot.slane %v931, %v1350
        %v1352 = vlaneseq
        %v1353 = vshrl.u32 %v1352, 7
        %v1354 = vsub.s32 0, %v1353
        %v1355 = vrot.slane %v935, %v1354
        %v1356 = vlaneseq
        %v1357 = vshrl.u32 %v1356, 7
        %v1358 = vsub.s32 0, %v1357
        %v1359 = vrot.slane %v939, %v1358
        %v1360 = vlaneseq
        %v1361 = vshrl.u32 %v1360, 7
        %v1362 = vsub.s32 0, %v1361
        %v1363 = vrot.slane %v943, %v1362
        %v1364 = vlaneseq
        %v1365 = vshrl.u32 %v1364, 7
        %v1366 = vsub.s32 0, %v1365
        %v1367 = vrot.slane %v947, %v1366
        %v1368 = vlaneseq
        %v1369 = vshrl.u32 %v1368, 7
        %v1370 = vsub.s32 0, %v1369
        %v1371 = vrot.slane %v951, %v1370
        %v1372 = vlaneseq
        %v1373 = vshrl.u32 %v1372, 7
        %v1374 = vsub.s32 0, %v1373
        %v1375 = vrot.slane %v955, %v1374
        %v1376 = vlaneseq
        %v1377 = vshrl.u32 %v1376, 7
        %v1378 = vsub.s32 0, %v1377
        %v1379 = vrot.slane %v959, %v1378
        %v1380 = vlaneseq
        %v1381 = vshrl.u32 %v1380, 7
        %v1382 = vsub.s32 0, %v1381
        %v1383 = vrot.slane %v963, %v1382
        %v1384 = vlaneseq
        %v1385 = vshrl.u32 %v1384, 7
        %v1386 = vsub.s32 0, %v1385
        %v1387 = vrot.slane %v967, %v1386
        %v1388 = vlaneseq
        %v1389 = vshrl.u32 %v1388, 7
        %v1390 = vsub.s32 0, %v1389
        %v1391 = vrot.slane %v971, %v1390
        %v1392 = vlaneseq
        %v1393 = vshrl.u32 %v1392, 7
        %v1394 = vsub.s32 0, %v1393
        %v1395 = vrot.slane %v975, %v1394
        %v1396 = vlaneseq
        %v1397 = vshrl.u32 %v1396, 7
        %v1398 = vsub.s32 0, %v1397
        %v1399 = vrot.slane %v979, %v1398
        %v1400 = vlaneseq
        %v1401 = vshrl.u32 %v1400, 7
        %v1402 = vsub.s32 0, %v1401
        %v1403 = vrot.slane %v983, %v1402
        %v1404 = vlaneseq
        %v1405 = vshrl.u32 %v1404, 7
        %v1406 = vsub.s32 0, %v1405
        %v1407 = vrot.slane %v987, %v1406
        %v1408 = vlaneseq
        %v1409 = vshrl.u32 %v1408, 7
        %v1410 = vsub.s32 0, %v1409
        %v1411 = vrot.slane %v991, %v1410
        %v1412 = vlaneseq
        %v1413 = vshrl.u32 %v1412, 7
        %v1414 = vsub.s32 0, %v1413
        %v1415 = vrot.slane %v995, %v1414
        %v1416 = vlaneseq
        %v1417 = vshrl.u32 %v1416, 7
        %v1418 = vsub.s32 0, %v1417
        %v1419 = vrot.slane %v999, %v1418
        %v1420 = vlaneseq
        %v1421 = vshrl.u32 %v1420, 7
        %v1422 = vsub.s32 0, %v1421
        %v1423 = vrot.slane %v1003, %v1422
        %v1424 = vlaneseq
        %v1425 = vshrl.u32 %v1424, 7
        %v1426 = vsub.s32 0, %v1425
        %v1427 = vrot.slane %v1007, %v1426
        %v1428 = vlaneseq
        %v1429 = vshrl.u32 %v1428, 7
        %v1430 = vsub.s32 0, %v1429
        %v1431 = vrot.slane %v1011, %v1430
        %v1432 = vlaneseq
        %v1433 = vshrl.u32 %v1432, 7
        %v1434 = vsub.s32 0, %v1433
        %v1435 = vrot.slane %v1015, %v1434
        %v1436 = vlaneseq
        %v1437 = vshrl.u32 %v1436, 7
        %v1438 = vsub.s32 0, %v1437
        %v1439 = vrot.slane %v1019, %v1438
        %v1440 = vlaneseq
        %v1441 = vshrl.u32 %v1440, 7
        %v1442 = vsub.s32 0, %v1441
        %v1443 = vrot.slane %v1023, %v1442
        %v1444 = vlaneseq
        %v1445 = vshrl.u32 %v1444, 7
        %v1446 = vsub.s32 0, %v1445
        %v1447 = vrot.slane %v1027, %v1446
        %v1448 = vlaneseq
        %v1449 = vshrl.u32 %v1448, 7
        %v1450 = vsub.s32 0, %v1449
        %v1451 = vrot.slane %v1031, %v1450
        %v1452 = vlaneseq
        %v1453 = vshrl.u32 %v1452, 7
        %v1454 = vsub.s32 0, %v1453
        %v1455 = vrot.slane %v1035, %v1454
        %v1456 = vlaneseq
        %v1457 = vshrl.u32 %v1456, 7
        %v1458 = vsub.s32 0, %v1457
        %v1459 = vrot.slane %v1039, %v1458
        %v1460 = vlaneseq
        %v1461 = vshrl.u32 %v1460, 7
        %v1462 = vsub.s32 0, %v1461
        %v1463 = vrot.slane %v1043, %v1462
        %v1464 = vlaneseq
        %v1465 = vshrl.u32 %v1464, 7
        %v1466 = vsub.s32 0, %v1465
        %v1467 = vrot.slane %v1047, %v1466
        %v1468 = vlaneseq
        %v1469 = vshrl.u32 %v1468, 7
        %v1470 = vsub.s32 0, %v1469
        %v1471 = vrot.slane %v1051, %v1470
        %v1472 = vlaneseq
        %v1473 = vshrl.u32 %v1472, 7
        %v1474 = vsub.s32 0, %v1473
        %v1475 = vrot.slane %v1055, %v1474
        %v1476 = vlaneseq
        %v1477 = vshrl.u32 %v1476, 7
        %v1478 = vsub.s32 0, %v1477
        %v1479 = vrot.slane %v1059, %v1478
        %v1480 = vlaneseq
        %v1481 = vshrl.u32 %v1480, 7
        %v1482 = vsub.s32 0, %v1481
        %v1483 = vrot.slane %v1063, %v1482
        %v1484 = vlaneseq
        %v1485 = vshrl.u32 %v1484, 7
        %v1486 = vsub.s32 0, %v1485
        %v1487 = vrot.slane %v1067, %v1486
        %v1488 = vlaneseq
        %v1489 = vshrl.u32 %v1488, 7
        %v1490 = vsub.s32 0, %v1489
        %v1491 = vrot.slane %v1071, %v1490
        %v1492 = vlaneseq
        %v1493 = vshrl.u32 %v1492, 7
        %v1494 = vsub.s32 0, %v1493
        %v1495 = vrot.slane %v1075, %v1494
        %v1496 = vlaneseq
        %v1497 = vshrl.u32 %v1496, 7
        %v1498 = vsub.s32 0, %v1497
        %v1499 = vrot.slane %v1079, %v1498
        %v1500 = vlaneseq
        %v1501 = vshrl.u32 %v1500, 7
        %v1502 = vsub.s32 0, %v1501
        %v1503 = vrot.slane %v1083, %v1502
        %v1504 = vlaneseq
        %v1505 = vshrl.u32 %v1504, 7
        %v1506 = vsub.s32 0, %v1505
        %v1507 = vrot.slane %v1087, %v1506
        %v1508 = vlaneseq
        %v1509 = vshrl.u32 %v1508, 7
        %v1510 = vsub.s32 0, %v1509
        %v1511 = vrot.slane %v1091, %v1510
        %v1512 = vlaneseq
        %v1513 = vshrl.u32 %v1512, 7
        %v1514 = vsub.s32 0, %v1513
        %v1515 = vrot.slane %v1095, %v1514
        %v1516 = vlaneseq
        %v1517 = vshrl.u32 %v1516, 7
        %v1518 = vsub.s32 0, %v1517
        %v1519 = vrot.slane %v1099, %v1518
        %v1520 = vlaneseq
        %v1521 = vshrl.u32 %v1520, 7
        %v1522 = vsub.s32 0, %v1521
        %v1523 = vrot.slane %v1103, %v1522
        %v1524 = vlaneseq
        %v1525 = vshrl.u32 %v1524, 7
        %v1526 = vsub.s32 0, %v1525
        %v1527 = vrot.slane %v1107, %v1526
        %v1528 = vlaneseq
        %v1529 = vshrl.u32 %v1528, 7
        %v1530 = vsub.s32 0, %v1529
        %v1531 = vrot.slane %v1111, %v1530
        %v1532 = vlaneseq
        %v1533 = vshrl.u32 %v1532, 7
        %v1534 = vsub.s32 0, %v1533
        %v1535 = vrot.slane %v1115, %v1534
        %v1536 = vlaneseq
        %v1537 = vshrl.u32 %v1536, 7
        %v1538 = vsub.s32 0, %v1537
        %v1539 = vrot.slane %v1119, %v1538
        %v1540 = vlaneseq
        %v1541 = vshrl.u32 %v1540, 7
        %v1542 = vsub.s32 0, %v1541
        %v1543 = vrot.slane %v1123, %v1542
        %v1544 = vlaneseq
        %v1545 = vshrl.u32 %v1544, 7
        %v1546 = vsub.s32 0, %v1545
        %v1547 = vrot.slane %v1127, %v1546
        %v1716 = vunpack.c.l.b16 %v571
        %v1717 = vunpack.c.h.b16 %v571
        %v1718 = vunpack.c.l.b16 %v572
        %v1719 = vunpack.c.h.b16 %v572
        %v1720 = vunpack.c.l.b16 %v573
        %v1721 = vunpack.c.h.b16 %v573
        %v1722 = vunpack.c.l.b16 %v574
        %v1723 = vunpack.c.h.b16 %v574
        %v1724 = vunpack.c.l.b16 %v575
        %v1725 = vunpack.c.h.b16 %v575
        %v1726 = vunpack.c.l.b16 %v576
        %v1727 = vunpack.c.h.b16 %v576
        %v1728 = vunpack.c.l.b16 %v577
        %v1729 = vunpack.c.h.b16 %v577
        %v1730 = vunpack.c.l.b16 %v578
        %v1731 = vunpack.c.h.b16 %v578
        %v1732 = vunpack.c.l.b16 %v579
        %v1733 = vunpack.c.h.b16 %v579
        %v1734 = vunpack.c.l.b16 %v580
        %v1735 = vunpack.c.h.b16 %v580
        %v1736 = vunpack.c.l.b16 %v581
        %v1737 = vunpack.c.h.b16 %v581
        %v1738 = vunpack.c.l.b16 %v582
        %v1739 = vunpack.c.h.b16 %v582
        %v1740 = vunpack.c.l.b16 %v583
        %v1741 = vunpack.c.h.b16 %v583
        %v1742 = vunpack.c.l.b16 %v584
        %v1743 = vunpack.c.h.b16 %v584
        %v1744 = vunpack.c.l.b16 %v585
        %v1745 = vunpack.c.h.b16 %v585
        %v1746 = vunpack.c.l.b16 %v586
        %v1747 = vunpack.c.h.b16 %v586
        %v1748 = vunpack.c.l.b16 %v587
        %v1749 = vunpack.c.h.b16 %v587
        %v1750 = vunpack.c.l.b16 %v588
        %v1751 = vunpack.c.h.b16 %v588
        %v1752 = vunpack.c.l.b16 %v589
        %v1753 = vunpack.c.h.b16 %v589
        %v1754 = vunpack.c.l.b16 %v590
        %v1755 = vunpack.c.h.b16 %v590
        %v1756 = vunpack.c.l.b16 %v591
        %v1757 = vunpack.c.h.b16 %v591
        %v1758 = vunpack.c.l.b16 %v592
        %v1759 = vunpack.c.h.b16 %v592
        %v1760 = vunpack.c.l.b16 %v593
        %v1761 = vunpack.c.h.b16 %v593
        %v1762 = vunpack.c.l.b16 %v594
        %v1763 = vunpack.c.h.b16 %v594
        %v1764 = vunpack.c.l.b16 %v595
        %v1765 = vunpack.c.h.b16 %v595
        %v1766 = vunpack.c.l.b16 %v596
        %v1767 = vunpack.c.h.b16 %v596
        %v1768 = vunpack.c.l.b16 %v597
        %v1769 = vunpack.c.h.b16 %v597
        %v1770 = vunpack.c.l.b16 %v598
        %v1771 = vunpack.c.h.b16 %v598
        %v1772 = vunpack.c.l.b16 %v599
        %v1773 = vunpack.c.h.b16 %v599
        %v1774 = vunpack.c.l.b16 %v600
        %v1775 = vunpack.c.h.b16 %v600
        %v1776 = vunpack.c.l.b16 %v601
        %v1777 = vunpack.c.h.b16 %v601
        %v1778 = vunpack.c.l.b16 %v602
        %v1779 = vunpack.c.h.b16 %v602
        %v1780 = vunpack.c.l.b16 %v603
        %v1781 = vunpack.c.h.b16 %v603
        %v1782 = vunpack.c.l.b16 %v604
        %v1783 = vunpack.c.h.b16 %v604
        %v1784 = vunpack.c.l.b16 %v605
        %v1785 = vunpack.c.h.b16 %v605
        %v1786 = vunpack.c.l.b16 %v606
        %v1787 = vunpack.c.h.b16 %v606
        %v1788 = vunpack.c.l.b16 %v607
        %v1789 = vunpack.c.h.b16 %v607
        %v1790 = vunpack.c.l.b16 %v608
        %v1791 = vunpack.c.h.b16 %v608
        %v1792 = vunpack.c.l.b16 %v609
        %v1793 = vunpack.c.h.b16 %v609
        %v1794 = vunpack.c.l.b16 %v610
        %v1795 = vunpack.c.h.b16 %v610
        %v1796 = vunpack.c.l.b16 %v611
        %v1797 = vunpack.c.h.b16 %v611
        %v1798 = vunpack.c.l.b16 %v612
        %v1799 = vunpack.c.h.b16 %v612
        %v1800 = vunpack.c.l.b16 %v613
        %v1801 = vunpack.c.h.b16 %v613
        %v1802 = vunpack.c.l.b16 %v614
        %v1803 = vunpack.c.h.b16 %v614
        %v1804 = vunpack.c.l.b16 %v615
        %v1805 = vunpack.c.h.b16 %v615
        %v1806 = vunpack.c.l.b16 %v616
        %v1807 = vunpack.c.h.b16 %v616
        %v1808 = vunpack.c.l.b16 %v617
        %v1809 = vunpack.c.h.b16 %v617
        %v1810 = vunpack.c.l.b16 %v618
        %v1811 = vunpack.c.h.b16 %v618
        %v1812 = vunpack.c.l.b16 %v619
        %v1813 = vunpack.c.h.b16 %v619
        %v1814 = vunpack.c.l.b16 %v620
        %v1815 = vunpack.c.h.b16 %v620
        %v1816 = vunpack.c.l.b16 %v621
        %v1817 = vunpack.c.h.b16 %v621
        %v1818 = vunpack.c.l.b16 %v622
        %v1819 = vunpack.c.h.b16 %v622
        %v1820 = vunpack.c.l.b16 %v623
        %v1821 = vunpack.c.h.b16 %v623
        %v1822 = vunpack.c.l.b16 %v624
        %v1823 = vunpack.c.h.b16 %v624
        %v1824 = vunpack.c.l.b16 %v625
        %v1825 = vunpack.c.h.b16 %v625
        %v1826 = vunpack.c.l.b16 %v626
        %v1827 = vunpack.c.h.b16 %v626
        %v1828 = vunpack.c.l.b16 %v627
        %v1829 = vunpack.c.h.b16 %v627
        %v1830 = vunpack.c.l.b16 %v628
        %v1831 = vunpack.c.h.b16 %v628
        %v1832 = vunpack.c.l.b16 %v629
        %v1833 = vunpack.c.h.b16 %v629
        %v1834 = vunpack.c.l.b16 %v630
        %v1835 = vunpack.c.h.b16 %v630
        %v1836 = vunpack.c.l.b16 %v631
        %v1837 = vunpack.c.h.b16 %v631
        %v1838 = vunpack.c.l.b16 %v632
        %v1839 = vunpack.c.h.b16 %v632
        %v1840 = vunpack.c.l.b16 %v633
        %v1841 = vunpack.c.h.b16 %v633
        %v1842 = vunpack.c.l.b16 %v634
        %v1843 = vunpack.c.h.b16 %v634
        %v1844 = vunpack.c.l.b16 %v635
        %v1845 = vunpack.c.h.b16 %v635
        %v1846 = vunpack.c.l.b16 %v636
        %v1847 = vunpack.c.h.b16 %v636
        %v1848 = vunpack.c.l.b16 %v637
        %v1849 = vunpack.c.h.b16 %v637
        %v1850 = vunpack.c.l.b16 %v638
        %v1851 = vunpack.c.h.b16 %v638
        %v1852 = vunpack.c.l.b16 %v639
        %v1853 = vunpack.c.h.b16 %v639
        %v1854 = vunpack.c.l.b16 %v640
        %v1855 = vunpack.c.h.b16 %v640
        %v1856 = vunpack.c.l.b16 %v641
        %v1857 = vunpack.c.h.b16 %v641
        %v1858 = vunpack.c.l.b16 %v642
        %v1859 = vunpack.c.h.b16 %v642
        %v1860 = vunpack.c.l.b16 %v643
        %v1861 = vunpack.c.h.b16 %v643
        %v1862 = vunpack.c.l.b16 %v644
        %v1863 = vunpack.c.h.b16 %v644
        %v1864 = vunpack.c.l.b16 %v645
        %v1865 = vunpack.c.h.b16 %v645
        %v1866 = vunpack.c.l.b16 %v646
        %v1867 = vunpack.c.h.b16 %v646
        %v1868 = vunpack.c.l.b16 %v647
        %v1869 = vunpack.c.h.b16 %v647
        %v1870 = vunpack.c.l.b16 %v648
        %v1871 = vunpack.c.h.b16 %v648
        %v1872 = vunpack.c.l.b16 %v649
        %v1873 = vunpack.c.h.b16 %v649
        %v1874 = vunpack.c.l.b16 %v650
        %v1875 = vunpack.c.h.b16 %v650
        %v1876 = vunpack.c.l.b16 %v651
        %v1877 = vunpack.c.h.b16 %v651
        %v1878 = vunpack.c.l.b16 %v652
        %v1879 = vunpack.c.h.b16 %v652
        %v1880 = vunpack.c.l.b16 %v653
        %v1881 = vunpack.c.h.b16 %v653
        %v1882 = vunpack.c.l.b16 %v654
        %v1883 = vunpack.c.h.b16 %v654
        %v1884 = vunpack.c.l.b16 %v655
        %v1885 = vunpack.c.h.b16 %v655
        %v1886 = vunpack.c.l.b16 %v656
        %v1887 = vunpack.c.h.b16 %v656
        %v1888 = vunpack.c.l.b16 %v657
        %v1889 = vunpack.c.h.b16 %v657
        %v1890 = vunpack.c.l.b16 %v658
        %v1891 = vunpack.c.h.b16 %v658
        %v1892 = vunpack.c.l.b16 %v659
        %v1893 = vunpack.c.h.b16 %v659
        %v1894 = vunpack.c.l.b16 %v660
        %v1895 = vunpack.c.h.b16 %v660
        %v1896 = vunpack.c.l.b16 %v661
        %v1897 = vunpack.c.h.b16 %v661
        %v1898 = vunpack.c.l.b16 %v662
        %v1899 = vunpack.c.h.b16 %v662
        %v1900 = vunpack.c.l.b16 %v663
        %v1901 = vunpack.c.h.b16 %v663
        %v1902 = vunpack.c.l.b16 %v664
        %v1903 = vunpack.c.h.b16 %v664
        %v1904 = vunpack.c.l.b16 %v665
        %v1905 = vunpack.c.h.b16 %v665
        %v1906 = vunpack.c.l.b16 %v666
        %v1907 = vunpack.c.h.b16 %v666
        %v1908 = vunpack.c.l.b16 %v667
        %v1909 = vunpack.c.h.b16 %v667
        %v1910 = vunpack.c.l.b16 %v668
        %v1911 = vunpack.c.h.b16 %v668
        %v1912 = vunpack.c.l.b16 %v669
        %v1913 = vunpack.c.h.b16 %v669
        %v1914 = vunpack.c.l.b16 %v670
        %v1915 = vunpack.c.h.b16 %v670
        %v1916 = vunpack.c.l.b16 %v671
        %v1917 = vunpack.c.h.b16 %v671
        %v1918 = vunpack.c.l.b16 %v672
        %v1919 = vunpack.c.h.b16 %v672
        %v1920 = vunpack.c.l.b16 %v673
        %v1921 = vunpack.c.h.b16 %v673
        %v1922 = vunpack.c.l.b16 %v674
        %v1923 = vunpack.c.h.b16 %v674
        %v1924 = vunpack.c.l.b16 %v675
        %v1925 = vunpack.c.h.b16 %v675
        %v1926 = vunpack.c.l.b16 %v676
        %v1927 = vunpack.c.h.b16 %v676
        %v1928 = vunpack.c.l.b16 %v677
        %v1929 = vunpack.c.h.b16 %v677
        %v1930 = vunpack.c.l.b16 %v678
        %v1931 = vunpack.c.h.b16 %v678
        %v1932 = vunpack.c.l.b16 %v679
        %v1933 = vunpack.c.h.b16 %v679
        %v1934 = vunpack.c.l.b16 %v680
        %v1935 = vunpack.c.h.b16 %v680
        %v1936 = vunpack.c.l.b16 %v681
        %v1937 = vunpack.c.h.b16 %v681
        %v1938 = vunpack.c.l.b16 %v682
        %v1939 = vunpack.c.h.b16 %v682
        %v1940 = vunpack.c.l.b16 %v683
        %v1941 = vunpack.c.h.b16 %v683
        %v1942 = vunpack.c.l.b16 %v684
        %v1943 = vunpack.c.h.b16 %v684
        %v1944 = vunpack.c.l.b16 %v685
        %v1945 = vunpack.c.h.b16 %v685
        %v1946 = vunpack.c.l.b16 %v686
        %v1947 = vunpack.c.h.b16 %v686
        %v1948 = vunpack.c.l.b16 %v687
        %v1949 = vunpack.c.h.b16 %v687
        %v1950 = vunpack.c.l.b16 %v688
        %v1951 = vunpack.c.h.b16 %v688
        %v1952 = vunpack.c.l.b16 %v689
        %v1953 = vunpack.c.h.b16 %v689
        %v1954 = vunpack.c.l.b16 %v690
        %v1955 = vunpack.c.h.b16 %v690
        %v1956 = vunpack.c.l.b16 %v691
        %v1957 = vunpack.c.h.b16 %v691
        %v1958 = vunpack.c.l.b16 %v692
        %v1959 = vunpack.c.h.b16 %v692
        %v1960 = vunpack.c.l.b16 %v693
        %v1961 = vunpack.c.h.b16 %v693
        %v1962 = vunpack.c.l.b16 %v694
        %v1963 = vunpack.c.h.b16 %v694
        %v1964 = vunpack.c.l.b16 %v695
        %v1965 = vunpack.c.h.b16 %v695
        %v1966 = vunpack.c.l.b16 %v696
        %v1967 = vunpack.c.h.b16 %v696
        %v1968 = vunpack.c.l.b16 %v697
        %v1969 = vunpack.c.h.b16 %v697
        %v1970 = vunpack.c.l.b16 %v698
        %v1971 = vunpack.c.h.b16 %v698
        %v1972 = vunpack.c.l.b16 %v699
        %v1973 = vunpack.c.h.b16 %v699
        %v1974 = vunpack.c.l.b16 %v700
        %v1975 = vunpack.c.h.b16 %v700
        %v1976 = vunpack.c.l.b16 %v701
        %v1977 = vunpack.c.h.b16 %v701
        %v1978 = vunpack.c.l.b16 %v702
        %v1979 = vunpack.c.h.b16 %v702
        %v1980 = vunpack.c.l.b16 %v703
        %v1981 = vunpack.c.h.b16 %v703
        %v1982 = vunpack.c.l.b16 %v704
        %v1983 = vunpack.c.h.b16 %v704
        %v1984 = vunpack.c.l.b16 %v705
        %v1985 = vunpack.c.h.b16 %v705
        %v1986 = vunpack.c.l.b16 %v706
        %v1987 = vunpack.c.h.b16 %v706
        %v1988 = vunpack.c.l.b16 %v707
        %v1989 = vunpack.c.h.b16 %v707
        %v1990 = vunpack.c.l.b16 %v708
        %v1991 = vunpack.c.h.b16 %v708
        %v1992 = vunpack.c.l.b16 %v709
        %v1993 = vunpack.c.h.b16 %v709
        %v1994 = vunpack.c.l.b16 %v710
        %v1995 = vunpack.c.h.b16 %v710
        %v1996 = vunpack.c.l.b16 %v711
        %v1997 = vunpack.c.h.b16 %v711
        %v1998 = vunpack.c.l.b16 %v712
        %v1999 = vunpack.c.h.b16 %v712
        %v2000 = vunpack.c.l.b16 %v713
        %v2001 = vunpack.c.h.b16 %v713
        %v2002 = vunpack.c.l.b16 %v714
        %v2003 = vunpack.c.h.b16 %v714
        %v2004 = vunpack.c.l.b16 %v715
        %v2005 = vunpack.c.h.b16 %v715
        %v2006 = vunpack.c.l.b16 %v716
        %v2007 = vunpack.c.h.b16 %v716
        %v2008 = vunpack.c.l.b16 %v717
        %v2009 = vunpack.c.h.b16 %v717
        %v2010 = vunpack.c.l.b16 %v718
        %v2011 = vunpack.c.h.b16 %v718
        %v2012 = vunpack.c.l.b16 %v719
        %v2013 = vunpack.c.h.b16 %v719
        %v2014 = vunpack.c.l.b16 %v720
        %v2015 = vunpack.c.h.b16 %v720
        %v2016 = vunpack.c.l.b16 %v721
        %v2017 = vunpack.c.h.b16 %v721
        %v2018 = vunpack.c.l.b16 %v722
        %v2019 = vunpack.c.h.b16 %v722
        %v2020 = vunpack.c.l.b16 %v723
        %v2021 = vunpack.c.h.b16 %v723
        %v2022 = vunpack.c.l.b16 %v724
        %v2023 = vunpack.c.h.b16 %v724
        %v2024 = vunpack.c.l.b16 %v725
        %v2025 = vunpack.c.h.b16 %v725
        %v2026 = vunpack.c.l.b16 %v726
        %v2027 = vunpack.c.h.b16 %v726
        %v2028 = vunpack.c.l.b16 %v727
        %v2029 = vunpack.c.h.b16 %v727
        %v2030 = vunpack.c.l.b16 %v728
        %v2031 = vunpack.c.h.b16 %v728
        %v2032 = vunpack.c.l.b16 %v729
        %v2033 = vunpack.c.h.b16 %v729
        %v2034 = vunpack.c.l.b16 %v730
        %v2035 = vunpack.c.h.b16 %v730
        %v2036 = vunpack.c.l.b16 %v731
        %v2037 = vunpack.c.h.b16 %v731
        %v2038 = vunpack.c.l.b16 %v732
        %v2039 = vunpack.c.h.b16 %v732
        %v2040 = vunpack.c.l.b16 %v733
        %v2041 = vunpack.c.h.b16 %v733
        %v2042 = vunpack.c.l.b16 %v734
        %v2043 = vunpack.c.h.b16 %v734
        %v2044 = vunpack.c.l.b16 %v735
        %v2045 = vunpack.c.h.b16 %v735
        %v2046 = vunpack.c.l.b16 %v736
        %v2047 = vunpack.c.h.b16 %v736
        %v2048 = vunpack.c.l.b16 %v737
        %v2049 = vunpack.c.h.b16 %v737
        %v2050 = vunpack.c.l.b16 %v738
        %v2051 = vunpack.c.h.b16 %v738
        %v2052 = vpack.c.b16 %v1800, %v1716
        %v2053 = vpack.c.b16 %v1801, %v1717
        %v2054 = vpack.c.b16 %v1802, %v1718
        %v2055 = vpack.c.b16 %v1803, %v1719
        %v2056 = vpack.c.b16 %v1804, %v1720
        %v2057 = vpack.c.b16 %v1805, %v1721
        %v2058 = vpack.c.b16 %v1806, %v1722
        %v2059 = vpack.c.b16 %v1807, %v1723
        %v2060 = vpack.c.b16 %v1808, %v1724
        %v2061 = vpack.c.b16 %v1809, %v1725
        %v2062 = vpack.c.b16 %v1810, %v1726
        %v2063 = vpack.c.b16 %v1811, %v1727
        %v2064 = vpack.c.b16 %v1812, %v1728
        %v2065 = vpack.c.b16 %v1813, %v1729
        %v2066 = vpack.c.b16 %v1814, %v1730
        %v2067 = vpack.c.b16 %v1815, %v1731
        %v2068 = vpack.c.b16 %v1816, %v1732
        %v2069 = vpack.c.b16 %v1817, %v1733
        %v2070 = vpack.c.b16 %v1818, %v1734
        %v2071 = vpack.c.b16 %v1819, %v1735
        %v2072 = vpack.c.b16 %v1820, %v1736
        %v2073 = vpack.c.b16 %v1821, %v1737
        %v2074 = vpack.c.b16 %v1822, %v1738
        %v2075 = vpack.c.b16 %v1823, %v1739
        %v2076 = vpack.c.b16 %v1824, %v1740
        %v2077 = vpack.c.b16 %v1825, %v1741
        %v2078 = vpack.c.b16 %v1826, %v1742
        %v2079 = vpack.c.b16 %v1827, %v1743
        %v2080 = vpack.c.b16 %v1828, %v1744
        %v2081 = vpack.c.b16 %v1829, %v1745
        %v2082 = vpack.c.b16 %v1830, %v1746
        %v2083 = vpack.c.b16 %v1831, %v1747
        %v2084 = vpack.c.b16 %v1832, %v1748
        %v2085 = vpack.c.b16 %v1833, %v1749
        %v2086 = vpack.c.b16 %v1834, %v1750
        %v2087 = vpack.c.b16 %v1835, %v1751
        %v2088 = vpack.c.b16 %v1836, %v1752
        %v2089 = vpack.c.b16 %v1837, %v1753
        %v2090 = vpack.c.b16 %v1838, %v1754
        %v2091 = vpack.c.b16 %v1839, %v1755
        %v2092 = vpack.c.b16 %v1840, %v1756
        %v2093 = vpack.c.b16 %v1841, %v1757
        %v2094 = vpack.c.b16 %v1842, %v1758
        %v2095 = vpack.c.b16 %v1843, %v1759
        %v2096 = vpack.c.b16 %v1844, %v1760
        %v2097 = vpack.c.b16 %v1845, %v1761
        %v2098 = vpack.c.b16 %v1846, %v1762
        %v2099 = vpack.c.b16 %v1847, %v1763
        %v2100 = vpack.c.b16 %v1848, %v1764
        %v2101 = vpack.c.b16 %v1849, %v1765
        %v2102 = vpack.c.b16 %v1850, %v1766
        %v2103 = vpack.c.b16 %v1851, %v1767
        %v2104 = vpack.c.b16 %v1852, %v1768
        %v2105 = vpack.c.b16 %v1853, %v1769
        %v2106 = vpack.c.b16 %v1854, %v1770
        %v2107 = vpack.c.b16 %v1855, %v1771
        %v2108 = vpack.c.b16 %v1856, %v1772
        %v2109 = vpack.c.b16 %v1857, %v1773
        %v2110 = vpack.c.b16 %v1858, %v1774
        %v2111 = vpack.c.b16 %v1859, %v1775
        %v2112 = vpack.c.b16 %v1860, %v1776
        %v2113 = vpack.c.b16 %v1861, %v1777
        %v2114 = vpack.c.b16 %v1862, %v1778
        %v2115 = vpack.c.b16 %v1863, %v1779
        %v2116 = vpack.c.b16 %v1864, %v1780
        %v2117 = vpack.c.b16 %v1865, %v1781
        %v2118 = vpack.c.b16 %v1866, %v1782
        %v2119 = vpack.c.b16 %v1867, %v1783
        %v2120 = vpack.c.b16 %v1868, %v1784
        %v2121 = vpack.c.b16 %v1869, %v1785
        %v2122 = vpack.c.b16 %v1870, %v1786
        %v2123 = vpack.c.b16 %v1871, %v1787
        %v2124 = vpack.c.b16 %v1872, %v1788
        %v2125 = vpack.c.b16 %v1873, %v1789
        %v2126 = vpack.c.b16 %v1874, %v1790
        %v2127 = vpack.c.b16 %v1875, %v1791
        %v2128 = vpack.c.b16 %v1876, %v1792
        %v2129 = vpack.c.b16 %v1877, %v1793
        %v2130 = vpack.c.b16 %v1878, %v1794
        %v2131 = vpack.c.b16 %v1879, %v1795
        %v2132 = vpack.c.b16 %v1880, %v1796
        %v2133 = vpack.c.b16 %v1881, %v1797
        %v2134 = vpack.c.b16 %v1882, %v1798
        %v2135 = vpack.c.b16 %v1883, %v1799
        %v2136 = vpack.c.b16 %v1968, %v1884
        %v2137 = vpack.c.b16 %v1969, %v1885
        %v2138 = vpack.c.b16 %v1970, %v1886
        %v2139 = vpack.c.b16 %v1971, %v1887
        %v2140 = vpack.c.b16 %v1972, %v1888
        %v2141 = vpack.c.b16 %v1973, %v1889
        %v2142 = vpack.c.b16 %v1974, %v1890
        %v2143 = vpack.c.b16 %v1975, %v1891
        %v2144 = vpack.c.b16 %v1976, %v1892
        %v2145 = vpack.c.b16 %v1977, %v1893
        %v2146 = vpack.c.b16 %v1978, %v1894
        %v2147 = vpack.c.b16 %v1979, %v1895
        %v2148 = vpack.c.b16 %v1980, %v1896
        %v2149 = vpack.c.b16 %v1981, %v1897
        %v2150 = vpack.c.b16 %v1982, %v1898
        %v2151 = vpack.c.b16 %v1983, %v1899
        %v2152 = vpack.c.b16 %v1984, %v1900
        %v2153 = vpack.c.b16 %v1985, %v1901
        %v2154 = vpack.c.b16 %v1986, %v1902
        %v2155 = vpack.c.b16 %v1987, %v1903
        %v2156 = vpack.c.b16 %v1988, %v1904
        %v2157 = vpack.c.b16 %v1989, %v1905
        %v2158 = vpack.c.b16 %v1990, %v1906
        %v2159 = vpack.c.b16 %v1991, %v1907
        %v2160 = vpack.c.b16 %v1992, %v1908
        %v2161 = vpack.c.b16 %v1993, %v1909
        %v2162 = vpack.c.b16 %v1994, %v1910
        %v2163 = vpack.c.b16 %v1995, %v1911
        %v2164 = vpack.c.b16 %v1996, %v1912
        %v2165 = vpack.c.b16 %v1997, %v1913
        %v2166 = vpack.c.b16 %v1998, %v1914
        %v2167 = vpack.c.b16 %v1999, %v1915
        %v2168 = vpack.c.b16 %v2000, %v1916
        %v2169 = vpack.c.b16 %v2001, %v1917
        %v2170 = vpack.c.b16 %v2002, %v1918
        %v2171 = vpack.c.b16 %v2003, %v1919
        %v2172 = vpack.c.b16 %v2004, %v1920
        %v2173 = vpack.c.b16 %v2005, %v1921
        %v2174 = vpack.c.b16 %v2006, %v1922
        %v2175 = vpack.c.b16 %v2007, %v1923
        %v2176 = vpack.c.b16 %v2008, %v1924
        %v2177 = vpack.c.b16 %v2009, %v1925
        %v2178 = vpack.c.b16 %v2010, %v1926
        %v2179 = vpack.c.b16 %v2011, %v1927
        %v2180 = vpack.c.b16 %v2012, %v1928
        %v2181 = vpack.c.b16 %v2013, %v1929
        %v2182 = vpack.c.b16 %v2014, %v1930
        %v2183 = vpack.c.b16 %v2015, %v1931
        %v2184 = vpack.c.b16 %v2016, %v1932
        %v2185 = vpack.c.b16 %v2017, %v1933
        %v2186 = vpack.c.b16 %v2018, %v1934
        %v2187 = vpack.c.b16 %v2019, %v1935
        %v2188 = vpack.c.b16 %v2020, %v1936
        %v2189 = vpack.c.b16 %v2021, %v1937
        %v2190 = vpack.c.b16 %v2022, %v1938
        %v2191 = vpack.c.b16 %v2023, %v1939
        %v2192 = vpack.c.b16 %v2024, %v1940
        %v2193 = vpack.c.b16 %v2025, %v1941
        %v2194 = vpack.c.b16 %v2026, %v1942
        %v2195 = vpack.c.b16 %v2027, %v1943
        %v2196 = vpack.c.b16 %v2028, %v1944
        %v2197 = vpack.c.b16 %v2029, %v1945
        %v2198 = vpack.c.b16 %v2030, %v1946
        %v2199 = vpack.c.b16 %v2031, %v1947
        %v2200 = vpack.c.b16 %v2032, %v1948
        %v2201 = vpack.c.b16 %v2033, %v1949
        %v2202 = vpack.c.b16 %v2034, %v1950
        %v2203 = vpack.c.b16 %v2035, %v1951
        %v2204 = vpack.c.b16 %v2036, %v1952
        %v2205 = vpack.c.b16 %v2037, %v1953
        %v2206 = vpack.c.b16 %v2038, %v1954
        %v2207 = vpack.c.b16 %v2039, %v1955
        %v2208 = vpack.c.b16 %v2040, %v1956
        %v2209 = vpack.c.b16 %v2041, %v1957
        %v2210 = vpack.c.b16 %v2042, %v1958
        %v2211 = vpack.c.b16 %v2043, %v1959
        %v2212 = vpack.c.b16 %v2044, %v1960
        %v2213 = vpack.c.b16 %v2045, %v1961
        %v2214 = vpack.c.b16 %v2046, %v1962
        %v2215 = vpack.c.b16 %v2047, %v1963
        %v2216 = vpack.c.b16 %v2048, %v1964
        %v2217 = vpack.c.b16 %v2049, %v1965
        %v2218 = vpack.c.b16 %v2050, %v1966
        %v2219 = vpack.c.b16 %v2051, %v1967
        %v2389 = vsel %vm496, %v570, 0
        %2391 = vmatprep.subr.bf16.mxu0 %v2053
        %2392 = vmatpush1.bf16.msra.mxu0 %v2052
        %2393 = vmatprep.subr.bf16.mxu0 %v2137
        %2394 = vmatpush1.bf16.msra.mxu0 %v2136
        %2395 = vmatprep.subr.bf16.mxu0 0
        %2396 = vmatpush1.bf16.msra.mxu0 0
        %2397 = vmatprep.subr.bf16.mxu0 0
        %2398 = vmatpush1.bf16.msra.mxu0 0
        %2399 = vmatprep.subr.bf16.mxu0 0
        %2400 = vmatpush1.bf16.msra.mxu0 0
        %2401 = vmatprep.subr.bf16.mxu0 0
        %2402 = vmatpush1.bf16.msra.mxu0 0
        %2403 = vmatprep.subr.bf16.mxu0 0
        %2404 = vmatpush1.bf16.msra.mxu0 0
        %2405 = vmatprep.subr.bf16.mxu0 0
        %2406 = vmatpush1.bf16.msra.mxu0 0
        %2407 = vmatprep.subr.bf16.mxu0 0
        %2408 = vmatpush1.bf16.msra.mxu0 0
        %2409 = vmatprep.subr.bf16.mxu0 0
        %2410 = vmatpush1.bf16.msra.mxu0 0
        %2411 = vmatprep.subr.bf16.mxu0 0
        %2412 = vmatpush1.bf16.msra.mxu0 0
        %2413 = vmatprep.subr.bf16.mxu0 0
        %2414 = vmatpush1.bf16.msra.mxu0 0
        %2415 = vmatprep.subr.bf16.mxu0 0
        %2416 = vmatpush1.bf16.msra.mxu0 0
        %2417 = vmatprep.subr.bf16.mxu0 0
        %2418 = vmatpush1.bf16.msra.mxu0 0
        %2419 = vmatprep.subr.bf16.mxu0 0
        %2420 = vmatpush1.bf16.msra.mxu0 0
        %2421 = vmatprep.subr.bf16.mxu0 0
        %2422 = vmatpush1.bf16.msra.mxu0 0
        %2423 = vmatprep.mubr.bf16.mxu0 0
        %2424 = vmatmul.mubr.bf16.gmra.mrb[0].mxu0 %v2389
        %v2425 = vpop.f32.mrb[0].mxu0
        %v2426 = vadd.f32 %v1215, %v2425
        %v2427 = vpop.f32.mrb[0].mxu0
        %v2428 = vadd.f32 %v1219, %v2427
        %v2429 = vpop.f32.mrb[0].mxu0
        %v2430 = vpop.f32.mrb[0].mxu0
        %2431 = vdwg.mxu0
        %2432 = vmatprep.subr.bf16.mxu0 %v2055
        %2433 = vmatpush1.bf16.msra.mxu0 %v2054
        %2434 = vmatprep.subr.bf16.mxu0 %v2139
        %2435 = vmatpush1.bf16.msra.mxu0 %v2138
        %2436 = vmatprep.subr.bf16.mxu0 0
        %2437 = vmatpush1.bf16.msra.mxu0 0
        %2438 = vmatprep.subr.bf16.mxu0 0
        %2439 = vmatpush1.bf16.msra.mxu0 0
        %2440 = vmatprep.subr.bf16.mxu0 0
        %2441 = vmatpush1.bf16.msra.mxu0 0
        %2442 = vmatprep.subr.bf16.mxu0 0
        %2443 = vmatpush1.bf16.msra.mxu0 0
        %2444 = vmatprep.subr.bf16.mxu0 0
        %2445 = vmatpush1.bf16.msra.mxu0 0
        %2446 = vmatprep.subr.bf16.mxu0 0
        %2447 = vmatpush1.bf16.msra.mxu0 0
        %2448 = vmatprep.subr.bf16.mxu0 0
        %2449 = vmatpush1.bf16.msra.mxu0 0
        %2450 = vmatprep.subr.bf16.mxu0 0
        %2451 = vmatpush1.bf16.msra.mxu0 0
        %2452 = vmatprep.subr.bf16.mxu0 0
        %2453 = vmatpush1.bf16.msra.mxu0 0
        %2454 = vmatprep.subr.bf16.mxu0 0
        %2455 = vmatpush1.bf16.msra.mxu0 0
        %2456 = vmatprep.subr.bf16.mxu0 0
        %2457 = vmatpush1.bf16.msra.mxu0 0
        %2458 = vmatprep.subr.bf16.mxu0 0
        %2459 = vmatpush1.bf16.msra.mxu0 0
        %2460 = vmatprep.subr.bf16.mxu0 0
        %2461 = vmatpush1.bf16.msra.mxu0 0
        %2462 = vmatprep.subr.bf16.mxu0 0
        %2463 = vmatpush1.bf16.msra.mxu0 0
        %2464 = vmatprep.mubr.bf16.mxu0 0
        %2465 = vmatmul.mubr.bf16.gmra.mrb[0].mxu0 %v2389
        %v2466 = vpop.f32.mrb[0].mxu0
        %v2467 = vadd.f32 %v1223, %v2466
        %v2468 = vpop.f32.mrb[0].mxu0
        %v2469 = vadd.f32 %v1227, %v2468
        %v2470 = vpop.f32.mrb[0].mxu0
        %v2471 = vpop.f32.mrb[0].mxu0
        %2472 = vdwg.mxu0
        %2473 = vmatprep.subr.bf16.mxu0 %v2057
        %2474 = vmatpush1.bf16.msra.mxu0 %v2056
        %2475 = vmatprep.subr.bf16.mxu0 %v2141
        %2476 = vmatpush1.bf16.msra.mxu0 %v2140
        %2477 = vmatprep.subr.bf16.mxu0 0
        %2478 = vmatpush1.bf16.msra.mxu0 0
        %2479 = vmatprep.subr.bf16.mxu0 0
        %2480 = vmatpush1.bf16.msra.mxu0 0
        %2481 = vmatprep.subr.bf16.mxu0 0
        %2482 = vmatpush1.bf16.msra.mxu0 0
        %2483 = vmatprep.subr.bf16.mxu0 0
        %2484 = vmatpush1.bf16.msra.mxu0 0
        %2485 = vmatprep.subr.bf16.mxu0 0
        %2486 = vmatpush1.bf16.msra.mxu0 0
        %2487 = vmatprep.subr.bf16.mxu0 0
        %2488 = vmatpush1.bf16.msra.mxu0 0
        %2489 = vmatprep.subr.bf16.mxu0 0
        %2490 = vmatpush1.bf16.msra.mxu0 0
        %2491 = vmatprep.subr.bf16.mxu0 0
        %2492 = vmatpush1.bf16.msra.mxu0 0
        %2493 = vmatprep.subr.bf16.mxu0 0
        %2494 = vmatpush1.bf16.msra.mxu0 0
        %2495 = vmatprep.subr.bf16.mxu0 0
        %2496 = vmatpush1.bf16.msra.mxu0 0
        %2497 = vmatprep.subr.bf16.mxu0 0
        %2498 = vmatpush1.bf16.msra.mxu0 0
        %2499 = vmatprep.subr.bf16.mxu0 0
        %2500 = vmatpush1.bf16.msra.mxu0 0
        %2501 = vmatprep.subr.bf16.mxu0 0
        %2502 = vmatpush1.bf16.msra.mxu0 0
        %2503 = vmatprep.subr.bf16.mxu0 0
        %2504 = vmatpush1.bf16.msra.mxu0 0
        %2505 = vmatprep.mubr.bf16.mxu0 0
        %2506 = vmatmul.mubr.bf16.gmra.mrb[0].mxu0 %v2389
        %v2507 = vpop.f32.mrb[0].mxu0
        %v2508 = vadd.f32 %v1231, %v2507
        %v2509 = vpop.f32.mrb[0].mxu0
        %v2510 = vadd.f32 %v1235, %v2509
        %v2511 = vpop.f32.mrb[0].mxu0
        %v2512 = vpop.f32.mrb[0].mxu0
        %2513 = vdwg.mxu0
        %2514 = vmatprep.subr.bf16.mxu0 %v2059
        %2515 = vmatpush1.bf16.msra.mxu0 %v2058
        %2516 = vmatprep.subr.bf16.mxu0 %v2143
        %2517 = vmatpush1.bf16.msra.mxu0 %v2142
        %2518 = vmatprep.subr.bf16.mxu0 0
        %2519 = vmatpush1.bf16.msra.mxu0 0
        %2520 = vmatprep.subr.bf16.mxu0 0
        %2521 = vmatpush1.bf16.msra.mxu0 0
        %2522 = vmatprep.subr.bf16.mxu0 0
        %2523 = vmatpush1.bf16.msra.mxu0 0
        %2524 = vmatprep.subr.bf16.mxu0 0
        %2525 = vmatpush1.bf16.msra.mxu0 0
        %2526 = vmatprep.subr.bf16.mxu0 0
        %2527 = vmatpush1.bf16.msra.mxu0 0
        %2528 = vmatprep.subr.bf16.mxu0 0
        %2529 = vmatpush1.bf16.msra.mxu0 0
        %2530 = vmatprep.subr.bf16.mxu0 0
        %2531 = vmatpush1.bf16.msra.mxu0 0
        %2532 = vmatprep.subr.bf16.mxu0 0
        %2533 = vmatpush1.bf16.msra.mxu0 0
        %2534 = vmatprep.subr.bf16.mxu0 0
        %2535 = vmatpush1.bf16.msra.mxu0 0
        %2536 = vmatprep.subr.bf16.mxu0 0
        %2537 = vmatpush1.bf16.msra.mxu0 0
        %2538 = vmatprep.subr.bf16.mxu0 0
        %2539 = vmatpush1.bf16.msra.mxu0 0
        %2540 = vmatprep.subr.bf16.mxu0 0
        %2541 = vmatpush1.bf16.msra.mxu0 0
        %2542 = vmatprep.subr.bf16.mxu0 0
        %2543 = vmatpush1.bf16.msra.mxu0 0
        %2544 = vmatprep.subr.bf16.mxu0 0
        %2545 = vmatpush1.bf16.msra.mxu0 0
        %2546 = vmatprep.mubr.bf16.mxu0 0
        %2547 = vmatmul.mubr.bf16.gmra.mrb[0].mxu0 %v2389
        %v2548 = vpop.f32.mrb[0].mxu0
        %v2549 = vadd.f32 %v1239, %v2548
        %v2550 = vpop.f32.mrb[0].mxu0
        %v2551 = vadd.f32 %v1243, %v2550
        %v2552 = vpop.f32.mrb[0].mxu0
        %v2553 = vpop.f32.mrb[0].mxu0
        %2554 = vdwg.mxu0
        %2555 = vmatprep.subr.bf16.mxu0 %v2061
        %2556 = vmatpush1.bf16.msra.mxu0 %v2060
        %2557 = vmatprep.subr.bf16.mxu0 %v2145
        %2558 = vmatpush1.bf16.msra.mxu0 %v2144
        %2559 = vmatprep.subr.bf16.mxu0 0
        %2560 = vmatpush1.bf16.msra.mxu0 0
        %2561 = vmatprep.subr.bf16.mxu0 0
        %2562 = vmatpush1.bf16.msra.mxu0 0
        %2563 = vmatprep.subr.bf16.mxu0 0
        %2564 = vmatpush1.bf16.msra.mxu0 0
        %2565 = vmatprep.subr.bf16.mxu0 0
        %2566 = vmatpush1.bf16.msra.mxu0 0
        %2567 = vmatprep.subr.bf16.mxu0 0
        %2568 = vmatpush1.bf16.msra.mxu0 0
        %2569 = vmatprep.subr.bf16.mxu0 0
        %2570 = vmatpush1.bf16.msra.mxu0 0
        %2571 = vmatprep.subr.bf16.mxu0 0
        %2572 = vmatpush1.bf16.msra.mxu0 0
        %2573 = vmatprep.subr.bf16.mxu0 0
        %2574 = vmatpush1.bf16.msra.mxu0 0
        %2575 = vmatprep.subr.bf16.mxu0 0
        %2576 = vmatpush1.bf16.msra.mxu0 0
        %2577 = vmatprep.subr.bf16.mxu0 0
        %2578 = vmatpush1.bf16.msra.mxu0 0
        %2579 = vmatprep.subr.bf16.mxu0 0
        %2580 = vmatpush1.bf16.msra.mxu0 0
        %2581 = vmatprep.subr.bf16.mxu0 0
        %2582 = vmatpush1.bf16.msra.mxu0 0
        %2583 = vmatprep.subr.bf16.mxu0 0
        %2584 = vmatpush1.bf16.msra.mxu0 0
        %2585 = vmatprep.subr.bf16.mxu0 0
        %2586 = vmatpush1.bf16.msra.mxu0 0
        %2587 = vmatprep.mubr.bf16.mxu0 0
        %2588 = vmatmul.mubr.bf16.gmra.mrb[0].mxu0 %v2389
        %v2589 = vpop.f32.mrb[0].mxu0
        %v2590 = vadd.f32 %v1247, %v2589
        %v2591 = vpop.f32.mrb[0].mxu0
        %v2592 = vadd.f32 %v1251, %v2591
        %v2593 = vpop.f32.mrb[0].mxu0
        %v2594 = vpop.f32.mrb[0].mxu0
        %2595 = vdwg.mxu0
        %2596 = vmatprep.subr.bf16.mxu0 %v2063
        %2597 = vmatpush1.bf16.msra.mxu0 %v2062
        %2598 = vmatprep.subr.bf16.mxu0 %v2147
        %2599 = vmatpush1.bf16.msra.mxu0 %v2146
        %2600 = vmatprep.subr.bf16.mxu0 0
        %2601 = vmatpush1.bf16.msra.mxu0 0
        %2602 = vmatprep.subr.bf16.mxu0 0
        %2603 = vmatpush1.bf16.msra.mxu0 0
        %2604 = vmatprep.subr.bf16.mxu0 0
        %2605 = vmatpush1.bf16.msra.mxu0 0
        %2606 = vmatprep.subr.bf16.mxu0 0
        %2607 = vmatpush1.bf16.msra.mxu0 0
        %2608 = vmatprep.subr.bf16.mxu0 0
        %2609 = vmatpush1.bf16.msra.mxu0 0
        %2610 = vmatprep.subr.bf16.mxu0 0
        %2611 = vmatpush1.bf16.msra.mxu0 0
        %2612 = vmatprep.subr.bf16.mxu0 0
        %2613 = vmatpush1.bf16.msra.mxu0 0
        %2614 = vmatprep.subr.bf16.mxu0 0
        %2615 = vmatpush1.bf16.msra.mxu0 0
        %2616 = vmatprep.subr.bf16.mxu0 0
        %2617 = vmatpush1.bf16.msra.mxu0 0
        %2618 = vmatprep.subr.bf16.mxu0 0
        %2619 = vmatpush1.bf16.msra.mxu0 0
        %2620 = vmatprep.subr.bf16.mxu0 0
        %2621 = vmatpush1.bf16.msra.mxu0 0
        %2622 = vmatprep.subr.bf16.mxu0 0
        %2623 = vmatpush1.bf16.msra.mxu0 0
        %2624 = vmatprep.subr.bf16.mxu0 0
        %2625 = vmatpush1.bf16.msra.mxu0 0
        %2626 = vmatprep.subr.bf16.mxu0 0
        %2627 = vmatpush1.bf16.msra.mxu0 0
        %2628 = vmatprep.mubr.bf16.mxu0 0
        %2629 = vmatmul.mubr.bf16.gmra.mrb[0].mxu0 %v2389
        %v2630 = vpop.f32.mrb[0].mxu0
        %v2631 = vadd.f32 %v1255, %v2630
        %v2632 = vpop.f32.mrb[0].mxu0
        %v2633 = vadd.f32 %v1259, %v2632
        %v2634 = vpop.f32.mrb[0].mxu0
        %v2635 = vpop.f32.mrb[0].mxu0
        %2636 = vdwg.mxu0
        %2637 = vmatprep.subr.bf16.mxu0 %v2065
        %2638 = vmatpush1.bf16.msra.mxu0 %v2064
        %2639 = vmatprep.subr.bf16.mxu0 %v2149
        %2640 = vmatpush1.bf16.msra.mxu0 %v2148
        %2641 = vmatprep.subr.bf16.mxu0 0
        %2642 = vmatpush1.bf16.msra.mxu0 0
        %2643 = vmatprep.subr.bf16.mxu0 0
        %2644 = vmatpush1.bf16.msra.mxu0 0
        %2645 = vmatprep.subr.bf16.mxu0 0
        %2646 = vmatpush1.bf16.msra.mxu0 0
        %2647 = vmatprep.subr.bf16.mxu0 0
        %2648 = vmatpush1.bf16.msra.mxu0 0
        %2649 = vmatprep.subr.bf16.mxu0 0
        %2650 = vmatpush1.bf16.msra.mxu0 0
        %2651 = vmatprep.subr.bf16.mxu0 0
        %2652 = vmatpush1.bf16.msra.mxu0 0
        %2653 = vmatprep.subr.bf16.mxu0 0
        %2654 = vmatpush1.bf16.msra.mxu0 0
        %2655 = vmatprep.subr.bf16.mxu0 0
        %2656 = vmatpush1.bf16.msra.mxu0 0
        %2657 = vmatprep.subr.bf16.mxu0 0
        %2658 = vmatpush1.bf16.msra.mxu0 0
        %2659 = vmatprep.subr.bf16.mxu0 0
        %2660 = vmatpush1.bf16.msra.mxu0 0
        %2661 = vmatprep.subr.bf16.mxu0 0
        %2662 = vmatpush1.bf16.msra.mxu0 0
        %2663 = vmatprep.subr.bf16.mxu0 0
        %2664 = vmatpush1.bf16.msra.mxu0 0
        %2665 = vmatprep.subr.bf16.mxu0 0
        %2666 = vmatpush1.bf16.msra.mxu0 0
        %2667 = vmatprep.subr.bf16.mxu0 0
        %2668 = vmatpush1.bf16.msra.mxu0 0
        %2669 = vmatprep.mubr.bf16.mxu0 0
        %2670 = vmatmul.mubr.bf16.gmra.mrb[0].mxu0 %v2389
        %v2671 = vpop.f32.mrb[0].mxu0
        %v2672 = vadd.f32 %v1263, %v2671
        %v2673 = vpop.f32.mrb[0].mxu0
        %v2674 = vadd.f32 %v1267, %v2673
        %v2675 = vpop.f32.mrb[0].mxu0
        %v2676 = vpop.f32.mrb[0].mxu0
        %2677 = vdwg.mxu0
        %2678 = vmatprep.subr.bf16.mxu0 %v2067
        %2679 = vmatpush1.bf16.msra.mxu0 %v2066
        %2680 = vmatprep.subr.bf16.mxu0 %v2151
        %2681 = vmatpush1.bf16.msra.mxu0 %v2150
        %2682 = vmatprep.subr.bf16.mxu0 0
        %2683 = vmatpush1.bf16.msra.mxu0 0
        %2684 = vmatprep.subr.bf16.mxu0 0
        %2685 = vmatpush1.bf16.msra.mxu0 0
        %2686 = vmatprep.subr.bf16.mxu0 0
        %2687 = vmatpush1.bf16.msra.mxu0 0
        %2688 = vmatprep.subr.bf16.mxu0 0
        %2689 = vmatpush1.bf16.msra.mxu0 0
        %2690 = vmatprep.subr.bf16.mxu0 0
        %2691 = vmatpush1.bf16.msra.mxu0 0
        %2692 = vmatprep.subr.bf16.mxu0 0
        %2693 = vmatpush1.bf16.msra.mxu0 0
        %2694 = vmatprep.subr.bf16.mxu0 0
        %2695 = vmatpush1.bf16.msra.mxu0 0
        %2696 = vmatprep.subr.bf16.mxu0 0
        %2697 = vmatpush1.bf16.msra.mxu0 0
        %2698 = vmatprep.subr.bf16.mxu0 0
        %2699 = vmatpush1.bf16.msra.mxu0 0
        %2700 = vmatprep.subr.bf16.mxu0 0
        %2701 = vmatpush1.bf16.msra.mxu0 0
        %2702 = vmatprep.subr.bf16.mxu0 0
        %2703 = vmatpush1.bf16.msra.mxu0 0
        %2704 = vmatprep.subr.bf16.mxu0 0
        %2705 = vmatpush1.bf16.msra.mxu0 0
        %2706 = vmatprep.subr.bf16.mxu0 0
        %2707 = vmatpush1.bf16.msra.mxu0 0
        %2708 = vmatprep.subr.bf16.mxu0 0
        %2709 = vmatpush1.bf16.msra.mxu0 0
        %2710 = vmatprep.mubr.bf16.mxu0 0
        %2711 = vmatmul.mubr.bf16.gmra.mrb[0].mxu0 %v2389
        %v2712 = vpop.f32.mrb[0].mxu0
        %v2713 = vadd.f32 %v1271, %v2712
        %v2714 = vpop.f32.mrb[0].mxu0
        %v2715 = vadd.f32 %v1275, %v2714
        %v2716 = vpop.f32.mrb[0].mxu0
        %v2717 = vpop.f32.mrb[0].mxu0
        %2718 = vdwg.mxu0
        %2719 = vmatprep.subr.bf16.mxu0 %v2069
        %2720 = vmatpush1.bf16.msra.mxu0 %v2068
        %2721 = vmatprep.subr.bf16.mxu0 %v2153
        %2722 = vmatpush1.bf16.msra.mxu0 %v2152
        %2723 = vmatprep.subr.bf16.mxu0 0
        %2724 = vmatpush1.bf16.msra.mxu0 0
        %2725 = vmatprep.subr.bf16.mxu0 0
        %2726 = vmatpush1.bf16.msra.mxu0 0
        %2727 = vmatprep.subr.bf16.mxu0 0
        %2728 = vmatpush1.bf16.msra.mxu0 0
        %2729 = vmatprep.subr.bf16.mxu0 0
        %2730 = vmatpush1.bf16.msra.mxu0 0
        %2731 = vmatprep.subr.bf16.mxu0 0
        %2732 = vmatpush1.bf16.msra.mxu0 0
        %2733 = vmatprep.subr.bf16.mxu0 0
        %2734 = vmatpush1.bf16.msra.mxu0 0
        %2735 = vmatprep.subr.bf16.mxu0 0
        %2736 = vmatpush1.bf16.msra.mxu0 0
        %2737 = vmatprep.subr.bf16.mxu0 0
        %2738 = vmatpush1.bf16.msra.mxu0 0
        %2739 = vmatprep.subr.bf16.mxu0 0
        %2740 = vmatpush1.bf16.msra.mxu0 0
        %2741 = vmatprep.subr.bf16.mxu0 0
        %2742 = vmatpush1.bf16.msra.mxu0 0
        %2743 = vmatprep.subr.bf16.mxu0 0
        %2744 = vmatpush1.bf16.msra.mxu0 0
        %2745 = vmatprep.subr.bf16.mxu0 0
        %2746 = vmatpush1.bf16.msra.mxu0 0
        %2747 = vmatprep.subr.bf16.mxu0 0
        %2748 = vmatpush1.bf16.msra.mxu0 0
        %2749 = vmatprep.subr.bf16.mxu0 0
        %2750 = vmatpush1.bf16.msra.mxu0 0
        %2751 = vmatprep.mubr.bf16.mxu0 0
        %2752 = vmatmul.mubr.bf16.gmra.mrb[0].mxu0 %v2389
        %v2753 = vpop.f32.mrb[0].mxu0
        %v2754 = vadd.f32 %v1279, %v2753
        %v2755 = vpop.f32.mrb[0].mxu0
        %v2756 = vadd.f32 %v1283, %v2755
        %v2757 = vpop.f32.mrb[0].mxu0
        %v2758 = vpop.f32.mrb[0].mxu0
        %2759 = vdwg.mxu0
        %2760 = vmatprep.subr.bf16.mxu0 %v2071
        %2761 = vmatpush1.bf16.msra.mxu0 %v2070
        %2762 = vmatprep.subr.bf16.mxu0 %v2155
        %2763 = vmatpush1.bf16.msra.mxu0 %v2154
        %2764 = vmatprep.subr.bf16.mxu0 0
        %2765 = vmatpush1.bf16.msra.mxu0 0
        %2766 = vmatprep.subr.bf16.mxu0 0
        %2767 = vmatpush1.bf16.msra.mxu0 0
        %2768 = vmatprep.subr.bf16.mxu0 0
        %2769 = vmatpush1.bf16.msra.mxu0 0
        %2770 = vmatprep.subr.bf16.mxu0 0
        %2771 = vmatpush1.bf16.msra.mxu0 0
        %2772 = vmatprep.subr.bf16.mxu0 0
        %2773 = vmatpush1.bf16.msra.mxu0 0
        %2774 = vmatprep.subr.bf16.mxu0 0
        %2775 = vmatpush1.bf16.msra.mxu0 0
        %2776 = vmatprep.subr.bf16.mxu0 0
        %2777 = vmatpush1.bf16.msra.mxu0 0
        %2778 = vmatprep.subr.bf16.mxu0 0
        %2779 = vmatpush1.bf16.msra.mxu0 0
        %2780 = vmatprep.subr.bf16.mxu0 0
        %2781 = vmatpush1.bf16.msra.mxu0 0
        %2782 = vmatprep.subr.bf16.mxu0 0
        %2783 = vmatpush1.bf16.msra.mxu0 0
        %2784 = vmatprep.subr.bf16.mxu0 0
        %2785 = vmatpush1.bf16.msra.mxu0 0
        %2786 = vmatprep.subr.bf16.mxu0 0
        %2787 = vmatpush1.bf16.msra.mxu0 0
        %2788 = vmatprep.subr.bf16.mxu0 0
        %2789 = vmatpush1.bf16.msra.mxu0 0
        %2790 = vmatprep.subr.bf16.mxu0 0
        %2791 = vmatpush1.bf16.msra.mxu0 0
        %2792 = vmatprep.mubr.bf16.mxu0 0
        %2793 = vmatmul.mubr.bf16.gmra.mrb[0].mxu0 %v2389
        %v2794 = vpop.f32.mrb[0].mxu0
        %v2795 = vadd.f32 %v1287, %v2794
        %v2796 = vpop.f32.mrb[0].mxu0
        %v2797 = vadd.f32 %v1291, %v2796
        %v2798 = vpop.f32.mrb[0].mxu0
        %v2799 = vpop.f32.mrb[0].mxu0
        %2800 = vdwg.mxu0
        %2801 = vmatprep.subr.bf16.mxu0 %v2073
        %2802 = vmatpush1.bf16.msra.mxu0 %v2072
        %2803 = vmatprep.subr.bf16.mxu0 %v2157
        %2804 = vmatpush1.bf16.msra.mxu0 %v2156
        %2805 = vmatprep.subr.bf16.mxu0 0
        %2806 = vmatpush1.bf16.msra.mxu0 0
        %2807 = vmatprep.subr.bf16.mxu0 0
        %2808 = vmatpush1.bf16.msra.mxu0 0
        %2809 = vmatprep.subr.bf16.mxu0 0
        %2810 = vmatpush1.bf16.msra.mxu0 0
        %2811 = vmatprep.subr.bf16.mxu0 0
        %2812 = vmatpush1.bf16.msra.mxu0 0
        %2813 = vmatprep.subr.bf16.mxu0 0
        %2814 = vmatpush1.bf16.msra.mxu0 0
        %2815 = vmatprep.subr.bf16.mxu0 0
        %2816 = vmatpush1.bf16.msra.mxu0 0
        %2817 = vmatprep.subr.bf16.mxu0 0
        %2818 = vmatpush1.bf16.msra.mxu0 0
        %2819 = vmatprep.subr.bf16.mxu0 0
        %2820 = vmatpush1.bf16.msra.mxu0 0
        %2821 = vmatprep.subr.bf16.mxu0 0
        %2822 = vmatpush1.bf16.msra.mxu0 0
        %2823 = vmatprep.subr.bf16.mxu0 0
        %2824 = vmatpush1.bf16.msra.mxu0 0
        %2825 = vmatprep.subr.bf16.mxu0 0
        %2826 = vmatpush1.bf16.msra.mxu0 0
        %2827 = vmatprep.subr.bf16.mxu0 0
        %2828 = vmatpush1.bf16.msra.mxu0 0
        %2829 = vmatprep.subr.bf16.mxu0 0
        %2830 = vmatpush1.bf16.msra.mxu0 0
        %2831 = vmatprep.subr.bf16.mxu0 0
        %2832 = vmatpush1.bf16.msra.mxu0 0
        %2833 = vmatprep.mubr.bf16.mxu0 0
        %2834 = vmatmul.mubr.bf16.gmra.mrb[0].mxu0 %v2389
        %v2835 = vpop.f32.mrb[0].mxu0
        %v2836 = vadd.f32 %v1295, %v2835
        %v2837 = vpop.f32.mrb[0].mxu0
        %v2838 = vadd.f32 %v1299, %v2837
        %v2839 = vpop.f32.mrb[0].mxu0
        %v2840 = vpop.f32.mrb[0].mxu0
        %2841 = vdwg.mxu0
        %2842 = vmatprep.subr.bf16.mxu0 %v2075
        %2843 = vmatpush1.bf16.msra.mxu0 %v2074
        %2844 = vmatprep.subr.bf16.mxu0 %v2159
        %2845 = vmatpush1.bf16.msra.mxu0 %v2158
        %2846 = vmatprep.subr.bf16.mxu0 0
        %2847 = vmatpush1.bf16.msra.mxu0 0
        %2848 = vmatprep.subr.bf16.mxu0 0
        %2849 = vmatpush1.bf16.msra.mxu0 0
        %2850 = vmatprep.subr.bf16.mxu0 0
        %2851 = vmatpush1.bf16.msra.mxu0 0
        %2852 = vmatprep.subr.bf16.mxu0 0
        %2853 = vmatpush1.bf16.msra.mxu0 0
        %2854 = vmatprep.subr.bf16.mxu0 0
        %2855 = vmatpush1.bf16.msra.mxu0 0
        %2856 = vmatprep.subr.bf16.mxu0 0
        %2857 = vmatpush1.bf16.msra.mxu0 0
        %2858 = vmatprep.subr.bf16.mxu0 0
        %2859 = vmatpush1.bf16.msra.mxu0 0
        %2860 = vmatprep.subr.bf16.mxu0 0
        %2861 = vmatpush1.bf16.msra.mxu0 0
        %2862 = vmatprep.subr.bf16.mxu0 0
        %2863 = vmatpush1.bf16.msra.mxu0 0
        %2864 = vmatprep.subr.bf16.mxu0 0
        %2865 = vmatpush1.bf16.msra.mxu0 0
        %2866 = vmatprep.subr.bf16.mxu0 0
        %2867 = vmatpush1.bf16.msra.mxu0 0
        %2868 = vmatprep.subr.bf16.mxu0 0
        %2869 = vmatpush1.bf16.msra.mxu0 0
        %2870 = vmatprep.subr.bf16.mxu0 0
        %2871 = vmatpush1.bf16.msra.mxu0 0
        %2872 = vmatprep.subr.bf16.mxu0 0
        %2873 = vmatpush1.bf16.msra.mxu0 0
        %2874 = vmatprep.mubr.bf16.mxu0 0
        %2875 = vmatmul.mubr.bf16.gmra.mrb[0].mxu0 %v2389
        %v2876 = vpop.f32.mrb[0].mxu0
        %v2877 = vadd.f32 %v1303, %v2876
        %v2878 = vpop.f32.mrb[0].mxu0
        %v2879 = vadd.f32 %v1307, %v2878
        %v2880 = vpop.f32.mrb[0].mxu0
        %v2881 = vpop.f32.mrb[0].mxu0
        %2882 = vdwg.mxu0
        %2883 = vmatprep.subr.bf16.mxu0 %v2077
        %2884 = vmatpush1.bf16.msra.mxu0 %v2076
        %2885 = vmatprep.subr.bf16.mxu0 %v2161
        %2886 = vmatpush1.bf16.msra.mxu0 %v2160
        %2887 = vmatprep.subr.bf16.mxu0 0
        %2888 = vmatpush1.bf16.msra.mxu0 0
        %2889 = vmatprep.subr.bf16.mxu0 0
        %2890 = vmatpush1.bf16.msra.mxu0 0
        %2891 = vmatprep.subr.bf16.mxu0 0
        %2892 = vmatpush1.bf16.msra.mxu0 0
        %2893 = vmatprep.subr.bf16.mxu0 0
        %2894 = vmatpush1.bf16.msra.mxu0 0
        %2895 = vmatprep.subr.bf16.mxu0 0
        %2896 = vmatpush1.bf16.msra.mxu0 0
        %2897 = vmatprep.subr.bf16.mxu0 0
        %2898 = vmatpush1.bf16.msra.mxu0 0
        %2899 = vmatprep.subr.bf16.mxu0 0
        %2900 = vmatpush1.bf16.msra.mxu0 0
        %2901 = vmatprep.subr.bf16.mxu0 0
        %2902 = vmatpush1.bf16.msra.mxu0 0
        %2903 = vmatprep.subr.bf16.mxu0 0
        %2904 = vmatpush1.bf16.msra.mxu0 0
        %2905 = vmatprep.subr.bf16.mxu0 0
        %2906 = vmatpush1.bf16.msra.mxu0 0
        %2907 = vmatprep.subr.bf16.mxu0 0
        %2908 = vmatpush1.bf16.msra.mxu0 0
        %2909 = vmatprep.subr.bf16.mxu0 0
        %2910 = vmatpush1.bf16.msra.mxu0 0
        %2911 = vmatprep.subr.bf16.mxu0 0
        %2912 = vmatpush1.bf16.msra.mxu0 0
        %2913 = vmatprep.subr.bf16.mxu0 0
        %2914 = vmatpush1.bf16.msra.mxu0 0
        %2915 = vmatprep.mubr.bf16.mxu0 0
        %2916 = vmatmul.mubr.bf16.gmra.mrb[0].mxu0 %v2389
        %v2917 = vpop.f32.mrb[0].mxu0
        %v2918 = vadd.f32 %v1311, %v2917
        %v2919 = vpop.f32.mrb[0].mxu0
        %v2920 = vadd.f32 %v1315, %v2919
        %v2921 = vpop.f32.mrb[0].mxu0
        %v2922 = vpop.f32.mrb[0].mxu0
        %2923 = vdwg.mxu0
        %2924 = vmatprep.subr.bf16.mxu0 %v2079
        %2925 = vmatpush1.bf16.msra.mxu0 %v2078
        %2926 = vmatprep.subr.bf16.mxu0 %v2163
        %2927 = vmatpush1.bf16.msra.mxu0 %v2162
        %2928 = vmatprep.subr.bf16.mxu0 0
        %2929 = vmatpush1.bf16.msra.mxu0 0
        %2930 = vmatprep.subr.bf16.mxu0 0
        %2931 = vmatpush1.bf16.msra.mxu0 0
        %2932 = vmatprep.subr.bf16.mxu0 0
        %2933 = vmatpush1.bf16.msra.mxu0 0
        %2934 = vmatprep.subr.bf16.mxu0 0
        %2935 = vmatpush1.bf16.msra.mxu0 0
        %2936 = vmatprep.subr.bf16.mxu0 0
        %2937 = vmatpush1.bf16.msra.mxu0 0
        %2938 = vmatprep.subr.bf16.mxu0 0
        %2939 = vmatpush1.bf16.msra.mxu0 0
        %2940 = vmatprep.subr.bf16.mxu0 0
        %2941 = vmatpush1.bf16.msra.mxu0 0
        %2942 = vmatprep.subr.bf16.mxu0 0
        %2943 = vmatpush1.bf16.msra.mxu0 0
        %2944 = vmatprep.subr.bf16.mxu0 0
        %2945 = vmatpush1.bf16.msra.mxu0 0
        %2946 = vmatprep.subr.bf16.mxu0 0
        %2947 = vmatpush1.bf16.msra.mxu0 0
        %2948 = vmatprep.subr.bf16.mxu0 0
        %2949 = vmatpush1.bf16.msra.mxu0 0
        %2950 = vmatprep.subr.bf16.mxu0 0
        %2951 = vmatpush1.bf16.msra.mxu0 0
        %2952 = vmatprep.subr.bf16.mxu0 0
        %2953 = vmatpush1.bf16.msra.mxu0 0
        %2954 = vmatprep.subr.bf16.mxu0 0
        %2955 = vmatpush1.bf16.msra.mxu0 0
        %2956 = vmatprep.mubr.bf16.mxu0 0
        %2957 = vmatmul.mubr.bf16.gmra.mrb[0].mxu0 %v2389
        %v2958 = vpop.f32.mrb[0].mxu0
        %v2959 = vadd.f32 %v1319, %v2958
        %v2960 = vpop.f32.mrb[0].mxu0
        %v2961 = vadd.f32 %v1323, %v2960
        %v2962 = vpop.f32.mrb[0].mxu0
        %v2963 = vpop.f32.mrb[0].mxu0
        %2964 = vdwg.mxu0
        %2965 = vmatprep.subr.bf16.mxu0 %v2081
        %2966 = vmatpush1.bf16.msra.mxu0 %v2080
        %2967 = vmatprep.subr.bf16.mxu0 %v2165
        %2968 = vmatpush1.bf16.msra.mxu0 %v2164
        %2969 = vmatprep.subr.bf16.mxu0 0
        %2970 = vmatpush1.bf16.msra.mxu0 0
        %2971 = vmatprep.subr.bf16.mxu0 0
        %2972 = vmatpush1.bf16.msra.mxu0 0
        %2973 = vmatprep.subr.bf16.mxu0 0
        %2974 = vmatpush1.bf16.msra.mxu0 0
        %2975 = vmatprep.subr.bf16.mxu0 0
        %2976 = vmatpush1.bf16.msra.mxu0 0
        %2977 = vmatprep.subr.bf16.mxu0 0
        %2978 = vmatpush1.bf16.msra.mxu0 0
        %2979 = vmatprep.subr.bf16.mxu0 0
        %2980 = vmatpush1.bf16.msra.mxu0 0
        %2981 = vmatprep.subr.bf16.mxu0 0
        %2982 = vmatpush1.bf16.msra.mxu0 0
        %2983 = vmatprep.subr.bf16.mxu0 0
        %2984 = vmatpush1.bf16.msra.mxu0 0
        %2985 = vmatprep.subr.bf16.mxu0 0
        %2986 = vmatpush1.bf16.msra.mxu0 0
        %2987 = vmatprep.subr.bf16.mxu0 0
        %2988 = vmatpush1.bf16.msra.mxu0 0
        %2989 = vmatprep.subr.bf16.mxu0 0
        %2990 = vmatpush1.bf16.msra.mxu0 0
        %2991 = vmatprep.subr.bf16.mxu0 0
        %2992 = vmatpush1.bf16.msra.mxu0 0
        %2993 = vmatprep.subr.bf16.mxu0 0
        %2994 = vmatpush1.bf16.msra.mxu0 0
        %2995 = vmatprep.subr.bf16.mxu0 0
        %2996 = vmatpush1.bf16.msra.mxu0 0
        %2997 = vmatprep.mubr.bf16.mxu0 0
        %2998 = vmatmul.mubr.bf16.gmra.mrb[0].mxu0 %v2389
        %v2999 = vpop.f32.mrb[0].mxu0
        %v3000 = vadd.f32 %v1327, %v2999
        %v3001 = vpop.f32.mrb[0].mxu0
        %v3002 = vadd.f32 %v1331, %v3001
        %v3003 = vpop.f32.mrb[0].mxu0
        %v3004 = vpop.f32.mrb[0].mxu0
        %3005 = vdwg.mxu0
        %3006 = vmatprep.subr.bf16.mxu0 %v2083
        %3007 = vmatpush1.bf16.msra.mxu0 %v2082
        %3008 = vmatprep.subr.bf16.mxu0 %v2167
        %3009 = vmatpush1.bf16.msra.mxu0 %v2166
        %3010 = vmatprep.subr.bf16.mxu0 0
        %3011 = vmatpush1.bf16.msra.mxu0 0
        %3012 = vmatprep.subr.bf16.mxu0 0
        %3013 = vmatpush1.bf16.msra.mxu0 0
        %3014 = vmatprep.subr.bf16.mxu0 0
        %3015 = vmatpush1.bf16.msra.mxu0 0
        %3016 = vmatprep.subr.bf16.mxu0 0
        %3017 = vmatpush1.bf16.msra.mxu0 0
        %3018 = vmatprep.subr.bf16.mxu0 0
        %3019 = vmatpush1.bf16.msra.mxu0 0
        %3020 = vmatprep.subr.bf16.mxu0 0
        %3021 = vmatpush1.bf16.msra.mxu0 0
        %3022 = vmatprep.subr.bf16.mxu0 0
        %3023 = vmatpush1.bf16.msra.mxu0 0
        %3024 = vmatprep.subr.bf16.mxu0 0
        %3025 = vmatpush1.bf16.msra.mxu0 0
        %3026 = vmatprep.subr.bf16.mxu0 0
        %3027 = vmatpush1.bf16.msra.mxu0 0
        %3028 = vmatprep.subr.bf16.mxu0 0
        %3029 = vmatpush1.bf16.msra.mxu0 0
        %3030 = vmatprep.subr.bf16.mxu0 0
        %3031 = vmatpush1.bf16.msra.mxu0 0
        %3032 = vmatprep.subr.bf16.mxu0 0
        %3033 = vmatpush1.bf16.msra.mxu0 0
        %3034 = vmatprep.subr.bf16.mxu0 0
        %3035 = vmatpush1.bf16.msra.mxu0 0
        %3036 = vmatprep.subr.bf16.mxu0 0
        %3037 = vmatpush1.bf16.msra.mxu0 0
        %3038 = vmatprep.mubr.bf16.mxu0 0
        %3039 = vmatmul.mubr.bf16.gmra.mrb[0].mxu0 %v2389
        %v3040 = vpop.f32.mrb[0].mxu0
        %v3041 = vadd.f32 %v1335, %v3040
        %v3042 = vpop.f32.mrb[0].mxu0
        %v3043 = vadd.f32 %v1339, %v3042
        %v3044 = vpop.f32.mrb[0].mxu0
        %v3045 = vpop.f32.mrb[0].mxu0
        %3046 = vdwg.mxu0
        %3047 = vmatprep.subr.bf16.mxu0 %v2085
        %3048 = vmatpush1.bf16.msra.mxu0 %v2084
        %3049 = vmatprep.subr.bf16.mxu0 %v2169
        %3050 = vmatpush1.bf16.msra.mxu0 %v2168
        %3051 = vmatprep.subr.bf16.mxu0 0
        %3052 = vmatpush1.bf16.msra.mxu0 0
        %3053 = vmatprep.subr.bf16.mxu0 0
        %3054 = vmatpush1.bf16.msra.mxu0 0
        %3055 = vmatprep.subr.bf16.mxu0 0
        %3056 = vmatpush1.bf16.msra.mxu0 0
        %3057 = vmatprep.subr.bf16.mxu0 0
        %3058 = vmatpush1.bf16.msra.mxu0 0
        %3059 = vmatprep.subr.bf16.mxu0 0
        %3060 = vmatpush1.bf16.msra.mxu0 0
        %3061 = vmatprep.subr.bf16.mxu0 0
        %3062 = vmatpush1.bf16.msra.mxu0 0
        %3063 = vmatprep.subr.bf16.mxu0 0
        %3064 = vmatpush1.bf16.msra.mxu0 0
        %3065 = vmatprep.subr.bf16.mxu0 0
        %3066 = vmatpush1.bf16.msra.mxu0 0
        %3067 = vmatprep.subr.bf16.mxu0 0
        %3068 = vmatpush1.bf16.msra.mxu0 0
        %3069 = vmatprep.subr.bf16.mxu0 0
        %3070 = vmatpush1.bf16.msra.mxu0 0
        %3071 = vmatprep.subr.bf16.mxu0 0
        %3072 = vmatpush1.bf16.msra.mxu0 0
        %3073 = vmatprep.subr.bf16.mxu0 0
        %3074 = vmatpush1.bf16.msra.mxu0 0
        %3075 = vmatprep.subr.bf16.mxu0 0
        %3076 = vmatpush1.bf16.msra.mxu0 0
        %3077 = vmatprep.subr.bf16.mxu0 0
        %3078 = vmatpush1.bf16.msra.mxu0 0
        %3079 = vmatprep.mubr.bf16.mxu0 0
        %3080 = vmatmul.mubr.bf16.gmra.mrb[0].mxu0 %v2389
        %v3081 = vpop.f32.mrb[0].mxu0
        %v3082 = vadd.f32 %v1343, %v3081
        %v3083 = vpop.f32.mrb[0].mxu0
        %v3084 = vadd.f32 %v1347, %v3083
        %v3085 = vpop.f32.mrb[0].mxu0
        %v3086 = vpop.f32.mrb[0].mxu0
        %3087 = vdwg.mxu0
        %3088 = vmatprep.subr.bf16.mxu0 %v2087
        %3089 = vmatpush1.bf16.msra.mxu0 %v2086
        %3090 = vmatprep.subr.bf16.mxu0 %v2171
        %3091 = vmatpush1.bf16.msra.mxu0 %v2170
        %3092 = vmatprep.subr.bf16.mxu0 0
        %3093 = vmatpush1.bf16.msra.mxu0 0
        %3094 = vmatprep.subr.bf16.mxu0 0
        %3095 = vmatpush1.bf16.msra.mxu0 0
        %3096 = vmatprep.subr.bf16.mxu0 0
        %3097 = vmatpush1.bf16.msra.mxu0 0
        %3098 = vmatprep.subr.bf16.mxu0 0
        %3099 = vmatpush1.bf16.msra.mxu0 0
        %3100 = vmatprep.subr.bf16.mxu0 0
        %3101 = vmatpush1.bf16.msra.mxu0 0
        %3102 = vmatprep.subr.bf16.mxu0 0
        %3103 = vmatpush1.bf16.msra.mxu0 0
        %3104 = vmatprep.subr.bf16.mxu0 0
        %3105 = vmatpush1.bf16.msra.mxu0 0
        %3106 = vmatprep.subr.bf16.mxu0 0
        %3107 = vmatpush1.bf16.msra.mxu0 0
        %3108 = vmatprep.subr.bf16.mxu0 0
        %3109 = vmatpush1.bf16.msra.mxu0 0
        %3110 = vmatprep.subr.bf16.mxu0 0
        %3111 = vmatpush1.bf16.msra.mxu0 0
        %3112 = vmatprep.subr.bf16.mxu0 0
        %3113 = vmatpush1.bf16.msra.mxu0 0
        %3114 = vmatprep.subr.bf16.mxu0 0
        %3115 = vmatpush1.bf16.msra.mxu0 0
        %3116 = vmatprep.subr.bf16.mxu0 0
        %3117 = vmatpush1.bf16.msra.mxu0 0
        %3118 = vmatprep.subr.bf16.mxu0 0
        %3119 = vmatpush1.bf16.msra.mxu0 0
        %3120 = vmatprep.mubr.bf16.mxu0 0
        %3121 = vmatmul.mubr.bf16.gmra.mrb[0].mxu0 %v2389
        %v3122 = vpop.f32.mrb[0].mxu0
        %v3123 = vadd.f32 %v1351, %v3122
        %v3124 = vpop.f32.mrb[0].mxu0
        %v3125 = vadd.f32 %v1355, %v3124
        %v3126 = vpop.f32.mrb[0].mxu0
        %v3127 = vpop.f32.mrb[0].mxu0
        %3128 = vdwg.mxu0
        %3129 = vmatprep.subr.bf16.mxu0 %v2089
        %3130 = vmatpush1.bf16.msra.mxu0 %v2088
        %3131 = vmatprep.subr.bf16.mxu0 %v2173
        %3132 = vmatpush1.bf16.msra.mxu0 %v2172
        %3133 = vmatprep.subr.bf16.mxu0 0
        %3134 = vmatpush1.bf16.msra.mxu0 0
        %3135 = vmatprep.subr.bf16.mxu0 0
        %3136 = vmatpush1.bf16.msra.mxu0 0
        %3137 = vmatprep.subr.bf16.mxu0 0
        %3138 = vmatpush1.bf16.msra.mxu0 0
        %3139 = vmatprep.subr.bf16.mxu0 0
        %3140 = vmatpush1.bf16.msra.mxu0 0
        %3141 = vmatprep.subr.bf16.mxu0 0
        %3142 = vmatpush1.bf16.msra.mxu0 0
        %3143 = vmatprep.subr.bf16.mxu0 0
        %3144 = vmatpush1.bf16.msra.mxu0 0
        %3145 = vmatprep.subr.bf16.mxu0 0
        %3146 = vmatpush1.bf16.msra.mxu0 0
        %3147 = vmatprep.subr.bf16.mxu0 0
        %3148 = vmatpush1.bf16.msra.mxu0 0
        %3149 = vmatprep.subr.bf16.mxu0 0
        %3150 = vmatpush1.bf16.msra.mxu0 0
        %3151 = vmatprep.subr.bf16.mxu0 0
        %3152 = vmatpush1.bf16.msra.mxu0 0
        %3153 = vmatprep.subr.bf16.mxu0 0
        %3154 = vmatpush1.bf16.msra.mxu0 0
        %3155 = vmatprep.subr.bf16.mxu0 0
        %3156 = vmatpush1.bf16.msra.mxu0 0
        %3157 = vmatprep.subr.bf16.mxu0 0
        %3158 = vmatpush1.bf16.msra.mxu0 0
        %3159 = vmatprep.subr.bf16.mxu0 0
        %3160 = vmatpush1.bf16.msra.mxu0 0
        %3161 = vmatprep.mubr.bf16.mxu0 0
        %3162 = vmatmul.mubr.bf16.gmra.mrb[0].mxu0 %v2389
        %v3163 = vpop.f32.mrb[0].mxu0
        %v3164 = vadd.f32 %v1359, %v3163
        %v3165 = vpop.f32.mrb[0].mxu0
        %v3166 = vadd.f32 %v1363, %v3165
        %v3167 = vpop.f32.mrb[0].mxu0
        %v3168 = vpop.f32.mrb[0].mxu0
        %3169 = vdwg.mxu0
        %3170 = vmatprep.subr.bf16.mxu0 %v2091
        %3171 = vmatpush1.bf16.msra.mxu0 %v2090
        %3172 = vmatprep.subr.bf16.mxu0 %v2175
        %3173 = vmatpush1.bf16.msra.mxu0 %v2174
        %3174 = vmatprep.subr.bf16.mxu0 0
        %3175 = vmatpush1.bf16.msra.mxu0 0
        %3176 = vmatprep.subr.bf16.mxu0 0
        %3177 = vmatpush1.bf16.msra.mxu0 0
        %3178 = vmatprep.subr.bf16.mxu0 0
        %3179 = vmatpush1.bf16.msra.mxu0 0
        %3180 = vmatprep.subr.bf16.mxu0 0
        %3181 = vmatpush1.bf16.msra.mxu0 0
        %3182 = vmatprep.subr.bf16.mxu0 0
        %3183 = vmatpush1.bf16.msra.mxu0 0
        %3184 = vmatprep.subr.bf16.mxu0 0
        %3185 = vmatpush1.bf16.msra.mxu0 0
        %3186 = vmatprep.subr.bf16.mxu0 0
        %3187 = vmatpush1.bf16.msra.mxu0 0
        %3188 = vmatprep.subr.bf16.mxu0 0
        %3189 = vmatpush1.bf16.msra.mxu0 0
        %3190 = vmatprep.subr.bf16.mxu0 0
        %3191 = vmatpush1.bf16.msra.mxu0 0
        %3192 = vmatprep.subr.bf16.mxu0 0
        %3193 = vmatpush1.bf16.msra.mxu0 0
        %3194 = vmatprep.subr.bf16.mxu0 0
        %3195 = vmatpush1.bf16.msra.mxu0 0
        %3196 = vmatprep.subr.bf16.mxu0 0
        %3197 = vmatpush1.bf16.msra.mxu0 0
        %3198 = vmatprep.subr.bf16.mxu0 0
        %3199 = vmatpush1.bf16.msra.mxu0 0
        %3200 = vmatprep.subr.bf16.mxu0 0
        %3201 = vmatpush1.bf16.msra.mxu0 0
        %3202 = vmatprep.mubr.bf16.mxu0 0
        %3203 = vmatmul.mubr.bf16.gmra.mrb[0].mxu0 %v2389
        %v3204 = vpop.f32.mrb[0].mxu0
        %v3205 = vadd.f32 %v1367, %v3204
        %v3206 = vpop.f32.mrb[0].mxu0
        %v3207 = vadd.f32 %v1371, %v3206
        %v3208 = vpop.f32.mrb[0].mxu0
        %v3209 = vpop.f32.mrb[0].mxu0
        %3210 = vdwg.mxu0
        %3211 = vmatprep.subr.bf16.mxu0 %v2093
        %3212 = vmatpush1.bf16.msra.mxu0 %v2092
        %3213 = vmatprep.subr.bf16.mxu0 %v2177
        %3214 = vmatpush1.bf16.msra.mxu0 %v2176
        %3215 = vmatprep.subr.bf16.mxu0 0
        %3216 = vmatpush1.bf16.msra.mxu0 0
        %3217 = vmatprep.subr.bf16.mxu0 0
        %3218 = vmatpush1.bf16.msra.mxu0 0
        %3219 = vmatprep.subr.bf16.mxu0 0
        %3220 = vmatpush1.bf16.msra.mxu0 0
        %3221 = vmatprep.subr.bf16.mxu0 0
        %3222 = vmatpush1.bf16.msra.mxu0 0
        %3223 = vmatprep.subr.bf16.mxu0 0
        %3224 = vmatpush1.bf16.msra.mxu0 0
        %3225 = vmatprep.subr.bf16.mxu0 0
        %3226 = vmatpush1.bf16.msra.mxu0 0
        %3227 = vmatprep.subr.bf16.mxu0 0
        %3228 = vmatpush1.bf16.msra.mxu0 0
        %3229 = vmatprep.subr.bf16.mxu0 0
        %3230 = vmatpush1.bf16.msra.mxu0 0
        %3231 = vmatprep.subr.bf16.mxu0 0
        %3232 = vmatpush1.bf16.msra.mxu0 0
        %3233 = vmatprep.subr.bf16.mxu0 0
        %3234 = vmatpush1.bf16.msra.mxu0 0
        %3235 = vmatprep.subr.bf16.mxu0 0
        %3236 = vmatpush1.bf16.msra.mxu0 0
        %3237 = vmatprep.subr.bf16.mxu0 0
        %3238 = vmatpush1.bf16.msra.mxu0 0
        %3239 = vmatprep.subr.bf16.mxu0 0
        %3240 = vmatpush1.bf16.msra.mxu0 0
        %3241 = vmatprep.subr.bf16.mxu0 0
        %3242 = vmatpush1.bf16.msra.mxu0 0
        %3243 = vmatprep.mubr.bf16.mxu0 0
        %3244 = vmatmul.mubr.bf16.gmra.mrb[0].mxu0 %v2389
        %v3245 = vpop.f32.mrb[0].mxu0
        %v3246 = vadd.f32 %v1375, %v3245
        %v3247 = vpop.f32.mrb[0].mxu0
        %v3248 = vadd.f32 %v1379, %v3247
        %v3249 = vpop.f32.mrb[0].mxu0
        %v3250 = vpop.f32.mrb[0].mxu0
        %3251 = vdwg.mxu0
        %3252 = vmatprep.subr.bf16.mxu0 %v2095
        %3253 = vmatpush1.bf16.msra.mxu0 %v2094
        %3254 = vmatprep.subr.bf16.mxu0 %v2179
        %3255 = vmatpush1.bf16.msra.mxu0 %v2178
        %3256 = vmatprep.subr.bf16.mxu0 0
        %3257 = vmatpush1.bf16.msra.mxu0 0
        %3258 = vmatprep.subr.bf16.mxu0 0
        %3259 = vmatpush1.bf16.msra.mxu0 0
        %3260 = vmatprep.subr.bf16.mxu0 0
        %3261 = vmatpush1.bf16.msra.mxu0 0
        %3262 = vmatprep.subr.bf16.mxu0 0
        %3263 = vmatpush1.bf16.msra.mxu0 0
        %3264 = vmatprep.subr.bf16.mxu0 0
        %3265 = vmatpush1.bf16.msra.mxu0 0
        %3266 = vmatprep.subr.bf16.mxu0 0
        %3267 = vmatpush1.bf16.msra.mxu0 0
        %3268 = vmatprep.subr.bf16.mxu0 0
        %3269 = vmatpush1.bf16.msra.mxu0 0
        %3270 = vmatprep.subr.bf16.mxu0 0
        %3271 = vmatpush1.bf16.msra.mxu0 0
        %3272 = vmatprep.subr.bf16.mxu0 0
        %3273 = vmatpush1.bf16.msra.mxu0 0
        %3274 = vmatprep.subr.bf16.mxu0 0
        %3275 = vmatpush1.bf16.msra.mxu0 0
        %3276 = vmatprep.subr.bf16.mxu0 0
        %3277 = vmatpush1.bf16.msra.mxu0 0
        %3278 = vmatprep.subr.bf16.mxu0 0
        %3279 = vmatpush1.bf16.msra.mxu0 0
        %3280 = vmatprep.subr.bf16.mxu0 0
        %3281 = vmatpush1.bf16.msra.mxu0 0
        %3282 = vmatprep.subr.bf16.mxu0 0
        %3283 = vmatpush1.bf16.msra.mxu0 0
        %3284 = vmatprep.mubr.bf16.mxu0 0
        %3285 = vmatmul.mubr.bf16.gmra.mrb[0].mxu0 %v2389
        %v3286 = vpop.f32.mrb[0].mxu0
        %v3287 = vadd.f32 %v1383, %v3286
        %v3288 = vpop.f32.mrb[0].mxu0
        %v3289 = vadd.f32 %v1387, %v3288
        %v3290 = vpop.f32.mrb[0].mxu0
        %v3291 = vpop.f32.mrb[0].mxu0
        %3292 = vdwg.mxu0
        %3293 = vmatprep.subr.bf16.mxu0 %v2097
        %3294 = vmatpush1.bf16.msra.mxu0 %v2096
        %3295 = vmatprep.subr.bf16.mxu0 %v2181
        %3296 = vmatpush1.bf16.msra.mxu0 %v2180
        %3297 = vmatprep.subr.bf16.mxu0 0
        %3298 = vmatpush1.bf16.msra.mxu0 0
        %3299 = vmatprep.subr.bf16.mxu0 0
        %3300 = vmatpush1.bf16.msra.mxu0 0
        %3301 = vmatprep.subr.bf16.mxu0 0
        %3302 = vmatpush1.bf16.msra.mxu0 0
        %3303 = vmatprep.subr.bf16.mxu0 0
        %3304 = vmatpush1.bf16.msra.mxu0 0
        %3305 = vmatprep.subr.bf16.mxu0 0
        %3306 = vmatpush1.bf16.msra.mxu0 0
        %3307 = vmatprep.subr.bf16.mxu0 0
        %3308 = vmatpush1.bf16.msra.mxu0 0
        %3309 = vmatprep.subr.bf16.mxu0 0
        %3310 = vmatpush1.bf16.msra.mxu0 0
        %3311 = vmatprep.subr.bf16.mxu0 0
        %3312 = vmatpush1.bf16.msra.mxu0 0
        %3313 = vmatprep.subr.bf16.mxu0 0
        %3314 = vmatpush1.bf16.msra.mxu0 0
        %3315 = vmatprep.subr.bf16.mxu0 0
        %3316 = vmatpush1.bf16.msra.mxu0 0
        %3317 = vmatprep.subr.bf16.mxu0 0
        %3318 = vmatpush1.bf16.msra.mxu0 0
        %3319 = vmatprep.subr.bf16.mxu0 0
        %3320 = vmatpush1.bf16.msra.mxu0 0
        %3321 = vmatprep.subr.bf16.mxu0 0
        %3322 = vmatpush1.bf16.msra.mxu0 0
        %3323 = vmatprep.subr.bf16.mxu0 0
        %3324 = vmatpush1.bf16.msra.mxu0 0
        %3325 = vmatprep.mubr.bf16.mxu0 0
        %3326 = vmatmul.mubr.bf16.gmra.mrb[0].mxu0 %v2389
        %v3327 = vpop.f32.mrb[0].mxu0
        %v3328 = vadd.f32 %v1391, %v3327
        %v3329 = vpop.f32.mrb[0].mxu0
        %v3330 = vadd.f32 %v1395, %v3329
        %v3331 = vpop.f32.mrb[0].mxu0
        %v3332 = vpop.f32.mrb[0].mxu0
        %3333 = vdwg.mxu0
        %3334 = vmatprep.subr.bf16.mxu0 %v2099
        %3335 = vmatpush1.bf16.msra.mxu0 %v2098
        %3336 = vmatprep.subr.bf16.mxu0 %v2183
        %3337 = vmatpush1.bf16.msra.mxu0 %v2182
        %3338 = vmatprep.subr.bf16.mxu0 0
        %3339 = vmatpush1.bf16.msra.mxu0 0
        %3340 = vmatprep.subr.bf16.mxu0 0
        %3341 = vmatpush1.bf16.msra.mxu0 0
        %3342 = vmatprep.subr.bf16.mxu0 0
        %3343 = vmatpush1.bf16.msra.mxu0 0
        %3344 = vmatprep.subr.bf16.mxu0 0
        %3345 = vmatpush1.bf16.msra.mxu0 0
        %3346 = vmatprep.subr.bf16.mxu0 0
        %3347 = vmatpush1.bf16.msra.mxu0 0
        %3348 = vmatprep.subr.bf16.mxu0 0
        %3349 = vmatpush1.bf16.msra.mxu0 0
        %3350 = vmatprep.subr.bf16.mxu0 0
        %3351 = vmatpush1.bf16.msra.mxu0 0
        %3352 = vmatprep.subr.bf16.mxu0 0
        %3353 = vmatpush1.bf16.msra.mxu0 0
        %3354 = vmatprep.subr.bf16.mxu0 0
        %3355 = vmatpush1.bf16.msra.mxu0 0
        %3356 = vmatprep.subr.bf16.mxu0 0
        %3357 = vmatpush1.bf16.msra.mxu0 0
        %3358 = vmatprep.subr.bf16.mxu0 0
        %3359 = vmatpush1.bf16.msra.mxu0 0
        %3360 = vmatprep.subr.bf16.mxu0 0
        %3361 = vmatpush1.bf16.msra.mxu0 0
        %3362 = vmatprep.subr.bf16.mxu0 0
        %3363 = vmatpush1.bf16.msra.mxu0 0
        %3364 = vmatprep.subr.bf16.mxu0 0
        %3365 = vmatpush1.bf16.msra.mxu0 0
        %3366 = vmatprep.mubr.bf16.mxu0 0
        %3367 = vmatmul.mubr.bf16.gmra.mrb[0].mxu0 %v2389
        %v3368 = vpop.f32.mrb[0].mxu0
        %v3369 = vadd.f32 %v1399, %v3368
        %v3370 = vpop.f32.mrb[0].mxu0
        %v3371 = vadd.f32 %v1403, %v3370
        %v3372 = vpop.f32.mrb[0].mxu0
        %v3373 = vpop.f32.mrb[0].mxu0
        %3374 = vdwg.mxu0
        %3375 = vmatprep.subr.bf16.mxu0 %v2101
        %3376 = vmatpush1.bf16.msra.mxu0 %v2100
        %3377 = vmatprep.subr.bf16.mxu0 %v2185
        %3378 = vmatpush1.bf16.msra.mxu0 %v2184
        %3379 = vmatprep.subr.bf16.mxu0 0
        %3380 = vmatpush1.bf16.msra.mxu0 0
        %3381 = vmatprep.subr.bf16.mxu0 0
        %3382 = vmatpush1.bf16.msra.mxu0 0
        %3383 = vmatprep.subr.bf16.mxu0 0
        %3384 = vmatpush1.bf16.msra.mxu0 0
        %3385 = vmatprep.subr.bf16.mxu0 0
        %3386 = vmatpush1.bf16.msra.mxu0 0
        %3387 = vmatprep.subr.bf16.mxu0 0
        %3388 = vmatpush1.bf16.msra.mxu0 0
        %3389 = vmatprep.subr.bf16.mxu0 0
        %3390 = vmatpush1.bf16.msra.mxu0 0
        %3391 = vmatprep.subr.bf16.mxu0 0
        %3392 = vmatpush1.bf16.msra.mxu0 0
        %3393 = vmatprep.subr.bf16.mxu0 0
        %3394 = vmatpush1.bf16.msra.mxu0 0
        %3395 = vmatprep.subr.bf16.mxu0 0
        %3396 = vmatpush1.bf16.msra.mxu0 0
        %3397 = vmatprep.subr.bf16.mxu0 0
        %3398 = vmatpush1.bf16.msra.mxu0 0
        %3399 = vmatprep.subr.bf16.mxu0 0
        %3400 = vmatpush1.bf16.msra.mxu0 0
        %3401 = vmatprep.subr.bf16.mxu0 0
        %3402 = vmatpush1.bf16.msra.mxu0 0
        %3403 = vmatprep.subr.bf16.mxu0 0
        %3404 = vmatpush1.bf16.msra.mxu0 0
        %3405 = vmatprep.subr.bf16.mxu0 0
        %3406 = vmatpush1.bf16.msra.mxu0 0
        %3407 = vmatprep.mubr.bf16.mxu0 0
        %3408 = vmatmul.mubr.bf16.gmra.mrb[0].mxu0 %v2389
        %v3409 = vpop.f32.mrb[0].mxu0
        %v3410 = vadd.f32 %v1407, %v3409
        %v3411 = vpop.f32.mrb[0].mxu0
        %v3412 = vadd.f32 %v1411, %v3411
        %v3413 = vpop.f32.mrb[0].mxu0
        %v3414 = vpop.f32.mrb[0].mxu0
        %3415 = vdwg.mxu0
        %3416 = vmatprep.subr.bf16.mxu0 %v2103
        %3417 = vmatpush1.bf16.msra.mxu0 %v2102
        %3418 = vmatprep.subr.bf16.mxu0 %v2187
        %3419 = vmatpush1.bf16.msra.mxu0 %v2186
        %3420 = vmatprep.subr.bf16.mxu0 0
        %3421 = vmatpush1.bf16.msra.mxu0 0
        %3422 = vmatprep.subr.bf16.mxu0 0
        %3423 = vmatpush1.bf16.msra.mxu0 0
        %3424 = vmatprep.subr.bf16.mxu0 0
        %3425 = vmatpush1.bf16.msra.mxu0 0
        %3426 = vmatprep.subr.bf16.mxu0 0
        %3427 = vmatpush1.bf16.msra.mxu0 0
        %3428 = vmatprep.subr.bf16.mxu0 0
        %3429 = vmatpush1.bf16.msra.mxu0 0
        %3430 = vmatprep.subr.bf16.mxu0 0
        %3431 = vmatpush1.bf16.msra.mxu0 0
        %3432 = vmatprep.subr.bf16.mxu0 0
        %3433 = vmatpush1.bf16.msra.mxu0 0
        %3434 = vmatprep.subr.bf16.mxu0 0
        %3435 = vmatpush1.bf16.msra.mxu0 0
        %3436 = vmatprep.subr.bf16.mxu0 0
        %3437 = vmatpush1.bf16.msra.mxu0 0
        %3438 = vmatprep.subr.bf16.mxu0 0
        %3439 = vmatpush1.bf16.msra.mxu0 0
        %3440 = vmatprep.subr.bf16.mxu0 0
        %3441 = vmatpush1.bf16.msra.mxu0 0
        %3442 = vmatprep.subr.bf16.mxu0 0
        %3443 = vmatpush1.bf16.msra.mxu0 0
        %3444 = vmatprep.subr.bf16.mxu0 0
        %3445 = vmatpush1.bf16.msra.mxu0 0
        %3446 = vmatprep.subr.bf16.mxu0 0
        %3447 = vmatpush1.bf16.msra.mxu0 0
        %3448 = vmatprep.mubr.bf16.mxu0 0
        %3449 = vmatmul.mubr.bf16.gmra.mrb[0].mxu0 %v2389
        %v3450 = vpop.f32.mrb[0].mxu0
        %v3451 = vadd.f32 %v1415, %v3450
        %v3452 = vpop.f32.mrb[0].mxu0
        %v3453 = vadd.f32 %v1419, %v3452
        %v3454 = vpop.f32.mrb[0].mxu0
        %v3455 = vpop.f32.mrb[0].mxu0
        %3456 = vdwg.mxu0
        %3457 = vmatprep.subr.bf16.mxu0 %v2105
        %3458 = vmatpush1.bf16.msra.mxu0 %v2104
        %3459 = vmatprep.subr.bf16.mxu0 %v2189
        %3460 = vmatpush1.bf16.msra.mxu0 %v2188
        %3461 = vmatprep.subr.bf16.mxu0 0
        %3462 = vmatpush1.bf16.msra.mxu0 0
        %3463 = vmatprep.subr.bf16.mxu0 0
        %3464 = vmatpush1.bf16.msra.mxu0 0
        %3465 = vmatprep.subr.bf16.mxu0 0
        %3466 = vmatpush1.bf16.msra.mxu0 0
        %3467 = vmatprep.subr.bf16.mxu0 0
        %3468 = vmatpush1.bf16.msra.mxu0 0
        %3469 = vmatprep.subr.bf16.mxu0 0
        %3470 = vmatpush1.bf16.msra.mxu0 0
        %3471 = vmatprep.subr.bf16.mxu0 0
        %3472 = vmatpush1.bf16.msra.mxu0 0
        %3473 = vmatprep.subr.bf16.mxu0 0
        %3474 = vmatpush1.bf16.msra.mxu0 0
        %3475 = vmatprep.subr.bf16.mxu0 0
        %3476 = vmatpush1.bf16.msra.mxu0 0
        %3477 = vmatprep.subr.bf16.mxu0 0
        %3478 = vmatpush1.bf16.msra.mxu0 0
        %3479 = vmatprep.subr.bf16.mxu0 0
        %3480 = vmatpush1.bf16.msra.mxu0 0
        %3481 = vmatprep.subr.bf16.mxu0 0
        %3482 = vmatpush1.bf16.msra.mxu0 0
        %3483 = vmatprep.subr.bf16.mxu0 0
        %3484 = vmatpush1.bf16.msra.mxu0 0
        %3485 = vmatprep.subr.bf16.mxu0 0
        %3486 = vmatpush1.bf16.msra.mxu0 0
        %3487 = vmatprep.subr.bf16.mxu0 0
        %3488 = vmatpush1.bf16.msra.mxu0 0
        %3489 = vmatprep.mubr.bf16.mxu0 0
        %3490 = vmatmul.mubr.bf16.gmra.mrb[0].mxu0 %v2389
        %v3491 = vpop.f32.mrb[0].mxu0
        %v3492 = vadd.f32 %v1423, %v3491
        %v3493 = vpop.f32.mrb[0].mxu0
        %v3494 = vadd.f32 %v1427, %v3493
        %v3495 = vpop.f32.mrb[0].mxu0
        %v3496 = vpop.f32.mrb[0].mxu0
        %3497 = vdwg.mxu0
        %3498 = vmatprep.subr.bf16.mxu0 %v2107
        %3499 = vmatpush1.bf16.msra.mxu0 %v2106
        %3500 = vmatprep.subr.bf16.mxu0 %v2191
        %3501 = vmatpush1.bf16.msra.mxu0 %v2190
        %3502 = vmatprep.subr.bf16.mxu0 0
        %3503 = vmatpush1.bf16.msra.mxu0 0
        %3504 = vmatprep.subr.bf16.mxu0 0
        %3505 = vmatpush1.bf16.msra.mxu0 0
        %3506 = vmatprep.subr.bf16.mxu0 0
        %3507 = vmatpush1.bf16.msra.mxu0 0
        %3508 = vmatprep.subr.bf16.mxu0 0
        %3509 = vmatpush1.bf16.msra.mxu0 0
        %3510 = vmatprep.subr.bf16.mxu0 0
        %3511 = vmatpush1.bf16.msra.mxu0 0
        %3512 = vmatprep.subr.bf16.mxu0 0
        %3513 = vmatpush1.bf16.msra.mxu0 0
        %3514 = vmatprep.subr.bf16.mxu0 0
        %3515 = vmatpush1.bf16.msra.mxu0 0
        %3516 = vmatprep.subr.bf16.mxu0 0
        %3517 = vmatpush1.bf16.msra.mxu0 0
        %3518 = vmatprep.subr.bf16.mxu0 0
        %3519 = vmatpush1.bf16.msra.mxu0 0
        %3520 = vmatprep.subr.bf16.mxu0 0
        %3521 = vmatpush1.bf16.msra.mxu0 0
        %3522 = vmatprep.subr.bf16.mxu0 0
        %3523 = vmatpush1.bf16.msra.mxu0 0
        %3524 = vmatprep.subr.bf16.mxu0 0
        %3525 = vmatpush1.bf16.msra.mxu0 0
        %3526 = vmatprep.subr.bf16.mxu0 0
        %3527 = vmatpush1.bf16.msra.mxu0 0
        %3528 = vmatprep.subr.bf16.mxu0 0
        %3529 = vmatpush1.bf16.msra.mxu0 0
        %3530 = vmatprep.mubr.bf16.mxu0 0
        %3531 = vmatmul.mubr.bf16.gmra.mrb[0].mxu0 %v2389
        %v3532 = vpop.f32.mrb[0].mxu0
        %v3533 = vadd.f32 %v1431, %v3532
        %v3534 = vpop.f32.mrb[0].mxu0
        %v3535 = vadd.f32 %v1435, %v3534
        %v3536 = vpop.f32.mrb[0].mxu0
        %v3537 = vpop.f32.mrb[0].mxu0
        %3538 = vdwg.mxu0
        %3539 = vmatprep.subr.bf16.mxu0 %v2109
        %3540 = vmatpush1.bf16.msra.mxu0 %v2108
        %3541 = vmatprep.subr.bf16.mxu0 %v2193
        %3542 = vmatpush1.bf16.msra.mxu0 %v2192
        %3543 = vmatprep.subr.bf16.mxu0 0
        %3544 = vmatpush1.bf16.msra.mxu0 0
        %3545 = vmatprep.subr.bf16.mxu0 0
        %3546 = vmatpush1.bf16.msra.mxu0 0
        %3547 = vmatprep.subr.bf16.mxu0 0
        %3548 = vmatpush1.bf16.msra.mxu0 0
        %3549 = vmatprep.subr.bf16.mxu0 0
        %3550 = vmatpush1.bf16.msra.mxu0 0
        %3551 = vmatprep.subr.bf16.mxu0 0
        %3552 = vmatpush1.bf16.msra.mxu0 0
        %3553 = vmatprep.subr.bf16.mxu0 0
        %3554 = vmatpush1.bf16.msra.mxu0 0
        %3555 = vmatprep.subr.bf16.mxu0 0
        %3556 = vmatpush1.bf16.msra.mxu0 0
        %3557 = vmatprep.subr.bf16.mxu0 0
        %3558 = vmatpush1.bf16.msra.mxu0 0
        %3559 = vmatprep.subr.bf16.mxu0 0
        %3560 = vmatpush1.bf16.msra.mxu0 0
        %3561 = vmatprep.subr.bf16.mxu0 0
        %3562 = vmatpush1.bf16.msra.mxu0 0
        %3563 = vmatprep.subr.bf16.mxu0 0
        %3564 = vmatpush1.bf16.msra.mxu0 0
        %3565 = vmatprep.subr.bf16.mxu0 0
        %3566 = vmatpush1.bf16.msra.mxu0 0
        %3567 = vmatprep.subr.bf16.mxu0 0
        %3568 = vmatpush1.bf16.msra.mxu0 0
        %3569 = vmatprep.subr.bf16.mxu0 0
        %3570 = vmatpush1.bf16.msra.mxu0 0
        %3571 = vmatprep.mubr.bf16.mxu0 0
        %3572 = vmatmul.mubr.bf16.gmra.mrb[0].mxu0 %v2389
        %v3573 = vpop.f32.mrb[0].mxu0
        %v3574 = vadd.f32 %v1439, %v3573
        %v3575 = vpop.f32.mrb[0].mxu0
        %v3576 = vadd.f32 %v1443, %v3575
        %v3577 = vpop.f32.mrb[0].mxu0
        %v3578 = vpop.f32.mrb[0].mxu0
        %3579 = vdwg.mxu0
        %3580 = vmatprep.subr.bf16.mxu0 %v2111
        %3581 = vmatpush1.bf16.msra.mxu0 %v2110
        %3582 = vmatprep.subr.bf16.mxu0 %v2195
        %3583 = vmatpush1.bf16.msra.mxu0 %v2194
        %3584 = vmatprep.subr.bf16.mxu0 0
        %3585 = vmatpush1.bf16.msra.mxu0 0
        %3586 = vmatprep.subr.bf16.mxu0 0
        %3587 = vmatpush1.bf16.msra.mxu0 0
        %3588 = vmatprep.subr.bf16.mxu0 0
        %3589 = vmatpush1.bf16.msra.mxu0 0
        %3590 = vmatprep.subr.bf16.mxu0 0
        %3591 = vmatpush1.bf16.msra.mxu0 0
        %3592 = vmatprep.subr.bf16.mxu0 0
        %3593 = vmatpush1.bf16.msra.mxu0 0
        %3594 = vmatprep.subr.bf16.mxu0 0
        %3595 = vmatpush1.bf16.msra.mxu0 0
        %3596 = vmatprep.subr.bf16.mxu0 0
        %3597 = vmatpush1.bf16.msra.mxu0 0
        %3598 = vmatprep.subr.bf16.mxu0 0
        %3599 = vmatpush1.bf16.msra.mxu0 0
        %3600 = vmatprep.subr.bf16.mxu0 0
        %3601 = vmatpush1.bf16.msra.mxu0 0
        %3602 = vmatprep.subr.bf16.mxu0 0
        %3603 = vmatpush1.bf16.msra.mxu0 0
        %3604 = vmatprep.subr.bf16.mxu0 0
        %3605 = vmatpush1.bf16.msra.mxu0 0
        %3606 = vmatprep.subr.bf16.mxu0 0
        %3607 = vmatpush1.bf16.msra.mxu0 0
        %3608 = vmatprep.subr.bf16.mxu0 0
        %3609 = vmatpush1.bf16.msra.mxu0 0
        %3610 = vmatprep.subr.bf16.mxu0 0
        %3611 = vmatpush1.bf16.msra.mxu0 0
        %3612 = vmatprep.mubr.bf16.mxu0 0
        %3613 = vmatmul.mubr.bf16.gmra.mrb[0].mxu0 %v2389
        %v3614 = vpop.f32.mrb[0].mxu0
        %v3615 = vadd.f32 %v1447, %v3614
        %v3616 = vpop.f32.mrb[0].mxu0
        %v3617 = vadd.f32 %v1451, %v3616
        %v3618 = vpop.f32.mrb[0].mxu0
        %v3619 = vpop.f32.mrb[0].mxu0
        %3620 = vdwg.mxu0
        %3621 = vmatprep.subr.bf16.mxu0 %v2113
        %3622 = vmatpush1.bf16.msra.mxu0 %v2112
        %3623 = vmatprep.subr.bf16.mxu0 %v2197
        %3624 = vmatpush1.bf16.msra.mxu0 %v2196
        %3625 = vmatprep.subr.bf16.mxu0 0
        %3626 = vmatpush1.bf16.msra.mxu0 0
        %3627 = vmatprep.subr.bf16.mxu0 0
        %3628 = vmatpush1.bf16.msra.mxu0 0
        %3629 = vmatprep.subr.bf16.mxu0 0
        %3630 = vmatpush1.bf16.msra.mxu0 0
        %3631 = vmatprep.subr.bf16.mxu0 0
        %3632 = vmatpush1.bf16.msra.mxu0 0
        %3633 = vmatprep.subr.bf16.mxu0 0
        %3634 = vmatpush1.bf16.msra.mxu0 0
        %3635 = vmatprep.subr.bf16.mxu0 0
        %3636 = vmatpush1.bf16.msra.mxu0 0
        %3637 = vmatprep.subr.bf16.mxu0 0
        %3638 = vmatpush1.bf16.msra.mxu0 0
        %3639 = vmatprep.subr.bf16.mxu0 0
        %3640 = vmatpush1.bf16.msra.mxu0 0
        %3641 = vmatprep.subr.bf16.mxu0 0
        %3642 = vmatpush1.bf16.msra.mxu0 0
        %3643 = vmatprep.subr.bf16.mxu0 0
        %3644 = vmatpush1.bf16.msra.mxu0 0
        %3645 = vmatprep.subr.bf16.mxu0 0
        %3646 = vmatpush1.bf16.msra.mxu0 0
        %3647 = vmatprep.subr.bf16.mxu0 0
        %3648 = vmatpush1.bf16.msra.mxu0 0
        %3649 = vmatprep.subr.bf16.mxu0 0
        %3650 = vmatpush1.bf16.msra.mxu0 0
        %3651 = vmatprep.subr.bf16.mxu0 0
        %3652 = vmatpush1.bf16.msra.mxu0 0
        %3653 = vmatprep.mubr.bf16.mxu0 0
        %3654 = vmatmul.mubr.bf16.gmra.mrb[0].mxu0 %v2389
        %v3655 = vpop.f32.mrb[0].mxu0
        %v3656 = vadd.f32 %v1455, %v3655
        %v3657 = vpop.f32.mrb[0].mxu0
        %v3658 = vadd.f32 %v1459, %v3657
        %v3659 = vpop.f32.mrb[0].mxu0
        %v3660 = vpop.f32.mrb[0].mxu0
        %3661 = vdwg.mxu0
        %3662 = vmatprep.subr.bf16.mxu0 %v2115
        %3663 = vmatpush1.bf16.msra.mxu0 %v2114
        %3664 = vmatprep.subr.bf16.mxu0 %v2199
        %3665 = vmatpush1.bf16.msra.mxu0 %v2198
        %3666 = vmatprep.subr.bf16.mxu0 0
        %3667 = vmatpush1.bf16.msra.mxu0 0
        %3668 = vmatprep.subr.bf16.mxu0 0
        %3669 = vmatpush1.bf16.msra.mxu0 0
        %3670 = vmatprep.subr.bf16.mxu0 0
        %3671 = vmatpush1.bf16.msra.mxu0 0
        %3672 = vmatprep.subr.bf16.mxu0 0
        %3673 = vmatpush1.bf16.msra.mxu0 0
        %3674 = vmatprep.subr.bf16.mxu0 0
        %3675 = vmatpush1.bf16.msra.mxu0 0
        %3676 = vmatprep.subr.bf16.mxu0 0
        %3677 = vmatpush1.bf16.msra.mxu0 0
        %3678 = vmatprep.subr.bf16.mxu0 0
        %3679 = vmatpush1.bf16.msra.mxu0 0
        %3680 = vmatprep.subr.bf16.mxu0 0
        %3681 = vmatpush1.bf16.msra.mxu0 0
        %3682 = vmatprep.subr.bf16.mxu0 0
        %3683 = vmatpush1.bf16.msra.mxu0 0
        %3684 = vmatprep.subr.bf16.mxu0 0
        %3685 = vmatpush1.bf16.msra.mxu0 0
        %3686 = vmatprep.subr.bf16.mxu0 0
        %3687 = vmatpush1.bf16.msra.mxu0 0
        %3688 = vmatprep.subr.bf16.mxu0 0
        %3689 = vmatpush1.bf16.msra.mxu0 0
        %3690 = vmatprep.subr.bf16.mxu0 0
        %3691 = vmatpush1.bf16.msra.mxu0 0
        %3692 = vmatprep.subr.bf16.mxu0 0
        %3693 = vmatpush1.bf16.msra.mxu0 0
        %3694 = vmatprep.mubr.bf16.mxu0 0
        %3695 = vmatmul.mubr.bf16.gmra.mrb[0].mxu0 %v2389
        %v3696 = vpop.f32.mrb[0].mxu0
        %v3697 = vadd.f32 %v1463, %v3696
        %v3698 = vpop.f32.mrb[0].mxu0
        %v3699 = vadd.f32 %v1467, %v3698
        %v3700 = vpop.f32.mrb[0].mxu0
        %v3701 = vpop.f32.mrb[0].mxu0
        %3702 = vdwg.mxu0
        %3703 = vmatprep.subr.bf16.mxu0 %v2117
        %3704 = vmatpush1.bf16.msra.mxu0 %v2116
        %3705 = vmatprep.subr.bf16.mxu0 %v2201
        %3706 = vmatpush1.bf16.msra.mxu0 %v2200
        %3707 = vmatprep.subr.bf16.mxu0 0
        %3708 = vmatpush1.bf16.msra.mxu0 0
        %3709 = vmatprep.subr.bf16.mxu0 0
        %3710 = vmatpush1.bf16.msra.mxu0 0
        %3711 = vmatprep.subr.bf16.mxu0 0
        %3712 = vmatpush1.bf16.msra.mxu0 0
        %3713 = vmatprep.subr.bf16.mxu0 0
        %3714 = vmatpush1.bf16.msra.mxu0 0
        %3715 = vmatprep.subr.bf16.mxu0 0
        %3716 = vmatpush1.bf16.msra.mxu0 0
        %3717 = vmatprep.subr.bf16.mxu0 0
        %3718 = vmatpush1.bf16.msra.mxu0 0
        %3719 = vmatprep.subr.bf16.mxu0 0
        %3720 = vmatpush1.bf16.msra.mxu0 0
        %3721 = vmatprep.subr.bf16.mxu0 0
        %3722 = vmatpush1.bf16.msra.mxu0 0
        %3723 = vmatprep.subr.bf16.mxu0 0
        %3724 = vmatpush1.bf16.msra.mxu0 0
        %3725 = vmatprep.subr.bf16.mxu0 0
        %3726 = vmatpush1.bf16.msra.mxu0 0
        %3727 = vmatprep.subr.bf16.mxu0 0
        %3728 = vmatpush1.bf16.msra.mxu0 0
        %3729 = vmatprep.subr.bf16.mxu0 0
        %3730 = vmatpush1.bf16.msra.mxu0 0
        %3731 = vmatprep.subr.bf16.mxu0 0
        %3732 = vmatpush1.bf16.msra.mxu0 0
        %3733 = vmatprep.subr.bf16.mxu0 0
        %3734 = vmatpush1.bf16.msra.mxu0 0
        %3735 = vmatprep.mubr.bf16.mxu0 0
        %3736 = vmatmul.mubr.bf16.gmra.mrb[0].mxu0 %v2389
        %v3737 = vpop.f32.mrb[0].mxu0
        %v3738 = vadd.f32 %v1471, %v3737
        %v3739 = vpop.f32.mrb[0].mxu0
        %v3740 = vadd.f32 %v1475, %v3739
        %v3741 = vpop.f32.mrb[0].mxu0
        %v3742 = vpop.f32.mrb[0].mxu0
        %3743 = vdwg.mxu0
        %3744 = vmatprep.subr.bf16.mxu0 %v2119
        %3745 = vmatpush1.bf16.msra.mxu0 %v2118
        %3746 = vmatprep.subr.bf16.mxu0 %v2203
        %3747 = vmatpush1.bf16.msra.mxu0 %v2202
        %3748 = vmatprep.subr.bf16.mxu0 0
        %3749 = vmatpush1.bf16.msra.mxu0 0
        %3750 = vmatprep.subr.bf16.mxu0 0
        %3751 = vmatpush1.bf16.msra.mxu0 0
        %3752 = vmatprep.subr.bf16.mxu0 0
        %3753 = vmatpush1.bf16.msra.mxu0 0
        %3754 = vmatprep.subr.bf16.mxu0 0
        %3755 = vmatpush1.bf16.msra.mxu0 0
        %3756 = vmatprep.subr.bf16.mxu0 0
        %3757 = vmatpush1.bf16.msra.mxu0 0
        %3758 = vmatprep.subr.bf16.mxu0 0
        %3759 = vmatpush1.bf16.msra.mxu0 0
        %3760 = vmatprep.subr.bf16.mxu0 0
        %3761 = vmatpush1.bf16.msra.mxu0 0
        %3762 = vmatprep.subr.bf16.mxu0 0
        %3763 = vmatpush1.bf16.msra.mxu0 0
        %3764 = vmatprep.subr.bf16.mxu0 0
        %3765 = vmatpush1.bf16.msra.mxu0 0
        %3766 = vmatprep.subr.bf16.mxu0 0
        %3767 = vmatpush1.bf16.msra.mxu0 0
        %3768 = vmatprep.subr.bf16.mxu0 0
        %3769 = vmatpush1.bf16.msra.mxu0 0
        %3770 = vmatprep.subr.bf16.mxu0 0
        %3771 = vmatpush1.bf16.msra.mxu0 0
        %3772 = vmatprep.subr.bf16.mxu0 0
        %3773 = vmatpush1.bf16.msra.mxu0 0
        %3774 = vmatprep.subr.bf16.mxu0 0
        %3775 = vmatpush1.bf16.msra.mxu0 0
        %3776 = vmatprep.mubr.bf16.mxu0 0
        %3777 = vmatmul.mubr.bf16.gmra.mrb[0].mxu0 %v2389
        %v3778 = vpop.f32.mrb[0].mxu0
        %v3779 = vadd.f32 %v1479, %v3778
        %v3780 = vpop.f32.mrb[0].mxu0
        %v3781 = vadd.f32 %v1483, %v3780
        %v3782 = vpop.f32.mrb[0].mxu0
        %v3783 = vpop.f32.mrb[0].mxu0
        %3784 = vdwg.mxu0
        %3785 = vmatprep.subr.bf16.mxu0 %v2121
        %3786 = vmatpush1.bf16.msra.mxu0 %v2120
        %3787 = vmatprep.subr.bf16.mxu0 %v2205
        %3788 = vmatpush1.bf16.msra.mxu0 %v2204
        %3789 = vmatprep.subr.bf16.mxu0 0
        %3790 = vmatpush1.bf16.msra.mxu0 0
        %3791 = vmatprep.subr.bf16.mxu0 0
        %3792 = vmatpush1.bf16.msra.mxu0 0
        %3793 = vmatprep.subr.bf16.mxu0 0
        %3794 = vmatpush1.bf16.msra.mxu0 0
        %3795 = vmatprep.subr.bf16.mxu0 0
        %3796 = vmatpush1.bf16.msra.mxu0 0
        %3797 = vmatprep.subr.bf16.mxu0 0
        %3798 = vmatpush1.bf16.msra.mxu0 0
        %3799 = vmatprep.subr.bf16.mxu0 0
        %3800 = vmatpush1.bf16.msra.mxu0 0
        %3801 = vmatprep.subr.bf16.mxu0 0
        %3802 = vmatpush1.bf16.msra.mxu0 0
        %3803 = vmatprep.subr.bf16.mxu0 0
        %3804 = vmatpush1.bf16.msra.mxu0 0
        %3805 = vmatprep.subr.bf16.mxu0 0
        %3806 = vmatpush1.bf16.msra.mxu0 0
        %3807 = vmatprep.subr.bf16.mxu0 0
        %3808 = vmatpush1.bf16.msra.mxu0 0
        %3809 = vmatprep.subr.bf16.mxu0 0
        %3810 = vmatpush1.bf16.msra.mxu0 0
        %3811 = vmatprep.subr.bf16.mxu0 0
        %3812 = vmatpush1.bf16.msra.mxu0 0
        %3813 = vmatprep.subr.bf16.mxu0 0
        %3814 = vmatpush1.bf16.msra.mxu0 0
        %3815 = vmatprep.subr.bf16.mxu0 0
        %3816 = vmatpush1.bf16.msra.mxu0 0
        %3817 = vmatprep.mubr.bf16.mxu0 0
        %3818 = vmatmul.mubr.bf16.gmra.mrb[0].mxu0 %v2389
        %v3819 = vpop.f32.mrb[0].mxu0
        %v3820 = vadd.f32 %v1487, %v3819
        %v3821 = vpop.f32.mrb[0].mxu0
        %v3822 = vadd.f32 %v1491, %v3821
        %v3823 = vpop.f32.mrb[0].mxu0
        %v3824 = vpop.f32.mrb[0].mxu0
        %3825 = vdwg.mxu0
        %3826 = vmatprep.subr.bf16.mxu0 %v2123
        %3827 = vmatpush1.bf16.msra.mxu0 %v2122
        %3828 = vmatprep.subr.bf16.mxu0 %v2207
        %3829 = vmatpush1.bf16.msra.mxu0 %v2206
        %3830 = vmatprep.subr.bf16.mxu0 0
        %3831 = vmatpush1.bf16.msra.mxu0 0
        %3832 = vmatprep.subr.bf16.mxu0 0
        %3833 = vmatpush1.bf16.msra.mxu0 0
        %3834 = vmatprep.subr.bf16.mxu0 0
        %3835 = vmatpush1.bf16.msra.mxu0 0
        %3836 = vmatprep.subr.bf16.mxu0 0
        %3837 = vmatpush1.bf16.msra.mxu0 0
        %3838 = vmatprep.subr.bf16.mxu0 0
        %3839 = vmatpush1.bf16.msra.mxu0 0
        %3840 = vmatprep.subr.bf16.mxu0 0
        %3841 = vmatpush1.bf16.msra.mxu0 0
        %3842 = vmatprep.subr.bf16.mxu0 0
        %3843 = vmatpush1.bf16.msra.mxu0 0
        %3844 = vmatprep.subr.bf16.mxu0 0
        %3845 = vmatpush1.bf16.msra.mxu0 0
        %3846 = vmatprep.subr.bf16.mxu0 0
        %3847 = vmatpush1.bf16.msra.mxu0 0
        %3848 = vmatprep.subr.bf16.mxu0 0
        %3849 = vmatpush1.bf16.msra.mxu0 0
        %3850 = vmatprep.subr.bf16.mxu0 0
        %3851 = vmatpush1.bf16.msra.mxu0 0
        %3852 = vmatprep.subr.bf16.mxu0 0
        %3853 = vmatpush1.bf16.msra.mxu0 0
        %3854 = vmatprep.subr.bf16.mxu0 0
        %3855 = vmatpush1.bf16.msra.mxu0 0
        %3856 = vmatprep.subr.bf16.mxu0 0
        %3857 = vmatpush1.bf16.msra.mxu0 0
        %3858 = vmatprep.mubr.bf16.mxu0 0
        %3859 = vmatmul.mubr.bf16.gmra.mrb[0].mxu0 %v2389
        %v3860 = vpop.f32.mrb[0].mxu0
        %v3861 = vadd.f32 %v1495, %v3860
        %v3862 = vpop.f32.mrb[0].mxu0
        %v3863 = vadd.f32 %v1499, %v3862
        %v3864 = vpop.f32.mrb[0].mxu0
        %v3865 = vpop.f32.mrb[0].mxu0
        %3866 = vdwg.mxu0
        %3867 = vmatprep.subr.bf16.mxu0 %v2125
        %3868 = vmatpush1.bf16.msra.mxu0 %v2124
        %3869 = vmatprep.subr.bf16.mxu0 %v2209
        %3870 = vmatpush1.bf16.msra.mxu0 %v2208
        %3871 = vmatprep.subr.bf16.mxu0 0
        %3872 = vmatpush1.bf16.msra.mxu0 0
        %3873 = vmatprep.subr.bf16.mxu0 0
        %3874 = vmatpush1.bf16.msra.mxu0 0
        %3875 = vmatprep.subr.bf16.mxu0 0
        %3876 = vmatpush1.bf16.msra.mxu0 0
        %3877 = vmatprep.subr.bf16.mxu0 0
        %3878 = vmatpush1.bf16.msra.mxu0 0
        %3879 = vmatprep.subr.bf16.mxu0 0
        %3880 = vmatpush1.bf16.msra.mxu0 0
        %3881 = vmatprep.subr.bf16.mxu0 0
        %3882 = vmatpush1.bf16.msra.mxu0 0
        %3883 = vmatprep.subr.bf16.mxu0 0
        %3884 = vmatpush1.bf16.msra.mxu0 0
        %3885 = vmatprep.subr.bf16.mxu0 0
        %3886 = vmatpush1.bf16.msra.mxu0 0
        %3887 = vmatprep.subr.bf16.mxu0 0
        %3888 = vmatpush1.bf16.msra.mxu0 0
        %3889 = vmatprep.subr.bf16.mxu0 0
        %3890 = vmatpush1.bf16.msra.mxu0 0
        %3891 = vmatprep.subr.bf16.mxu0 0
        %3892 = vmatpush1.bf16.msra.mxu0 0
        %3893 = vmatprep.subr.bf16.mxu0 0
        %3894 = vmatpush1.bf16.msra.mxu0 0
        %3895 = vmatprep.subr.bf16.mxu0 0
        %3896 = vmatpush1.bf16.msra.mxu0 0
        %3897 = vmatprep.subr.bf16.mxu0 0
        %3898 = vmatpush1.bf16.msra.mxu0 0
        %3899 = vmatprep.mubr.bf16.mxu0 0
        %3900 = vmatmul.mubr.bf16.gmra.mrb[0].mxu0 %v2389
        %v3901 = vpop.f32.mrb[0].mxu0
        %v3902 = vadd.f32 %v1503, %v3901
        %v3903 = vpop.f32.mrb[0].mxu0
        %v3904 = vadd.f32 %v1507, %v3903
        %v3905 = vpop.f32.mrb[0].mxu0
        %v3906 = vpop.f32.mrb[0].mxu0
        %3907 = vdwg.mxu0
        %3908 = vmatprep.subr.bf16.mxu0 %v2127
        %3909 = vmatpush1.bf16.msra.mxu0 %v2126
        %3910 = vmatprep.subr.bf16.mxu0 %v2211
        %3911 = vmatpush1.bf16.msra.mxu0 %v2210
        %3912 = vmatprep.subr.bf16.mxu0 0
        %3913 = vmatpush1.bf16.msra.mxu0 0
        %3914 = vmatprep.subr.bf16.mxu0 0
        %3915 = vmatpush1.bf16.msra.mxu0 0
        %3916 = vmatprep.subr.bf16.mxu0 0
        %3917 = vmatpush1.bf16.msra.mxu0 0
        %3918 = vmatprep.subr.bf16.mxu0 0
        %3919 = vmatpush1.bf16.msra.mxu0 0
        %3920 = vmatprep.subr.bf16.mxu0 0
        %3921 = vmatpush1.bf16.msra.mxu0 0
        %3922 = vmatprep.subr.bf16.mxu0 0
        %3923 = vmatpush1.bf16.msra.mxu0 0
        %3924 = vmatprep.subr.bf16.mxu0 0
        %3925 = vmatpush1.bf16.msra.mxu0 0
        %3926 = vmatprep.subr.bf16.mxu0 0
        %3927 = vmatpush1.bf16.msra.mxu0 0
        %3928 = vmatprep.subr.bf16.mxu0 0
        %3929 = vmatpush1.bf16.msra.mxu0 0
        %3930 = vmatprep.subr.bf16.mxu0 0
        %3931 = vmatpush1.bf16.msra.mxu0 0
        %3932 = vmatprep.subr.bf16.mxu0 0
        %3933 = vmatpush1.bf16.msra.mxu0 0
        %3934 = vmatprep.subr.bf16.mxu0 0
        %3935 = vmatpush1.bf16.msra.mxu0 0
        %3936 = vmatprep.subr.bf16.mxu0 0
        %3937 = vmatpush1.bf16.msra.mxu0 0
        %3938 = vmatprep.subr.bf16.mxu0 0
        %3939 = vmatpush1.bf16.msra.mxu0 0
        %3940 = vmatprep.mubr.bf16.mxu0 0
        %3941 = vmatmul.mubr.bf16.gmra.mrb[0].mxu0 %v2389
        %v3942 = vpop.f32.mrb[0].mxu0
        %v3943 = vadd.f32 %v1511, %v3942
        %v3944 = vpop.f32.mrb[0].mxu0
        %v3945 = vadd.f32 %v1515, %v3944
        %v3946 = vpop.f32.mrb[0].mxu0
        %v3947 = vpop.f32.mrb[0].mxu0
        %3948 = vdwg.mxu0
        %3949 = vmatprep.subr.bf16.mxu0 %v2129
        %3950 = vmatpush1.bf16.msra.mxu0 %v2128
        %3951 = vmatprep.subr.bf16.mxu0 %v2213
        %3952 = vmatpush1.bf16.msra.mxu0 %v2212
        %3953 = vmatprep.subr.bf16.mxu0 0
        %3954 = vmatpush1.bf16.msra.mxu0 0
        %3955 = vmatprep.subr.bf16.mxu0 0
        %3956 = vmatpush1.bf16.msra.mxu0 0
        %3957 = vmatprep.subr.bf16.mxu0 0
        %3958 = vmatpush1.bf16.msra.mxu0 0
        %3959 = vmatprep.subr.bf16.mxu0 0
        %3960 = vmatpush1.bf16.msra.mxu0 0
        %3961 = vmatprep.subr.bf16.mxu0 0
        %3962 = vmatpush1.bf16.msra.mxu0 0
        %3963 = vmatprep.subr.bf16.mxu0 0
        %3964 = vmatpush1.bf16.msra.mxu0 0
        %3965 = vmatprep.subr.bf16.mxu0 0
        %3966 = vmatpush1.bf16.msra.mxu0 0
        %3967 = vmatprep.subr.bf16.mxu0 0
        %3968 = vmatpush1.bf16.msra.mxu0 0
        %3969 = vmatprep.subr.bf16.mxu0 0
        %3970 = vmatpush1.bf16.msra.mxu0 0
        %3971 = vmatprep.subr.bf16.mxu0 0
        %3972 = vmatpush1.bf16.msra.mxu0 0
        %3973 = vmatprep.subr.bf16.mxu0 0
        %3974 = vmatpush1.bf16.msra.mxu0 0
        %3975 = vmatprep.subr.bf16.mxu0 0
        %3976 = vmatpush1.bf16.msra.mxu0 0
        %3977 = vmatprep.subr.bf16.mxu0 0
        %3978 = vmatpush1.bf16.msra.mxu0 0
        %3979 = vmatprep.subr.bf16.mxu0 0
        %3980 = vmatpush1.bf16.msra.mxu0 0
        %3981 = vmatprep.mubr.bf16.mxu0 0
        %3982 = vmatmul.mubr.bf16.gmra.mrb[0].mxu0 %v2389
        %v3983 = vpop.f32.mrb[0].mxu0
        %v3984 = vadd.f32 %v1519, %v3983
        %v3985 = vpop.f32.mrb[0].mxu0
        %v3986 = vadd.f32 %v1523, %v3985
        %v3987 = vpop.f32.mrb[0].mxu0
        %v3988 = vpop.f32.mrb[0].mxu0
        %3989 = vdwg.mxu0
        %3990 = vmatprep.subr.bf16.mxu0 %v2131
        %3991 = vmatpush1.bf16.msra.mxu0 %v2130
        %3992 = vmatprep.subr.bf16.mxu0 %v2215
        %3993 = vmatpush1.bf16.msra.mxu0 %v2214
        %3994 = vmatprep.subr.bf16.mxu0 0
        %3995 = vmatpush1.bf16.msra.mxu0 0
        %3996 = vmatprep.subr.bf16.mxu0 0
        %3997 = vmatpush1.bf16.msra.mxu0 0
        %3998 = vmatprep.subr.bf16.mxu0 0
        %3999 = vmatpush1.bf16.msra.mxu0 0
        %4000 = vmatprep.subr.bf16.mxu0 0
        %4001 = vmatpush1.bf16.msra.mxu0 0
        %4002 = vmatprep.subr.bf16.mxu0 0
        %4003 = vmatpush1.bf16.msra.mxu0 0
        %4004 = vmatprep.subr.bf16.mxu0 0
        %4005 = vmatpush1.bf16.msra.mxu0 0
        %4006 = vmatprep.subr.bf16.mxu0 0
        %4007 = vmatpush1.bf16.msra.mxu0 0
        %4008 = vmatprep.subr.bf16.mxu0 0
        %4009 = vmatpush1.bf16.msra.mxu0 0
        %4010 = vmatprep.subr.bf16.mxu0 0
        %4011 = vmatpush1.bf16.msra.mxu0 0
        %4012 = vmatprep.subr.bf16.mxu0 0
        %4013 = vmatpush1.bf16.msra.mxu0 0
        %4014 = vmatprep.subr.bf16.mxu0 0
        %4015 = vmatpush1.bf16.msra.mxu0 0
        %4016 = vmatprep.subr.bf16.mxu0 0
        %4017 = vmatpush1.bf16.msra.mxu0 0
        %4018 = vmatprep.subr.bf16.mxu0 0
        %4019 = vmatpush1.bf16.msra.mxu0 0
        %4020 = vmatprep.subr.bf16.mxu0 0
        %4021 = vmatpush1.bf16.msra.mxu0 0
        %4022 = vmatprep.mubr.bf16.mxu0 0
        %4023 = vmatmul.mubr.bf16.gmra.mrb[0].mxu0 %v2389
        %v4024 = vpop.f32.mrb[0].mxu0
        %v4025 = vadd.f32 %v1527, %v4024
        %v4026 = vpop.f32.mrb[0].mxu0
        %v4027 = vadd.f32 %v1531, %v4026
        %v4028 = vpop.f32.mrb[0].mxu0
        %v4029 = vpop.f32.mrb[0].mxu0
        %4030 = vdwg.mxu0
        %4031 = vmatprep.subr.bf16.mxu0 %v2133
        %4032 = vmatpush1.bf16.msra.mxu0 %v2132
        %4033 = vmatprep.subr.bf16.mxu0 %v2217
        %4034 = vmatpush1.bf16.msra.mxu0 %v2216
        %4035 = vmatprep.subr.bf16.mxu0 0
        %4036 = vmatpush1.bf16.msra.mxu0 0
        %4037 = vmatprep.subr.bf16.mxu0 0
        %4038 = vmatpush1.bf16.msra.mxu0 0
        %4039 = vmatprep.subr.bf16.mxu0 0
        %4040 = vmatpush1.bf16.msra.mxu0 0
        %4041 = vmatprep.subr.bf16.mxu0 0
        %4042 = vmatpush1.bf16.msra.mxu0 0
        %4043 = vmatprep.subr.bf16.mxu0 0
        %4044 = vmatpush1.bf16.msra.mxu0 0
        %4045 = vmatprep.subr.bf16.mxu0 0
        %4046 = vmatpush1.bf16.msra.mxu0 0
        %4047 = vmatprep.subr.bf16.mxu0 0
        %4048 = vmatpush1.bf16.msra.mxu0 0
        %4049 = vmatprep.subr.bf16.mxu0 0
        %4050 = vmatpush1.bf16.msra.mxu0 0
        %4051 = vmatprep.subr.bf16.mxu0 0
        %4052 = vmatpush1.bf16.msra.mxu0 0
        %4053 = vmatprep.subr.bf16.mxu0 0
        %4054 = vmatpush1.bf16.msra.mxu0 0
        %4055 = vmatprep.subr.bf16.mxu0 0
        %4056 = vmatpush1.bf16.msra.mxu0 0
        %4057 = vmatprep.subr.bf16.mxu0 0
        %4058 = vmatpush1.bf16.msra.mxu0 0
        %4059 = vmatprep.subr.bf16.mxu0 0
        %4060 = vmatpush1.bf16.msra.mxu0 0
        %4061 = vmatprep.subr.bf16.mxu0 0
        %4062 = vmatpush1.bf16.msra.mxu0 0
        %4063 = vmatprep.mubr.bf16.mxu0 0
        %4064 = vmatmul.mubr.bf16.gmra.mrb[0].mxu0 %v2389
        %v4065 = vpop.f32.mrb[0].mxu0
        %v4066 = vadd.f32 %v1535, %v4065
        %v4067 = vpop.f32.mrb[0].mxu0
        %v4068 = vadd.f32 %v1539, %v4067
        %v4069 = vpop.f32.mrb[0].mxu0
        %v4070 = vpop.f32.mrb[0].mxu0
        %4071 = vdwg.mxu0
        %4072 = vmatprep.subr.bf16.mxu0 %v2135
        %4073 = vmatpush1.bf16.msra.mxu0 %v2134
        %4074 = vmatprep.subr.bf16.mxu0 %v2219
        %4075 = vmatpush1.bf16.msra.mxu0 %v2218
        %4076 = vmatprep.subr.bf16.mxu0 0
        %4077 = vmatpush1.bf16.msra.mxu0 0
        %4078 = vmatprep.subr.bf16.mxu0 0
        %4079 = vmatpush1.bf16.msra.mxu0 0
        %4080 = vmatprep.subr.bf16.mxu0 0
        %4081 = vmatpush1.bf16.msra.mxu0 0
        %4082 = vmatprep.subr.bf16.mxu0 0
        %4083 = vmatpush1.bf16.msra.mxu0 0
        %4084 = vmatprep.subr.bf16.mxu0 0
        %4085 = vmatpush1.bf16.msra.mxu0 0
        %4086 = vmatprep.subr.bf16.mxu0 0
        %4087 = vmatpush1.bf16.msra.mxu0 0
        %4088 = vmatprep.subr.bf16.mxu0 0
        %4089 = vmatpush1.bf16.msra.mxu0 0
        %4090 = vmatprep.subr.bf16.mxu0 0
        %4091 = vmatpush1.bf16.msra.mxu0 0
        %4092 = vmatprep.subr.bf16.mxu0 0
        %4093 = vmatpush1.bf16.msra.mxu0 0
        %4094 = vmatprep.subr.bf16.mxu0 0
        %4095 = vmatpush1.bf16.msra.mxu0 0
        %4096 = vmatprep.subr.bf16.mxu0 0
        %4097 = vmatpush1.bf16.msra.mxu0 0
        %4098 = vmatprep.subr.bf16.mxu0 0
        %4099 = vmatpush1.bf16.msra.mxu0 0
        %4100 = vmatprep.subr.bf16.mxu0 0
        %4101 = vmatpush1.bf16.msra.mxu0 0
        %4102 = vmatprep.subr.bf16.mxu0 0
        %4103 = vmatpush1.bf16.msra.mxu0 0
        %4104 = vmatprep.mubr.bf16.mxu0 0
        %4105 = vmatmul.mubr.bf16.gmra.mrb[0].mxu0 %v2389
        %v4106 = vpop.f32.mrb[0].mxu0
        %v4107 = vadd.f32 %v1543, %v4106
        %v4108 = vpop.f32.mrb[0].mxu0
        %v4109 = vadd.f32 %v1547, %v4108
        %v4110 = vpop.f32.mrb[0].mxu0
        %v4111 = vpop.f32.mrb[0].mxu0
        %4112 = vdwg.mxu0
        %v4197 = vcombine.low %v2426, %v2428
        %v4198 = vcombine.low %v2467, %v2469
        %v4200 = vunpack.c.l.s4 1983009808
        %v4201 = vunpack.c.0.s8 %v4200
        %v4202 = vlaneseq
        %v4203 = vshrl.u32 %v4202, 7
        %v4204 = vsub.s32 %v4201, %v4203
        %v4205 = vrot.slane %v4197, %v4204
        %v4207 = vunpack.c.l.s4 1983009808
        %v4208 = vunpack.c.0.s8 %v4207
        %v4209 = vlaneseq
        %v4210 = vshrl.u32 %v4209, 7
        %v4211 = vsub.s32 %v4208, %v4210
        %v4212 = vrot.slane %v4198, %v4211
        %v4213 = vcombine.low %v4205, %v4212
        %v4214 = vcombine.low %v2508, %v2510
        %v4215 = vcombine.low %v2549, %v2551
        %v4217 = vunpack.c.l.s4 1983009808
        %v4218 = vunpack.c.0.s8 %v4217
        %v4219 = vlaneseq
        %v4220 = vshrl.u32 %v4219, 7
        %v4221 = vsub.s32 %v4218, %v4220
        %v4222 = vrot.slane %v4214, %v4221
        %v4224 = vunpack.c.l.s4 1983009808
        %v4225 = vunpack.c.0.s8 %v4224
        %v4226 = vlaneseq
        %v4227 = vshrl.u32 %v4226, 7
        %v4228 = vsub.s32 %v4225, %v4227
        %v4229 = vrot.slane %v4215, %v4228
        %v4230 = vcombine.low %v4222, %v4229
        %v4231 = vcombine.low %v2590, %v2592
        %v4232 = vcombine.low %v2631, %v2633
        %v4234 = vunpack.c.l.s4 1983009808
        %v4235 = vunpack.c.0.s8 %v4234
        %v4236 = vlaneseq
        %v4237 = vshrl.u32 %v4236, 7
        %v4238 = vsub.s32 %v4235, %v4237
        %v4239 = vrot.slane %v4231, %v4238
        %v4241 = vunpack.c.l.s4 1983009808
        %v4242 = vunpack.c.0.s8 %v4241
        %v4243 = vlaneseq
        %v4244 = vshrl.u32 %v4243, 7
        %v4245 = vsub.s32 %v4242, %v4244
        %v4246 = vrot.slane %v4232, %v4245
        %v4247 = vcombine.low %v4239, %v4246
        %v4248 = vcombine.low %v2672, %v2674
        %v4249 = vcombine.low %v2713, %v2715
        %v4251 = vunpack.c.l.s4 1983009808
        %v4252 = vunpack.c.0.s8 %v4251
        %v4253 = vlaneseq
        %v4254 = vshrl.u32 %v4253, 7
        %v4255 = vsub.s32 %v4252, %v4254
        %v4256 = vrot.slane %v4248, %v4255
        %v4258 = vunpack.c.l.s4 1983009808
        %v4259 = vunpack.c.0.s8 %v4258
        %v4260 = vlaneseq
        %v4261 = vshrl.u32 %v4260, 7
        %v4262 = vsub.s32 %v4259, %v4261
        %v4263 = vrot.slane %v4249, %v4262
        %v4264 = vcombine.low %v4256, %v4263
        %v4265 = vcombine.low %v2754, %v2756
        %v4266 = vcombine.low %v2795, %v2797
        %v4268 = vunpack.c.l.s4 1983009808
        %v4269 = vunpack.c.0.s8 %v4268
        %v4270 = vlaneseq
        %v4271 = vshrl.u32 %v4270, 7
        %v4272 = vsub.s32 %v4269, %v4271
        %v4273 = vrot.slane %v4265, %v4272
        %v4275 = vunpack.c.l.s4 1983009808
        %v4276 = vunpack.c.0.s8 %v4275
        %v4277 = vlaneseq
        %v4278 = vshrl.u32 %v4277, 7
        %v4279 = vsub.s32 %v4276, %v4278
        %v4280 = vrot.slane %v4266, %v4279
        %v4281 = vcombine.low %v4273, %v4280
        %v4282 = vcombine.low %v2836, %v2838
        %v4283 = vcombine.low %v2877, %v2879
        %v4285 = vunpack.c.l.s4 1983009808
        %v4286 = vunpack.c.0.s8 %v4285
        %v4287 = vlaneseq
        %v4288 = vshrl.u32 %v4287, 7
        %v4289 = vsub.s32 %v4286, %v4288
        %v4290 = vrot.slane %v4282, %v4289
        %v4292 = vunpack.c.l.s4 1983009808
        %v4293 = vunpack.c.0.s8 %v4292
        %v4294 = vlaneseq
        %v4295 = vshrl.u32 %v4294, 7
        %v4296 = vsub.s32 %v4293, %v4295
        %v4297 = vrot.slane %v4283, %v4296
        %v4298 = vcombine.low %v4290, %v4297
        %v4299 = vcombine.low %v2918, %v2920
        %v4300 = vcombine.low %v2959, %v2961
        %v4302 = vunpack.c.l.s4 1983009808
        %v4303 = vunpack.c.0.s8 %v4302
        %v4304 = vlaneseq
        %v4305 = vshrl.u32 %v4304, 7
        %v4306 = vsub.s32 %v4303, %v4305
        %v4307 = vrot.slane %v4299, %v4306
        %v4309 = vunpack.c.l.s4 1983009808
        %v4310 = vunpack.c.0.s8 %v4309
        %v4311 = vlaneseq
        %v4312 = vshrl.u32 %v4311, 7
        %v4313 = vsub.s32 %v4310, %v4312
        %v4314 = vrot.slane %v4300, %v4313
        %v4315 = vcombine.low %v4307, %v4314
        %v4316 = vcombine.low %v3000, %v3002
        %v4317 = vcombine.low %v3041, %v3043
        %v4319 = vunpack.c.l.s4 1983009808
        %v4320 = vunpack.c.0.s8 %v4319
        %v4321 = vlaneseq
        %v4322 = vshrl.u32 %v4321, 7
        %v4323 = vsub.s32 %v4320, %v4322
        %v4324 = vrot.slane %v4316, %v4323
        %v4326 = vunpack.c.l.s4 1983009808
        %v4327 = vunpack.c.0.s8 %v4326
        %v4328 = vlaneseq
        %v4329 = vshrl.u32 %v4328, 7
        %v4330 = vsub.s32 %v4327, %v4329
        %v4331 = vrot.slane %v4317, %v4330
        %v4332 = vcombine.low %v4324, %v4331
        %v4333 = vcombine.low %v3082, %v3084
        %v4334 = vcombine.low %v3123, %v3125
        %v4336 = vunpack.c.l.s4 1983009808
        %v4337 = vunpack.c.0.s8 %v4336
        %v4338 = vlaneseq
        %v4339 = vshrl.u32 %v4338, 7
        %v4340 = vsub.s32 %v4337, %v4339
        %v4341 = vrot.slane %v4333, %v4340
        %v4343 = vunpack.c.l.s4 1983009808
        %v4344 = vunpack.c.0.s8 %v4343
        %v4345 = vlaneseq
        %v4346 = vshrl.u32 %v4345, 7
        %v4347 = vsub.s32 %v4344, %v4346
        %v4348 = vrot.slane %v4334, %v4347
        %v4349 = vcombine.low %v4341, %v4348
        %v4350 = vcombine.low %v3164, %v3166
        %v4351 = vcombine.low %v3205, %v3207
        %v4353 = vunpack.c.l.s4 1983009808
        %v4354 = vunpack.c.0.s8 %v4353
        %v4355 = vlaneseq
        %v4356 = vshrl.u32 %v4355, 7
        %v4357 = vsub.s32 %v4354, %v4356
        %v4358 = vrot.slane %v4350, %v4357
        %v4360 = vunpack.c.l.s4 1983009808
        %v4361 = vunpack.c.0.s8 %v4360
        %v4362 = vlaneseq
        %v4363 = vshrl.u32 %v4362, 7
        %v4364 = vsub.s32 %v4361, %v4363
        %v4365 = vrot.slane %v4351, %v4364
        %v4366 = vcombine.low %v4358, %v4365
        %v4367 = vcombine.low %v3246, %v3248
        %v4368 = vcombine.low %v3287, %v3289
        %v4370 = vunpack.c.l.s4 1983009808
        %v4371 = vunpack.c.0.s8 %v4370
        %v4372 = vlaneseq
        %v4373 = vshrl.u32 %v4372, 7
        %v4374 = vsub.s32 %v4371, %v4373
        %v4375 = vrot.slane %v4367, %v4374
        %v4377 = vunpack.c.l.s4 1983009808
        %v4378 = vunpack.c.0.s8 %v4377
        %v4379 = vlaneseq
        %v4380 = vshrl.u32 %v4379, 7
        %v4381 = vsub.s32 %v4378, %v4380
        %v4382 = vrot.slane %v4368, %v4381
        %v4383 = vcombine.low %v4375, %v4382
        %v4384 = vcombine.low %v3328, %v3330
        %v4385 = vcombine.low %v3369, %v3371
        %v4387 = vunpack.c.l.s4 1983009808
        %v4388 = vunpack.c.0.s8 %v4387
        %v4389 = vlaneseq
        %v4390 = vshrl.u32 %v4389, 7
        %v4391 = vsub.s32 %v4388, %v4390
        %v4392 = vrot.slane %v4384, %v4391
        %v4394 = vunpack.c.l.s4 1983009808
        %v4395 = vunpack.c.0.s8 %v4394
        %v4396 = vlaneseq
        %v4397 = vshrl.u32 %v4396, 7
        %v4398 = vsub.s32 %v4395, %v4397
        %v4399 = vrot.slane %v4385, %v4398
        %v4400 = vcombine.low %v4392, %v4399
        %v4401 = vcombine.low %v3410, %v3412
        %v4402 = vcombine.low %v3451, %v3453
        %v4404 = vunpack.c.l.s4 1983009808
        %v4405 = vunpack.c.0.s8 %v4404
        %v4406 = vlaneseq
        %v4407 = vshrl.u32 %v4406, 7
        %v4408 = vsub.s32 %v4405, %v4407
        %v4409 = vrot.slane %v4401, %v4408
        %v4411 = vunpack.c.l.s4 1983009808
        %v4412 = vunpack.c.0.s8 %v4411
        %v4413 = vlaneseq
        %v4414 = vshrl.u32 %v4413, 7
        %v4415 = vsub.s32 %v4412, %v4414
        %v4416 = vrot.slane %v4402, %v4415
        %v4417 = vcombine.low %v4409, %v4416
        %v4418 = vcombine.low %v3492, %v3494
        %v4419 = vcombine.low %v3533, %v3535
        %v4421 = vunpack.c.l.s4 1983009808
        %v4422 = vunpack.c.0.s8 %v4421
        %v4423 = vlaneseq
        %v4424 = vshrl.u32 %v4423, 7
        %v4425 = vsub.s32 %v4422, %v4424
        %v4426 = vrot.slane %v4418, %v4425
        %v4428 = vunpack.c.l.s4 1983009808
        %v4429 = vunpack.c.0.s8 %v4428
        %v4430 = vlaneseq
        %v4431 = vshrl.u32 %v4430, 7
        %v4432 = vsub.s32 %v4429, %v4431
        %v4433 = vrot.slane %v4419, %v4432
        %v4434 = vcombine.low %v4426, %v4433
        %v4435 = vcombine.low %v3574, %v3576
        %v4436 = vcombine.low %v3615, %v3617
        %v4438 = vunpack.c.l.s4 1983009808
        %v4439 = vunpack.c.0.s8 %v4438
        %v4440 = vlaneseq
        %v4441 = vshrl.u32 %v4440, 7
        %v4442 = vsub.s32 %v4439, %v4441
        %v4443 = vrot.slane %v4435, %v4442
        %v4445 = vunpack.c.l.s4 1983009808
        %v4446 = vunpack.c.0.s8 %v4445
        %v4447 = vlaneseq
        %v4448 = vshrl.u32 %v4447, 7
        %v4449 = vsub.s32 %v4446, %v4448
        %v4450 = vrot.slane %v4436, %v4449
        %v4451 = vcombine.low %v4443, %v4450
        %v4452 = vcombine.low %v3656, %v3658
        %v4453 = vcombine.low %v3697, %v3699
        %v4455 = vunpack.c.l.s4 1983009808
        %v4456 = vunpack.c.0.s8 %v4455
        %v4457 = vlaneseq
        %v4458 = vshrl.u32 %v4457, 7
        %v4459 = vsub.s32 %v4456, %v4458
        %v4460 = vrot.slane %v4452, %v4459
        %v4462 = vunpack.c.l.s4 1983009808
        %v4463 = vunpack.c.0.s8 %v4462
        %v4464 = vlaneseq
        %v4465 = vshrl.u32 %v4464, 7
        %v4466 = vsub.s32 %v4463, %v4465
        %v4467 = vrot.slane %v4453, %v4466
        %v4468 = vcombine.low %v4460, %v4467
        %v4469 = vcombine.low %v3738, %v3740
        %v4470 = vcombine.low %v3779, %v3781
        %v4472 = vunpack.c.l.s4 1983009808
        %v4473 = vunpack.c.0.s8 %v4472
        %v4474 = vlaneseq
        %v4475 = vshrl.u32 %v4474, 7
        %v4476 = vsub.s32 %v4473, %v4475
        %v4477 = vrot.slane %v4469, %v4476
        %v4479 = vunpack.c.l.s4 1983009808
        %v4480 = vunpack.c.0.s8 %v4479
        %v4481 = vlaneseq
        %v4482 = vshrl.u32 %v4481, 7
        %v4483 = vsub.s32 %v4480, %v4482
        %v4484 = vrot.slane %v4470, %v4483
        %v4485 = vcombine.low %v4477, %v4484
        %v4486 = vcombine.low %v3820, %v3822
        %v4487 = vcombine.low %v3861, %v3863
        %v4489 = vunpack.c.l.s4 1983009808
        %v4490 = vunpack.c.0.s8 %v4489
        %v4491 = vlaneseq
        %v4492 = vshrl.u32 %v4491, 7
        %v4493 = vsub.s32 %v4490, %v4492
        %v4494 = vrot.slane %v4486, %v4493
        %v4496 = vunpack.c.l.s4 1983009808
        %v4497 = vunpack.c.0.s8 %v4496
        %v4498 = vlaneseq
        %v4499 = vshrl.u32 %v4498, 7
        %v4500 = vsub.s32 %v4497, %v4499
        %v4501 = vrot.slane %v4487, %v4500
        %v4502 = vcombine.low %v4494, %v4501
        %v4503 = vcombine.low %v3902, %v3904
        %v4504 = vcombine.low %v3943, %v3945
        %v4506 = vunpack.c.l.s4 1983009808
        %v4507 = vunpack.c.0.s8 %v4506
        %v4508 = vlaneseq
        %v4509 = vshrl.u32 %v4508, 7
        %v4510 = vsub.s32 %v4507, %v4509
        %v4511 = vrot.slane %v4503, %v4510
        %v4513 = vunpack.c.l.s4 1983009808
        %v4514 = vunpack.c.0.s8 %v4513
        %v4515 = vlaneseq
        %v4516 = vshrl.u32 %v4515, 7
        %v4517 = vsub.s32 %v4514, %v4516
        %v4518 = vrot.slane %v4504, %v4517
        %v4519 = vcombine.low %v4511, %v4518
        %v4520 = vcombine.low %v3984, %v3986
        %v4521 = vcombine.low %v4025, %v4027
        %v4523 = vunpack.c.l.s4 1983009808
        %v4524 = vunpack.c.0.s8 %v4523
        %v4525 = vlaneseq
        %v4526 = vshrl.u32 %v4525, 7
        %v4527 = vsub.s32 %v4524, %v4526
        %v4528 = vrot.slane %v4520, %v4527
        %v4530 = vunpack.c.l.s4 1983009808
        %v4531 = vunpack.c.0.s8 %v4530
        %v4532 = vlaneseq
        %v4533 = vshrl.u32 %v4532, 7
        %v4534 = vsub.s32 %v4531, %v4533
        %v4535 = vrot.slane %v4521, %v4534
        %v4536 = vcombine.low %v4528, %v4535
        %v4537 = vcombine.low %v4066, %v4068
        %v4538 = vcombine.low %v4107, %v4109
        %v4540 = vunpack.c.l.s4 1983009808
        %v4541 = vunpack.c.0.s8 %v4540
        %v4542 = vlaneseq
        %v4543 = vshrl.u32 %v4542, 7
        %v4544 = vsub.s32 %v4541, %v4543
        %v4545 = vrot.slane %v4537, %v4544
        %v4547 = vunpack.c.l.s4 1983009808
        %v4548 = vunpack.c.0.s8 %v4547
        %v4549 = vlaneseq
        %v4550 = vshrl.u32 %v4549, 7
        %v4551 = vsub.s32 %v4548, %v4550
        %v4552 = vrot.slane %v4538, %v4551
        %v4553 = vcombine.low %v4545, %v4552
        %4575 = vst [vmem:[%s396] sm:$0xff] %v4213
        %4576 = vst [vmem:[%s396 + $0x8] sm:$0xff] %v4230
        %4577 = vst [vmem:[%s396 + $0x10] sm:$0xff] %v4247
        %4578 = vst [vmem:[%s396 + $0x18] sm:$0xff] %v4264
        %4579 = vst [vmem:[%s396 + $0x20] sm:$0xff] %v4281
        %4580 = vst [vmem:[%s396 + $0x28] sm:$0xff] %v4298
        %4581 = vst [vmem:[%s396 + $0x30] sm:$0xff] %v4315
        %4582 = vst [vmem:[%s396 + $0x38] sm:$0xff] %v4332
        %4583 = vst [vmem:[%s396 + $0x40] sm:$0xff] %v4349
        %4584 = vst [vmem:[%s396 + $0x48] sm:$0xff] %v4366
        %4585 = vst [vmem:[%s396 + $0x50] sm:$0xff] %v4383
        %4586 = vst [vmem:[%s396 + $0x58] sm:$0xff] %v4400
        %4587 = vst [vmem:[%s396 + $0x60] sm:$0xff] %v4417
        %4588 = vst [vmem:[%s396 + $0x68] sm:$0xff] %v4434
        %4589 = vst [vmem:[%s396 + $0x70] sm:$0xff] %v4451
        %4590 = vst [vmem:[%s396 + $0x78] sm:$0xff] %v4468
        %4591 = vst [vmem:[%s396 + $0x80] sm:$0xff] %v4485
        %4592 = vst [vmem:[%s396 + $0x88] sm:$0xff] %v4502
        %4593 = vst [vmem:[%s396 + $0x90] sm:$0xff] %v4519
        %4594 = vst [vmem:[%s396 + $0x98] sm:$0xff] %v4536
        %4595 = vst [vmem:[%s396 + $0xa0] sm:$0xff] %v4553
        %s4596 = sand.u32 %s192, 1
        %s4597 = scalar_lea.sflag [#allocation4], %s4596
        %s4598 = sand.u32 %s192, 1
        %s4599 = smul.addr %s4598, 168
        %s4600 = scalar_lea.vmem [#allocation14], %s4599
        // Predicated region
        $region77: #{tpu_custom_call.1} parent=47 // pred_check
          %p4601 = pneg %p202
        $region78: #{tpu_custom_call.1} parent=47 // pred_check_branch
          %4603 = sbr.rel (%p4601) target = $region80
        $region79: #{tpu_custom_call.1} parent=47 // pred_region
          %s4604 = smul.u32 84, %s27
          %s4606 = ssub.s32 2688, 2688
          %4607 = vsyncadd %s4597, %s4606
          %s4608 = smul.addr %s4604, 32
          %s4609 = scalar_lea.hbm %s7, %s4608
          %s4611 = sshll.u32 %s4600, 4
          %s4612 = int_to_ptr.vmem [resolvable:$true] %s4611
          %4614 = dma.vmem_to_hbm [thread:$0]  %s4612, 2688, %s4609, %s4597
        $region80: #{tpu_custom_call.1} parent=47 // pred_fallthru
          _
      $region48: #{tpu_custom_call.1} parent=5 // pred_fallthru
        _
      %p4615 = scmp.le.s32.totalorder 2, %s22
      // Predicated region
      $region81: #{tpu_custom_call.1} parent=5 // pred_check
        %p4616 = pneg %p4615
      $region82: #{tpu_custom_call.1} parent=5 // pred_check_branch
        %4618 = sbr.rel (%p4616) target = $region84
      $region83: #{tpu_custom_call.1} parent=5 // pred_region
        %s4619 = ssub.s32 %s22, 2
        // Predicated region
        $region85: #{tpu_custom_call.1} parent=83 // pred_check
          %p4620 = pneg %p208
        $region86: #{tpu_custom_call.1} parent=83 // pred_check_branch
          %4622 = sbr.rel (%p4620) target = $region88
        $region87: #{tpu_custom_call.1} parent=83 // pred_region
          %s4623 = sand.u32 %s193, 1
          %s4624 = scalar_lea.sflag [#allocation4], %s4623
          %s4625 = sand.u32 %s193, 1
          %s4626 = smul.addr %s4625, 168
          %s4627 = scalar_lea.vmem [#allocation14], %s4626
          %4628 = dma.done %s4624, 2688
        $region88: #{tpu_custom_call.1} parent=83 // pred_fallthru
          _
      $region84: #{tpu_custom_call.1} parent=5 // pred_fallthru
        _
    $region6: #{tpu_custom_call.1} parent=1 // loop_footer
      %s26 = sadd.s32 1, %s22
    $region7: #{tpu_custom_call.1} parent=1 // loop_footer_branch
      %21 = sbr.rel target = $region3
    $region8: #{tpu_custom_call.1} parent=1 // loop_exit
      _
    %4629 = vsyncpa [#allocation3], 1
    %s4630 = scalar_lea.sflag [#allocation3], 1
    %4631 = vsyncpa %s4630, 1
    %4632 = vsyncpa [#allocation6], 1
    %4633 = vsyncpa [#allocation9], 1
    %4634 = vsyncpa [#allocation12], 1
    %s4635 = scalar_lea.sflag [#allocation12], 1
    %4636 = vsyncpa %s4635, 1
    %4637 = vsyncpa [#allocation4], 1
    %s4638 = scalar_lea.sflag [#allocation4], 1
    %4639 = vsyncpa %s4638, 1

</llo_original>
